<compile_context>
chip_gen: v6e
topology: v6e:2x2x1
jax: 0.10.0
libtpu: 0.0.40
codegen_flags: <defaults>
</compile_context>

<pallas_src>
import functools

import jax
import jax.numpy as jnp
from jax.experimental import pallas as pl
from jax.experimental.pallas import tpu as pltpu

DROPOUT_P = 0.2
N_EMBD = 384            # matches the PyTorch module's n_embd
HIDDEN = 4 * N_EMBD     # 4 * n_embd


def ffn_kernel(x_ref, mask_ref, w1_ref, b1_ref, w2_ref, b2_ref, o_ref):
    # h = relu(x @ W1 + b1)  -- bf16 MXU inputs, f32 accumulate.
    x = x_ref[...].astype(jnp.bfloat16)
    h = jnp.dot(x, w1_ref[...], preferred_element_type=jnp.float32)
    h = jnp.maximum(h + b1_ref[...], 0.0)

    # y = h @ W2 + b2 -- cast the (tm, H) intermediate to bf16: halves any
    # VMEM spill traffic and feeds the second MXU pass at full rate.
    y = jnp.dot(h.astype(jnp.bfloat16), w2_ref[...],
                preferred_element_type=jnp.float32)
    y = y + b2_ref[...]

    # Dropout epilogue: mask is already 0 or 1/(1-p); single multiply.
    o_ref[...] = (y * mask_ref[...]).astype(o_ref.dtype)


def _round_up(a, b):
    return (a + b - 1) // b * b


@functools.partial(jax.jit, static_argnames=("tm", "training"))
def feed_forward(x, w1, b1, w2, b2, key, *, tm=256, training=True):
    B, T, C = x.shape
    H = w1.shape[1]
    M = B * T

    # Row tiling: big tiles when M allows it; otherwise one tile holding all
    # rows rounded up to a sublane (8) multiple.
    tm_eff = tm if M >= tm else _round_up(M, 8)
    Mp = _round_up(M, tm_eff)

    xf = x.reshape(M, C)

    # nn.Dropout(p) training mask: keep w.p. (1-p), survivors scaled 1/(1-p).
    if training:
        keep = jax.random.bernoulli(key, 1.0 - DROPOUT_P, (M, C))
        mask = keep.astype(jnp.float32) * (1.0 / (1.0 - DROPOUT_P))
    else:
        mask = jnp.ones((M, C), jnp.float32)

    if Mp != M:
        pad = ((0, Mp - M), (0, 0))
        xf = jnp.pad(xf, pad)
        mask = jnp.pad(mask, pad)

    out = pl.pallas_call(
        ffn_kernel,
        out_shape=jax.ShapeDtypeStruct((Mp, C), x.dtype),
        grid=(Mp // tm_eff,),
        in_specs=[
            pl.BlockSpec((tm_eff, C), lambda i: (i, 0)),   # x tile
            pl.BlockSpec((tm_eff, C), lambda i: (i, 0)),   # dropout mask tile
            pl.BlockSpec((C, H), lambda i: (0, 0)),        # W1 (VMEM-resident)
            pl.BlockSpec((1, H), lambda i: (0, 0)),        # b1
            pl.BlockSpec((H, C), lambda i: (0, 0)),        # W2 (VMEM-resident)
            pl.BlockSpec((1, C), lambda i: (0, 0)),        # b2
        ],
        out_specs=pl.BlockSpec((tm_eff, C), lambda i: (i, 0)),
        compiler_params=pltpu.CompilerParams(
            dimension_semantics=("parallel",)),
    )(
        xf,
        mask,
        w1.astype(jnp.bfloat16),
        b1.reshape(1, H).astype(jnp.float32),
        w2.astype(jnp.bfloat16),
        b2.reshape(1, C).astype(jnp.float32),
    )
    return out[:M].reshape(B, T, C)


if __name__ == "__main__":
    key = jax.random.PRNGKey(0)
    kx, k1, kb1, k2, kb2, kdrop = jax.random.split(key, 6)

    B, T, C, H = 2, 8, N_EMBD, HIDDEN

    # Deterministic synthetic parameters (shapes implied by the nn.Linear layers,
    # stored as (in_features, out_features) so the kernel computes x @ W + b).
    x = jax.random.normal(kx, (B, T, C), dtype=jnp.float32)
    w1 = jax.random.normal(k1, (C, H), dtype=jnp.float32) * (1.0 / jnp.sqrt(C))
    b1 = jax.random.normal(kb1, (H,), dtype=jnp.float32) * 0.01
    w2 = jax.random.normal(k2, (H, C), dtype=jnp.float32) * (1.0 / jnp.sqrt(H))
    b2 = jax.random.normal(kb2, (C,), dtype=jnp.float32) * 0.01

    y = feed_forward(x, w1, b1, w2, b2, kdrop)
    jax.block_until_ready(y)
    assert y.shape == (B, T, C) and y.dtype == jnp.float32
    print("KERNEL_OK")
</pallas_src>

<mosaic_0001>
module attributes {stable_mosaic.version = 11 : i64} {
  func.func @ffn_kernel(%arg0: i32, %arg1: memref<16x384xf32, #tpu.memory_space<vmem>>, %arg2: memref<16x384xf32, #tpu.memory_space<vmem>>, %arg3: memref<384x1536xbf16, #tpu.memory_space<vmem>>, %arg4: memref<1x1536xf32, #tpu.memory_space<vmem>>, %arg5: memref<1536x384xbf16, #tpu.memory_space<vmem>>, %arg6: memref<1x384xf32, #tpu.memory_space<vmem>>, %arg7: memref<16x384xf32, #tpu.memory_space<vmem>>) attributes {dimension_semantics = [#tpu.dimension_semantics<parallel>], iteration_bounds = array<i64: 1>, scalar_prefetch = 0 : i64, scratch_operands = 0 : i64, tpu.core_type = #tpu.core_type<tc>, window_params = [{transform_indices = @transform_0, window_bounds = array<i64: 16, 384>}, {transform_indices = @transform_1, window_bounds = array<i64: 16, 384>}, {pipeline_mode = #tpu.pipeline_mode<synchronous>, transform_indices = @transform_2, window_bounds = array<i64: 384, 1536>}, {pipeline_mode = #tpu.pipeline_mode<synchronous>, transform_indices = @transform_3, window_bounds = array<i64: 1, 1536>}, {pipeline_mode = #tpu.pipeline_mode<synchronous>, transform_indices = @transform_4, window_bounds = array<i64: 1536, 384>}, {pipeline_mode = #tpu.pipeline_mode<synchronous>, transform_indices = @transform_5, window_bounds = array<i64: 1, 384>}, {transform_indices = @transform_6, window_bounds = array<i64: 16, 384>}]} {
    %c0 = arith.constant 0 : index
    %c0_0 = arith.constant 0 : index
    %0 = vector.load %arg1[%c0, %c0_0] : memref<16x384xf32, #tpu.memory_space<vmem>>, vector<16x384xf32>
    %1 = arith.truncf %0 : vector<16x384xf32> to vector<16x384xbf16>
    %c0_1 = arith.constant 0 : index
    %c0_2 = arith.constant 0 : index
    %2 = vector.load %arg3[%c0_1, %c0_2] : memref<384x1536xbf16, #tpu.memory_space<vmem>>, vector<384x1536xbf16>
    %cst = arith.constant dense<0.000000e+00> : vector<16x1536xf32>
    %3 = tpu.matmul %1, %2, %cst {dimension_numbers = #tpu.dot_dimension_numbers<[1], [0], [0], [1], [0, 0, 1, 1], [], []>} : vector<16x384xbf16>, vector<384x1536xbf16>, vector<16x1536xf32> -> vector<16x1536xf32>
    %c0_3 = arith.constant 0 : index
    %c0_4 = arith.constant 0 : index
    %4 = vector.load %arg4[%c0_3, %c0_4] : memref<1x1536xf32, #tpu.memory_space<vmem>>, vector<1x1536xf32>
    %5 = vector.broadcast %4 : vector<1x1536xf32> to vector<16x1536xf32>
    %6 = arith.addf %3, %5 : vector<16x1536xf32>
    %cst_5 = arith.constant 0.000000e+00 : f32
    %7 = vector.broadcast %cst_5 : f32 to vector<16x1536xf32>
    %8 = arith.maximumf %6, %7 : vector<16x1536xf32>
    %9 = arith.truncf %8 : vector<16x1536xf32> to vector<16x1536xbf16>
    %c0_6 = arith.constant 0 : index
    %c0_7 = arith.constant 0 : index
    %10 = vector.load %arg5[%c0_6, %c0_7] : memref<1536x384xbf16, #tpu.memory_space<vmem>>, vector<1536x384xbf16>
    %cst_8 = arith.constant dense<0.000000e+00> : vector<16x384xf32>
    %11 = tpu.matmul %9, %10, %cst_8 {dimension_numbers = #tpu.dot_dimension_numbers<[1], [0], [0], [1], [0, 0, 1, 1], [], []>} : vector<16x1536xbf16>, vector<1536x384xbf16>, vector<16x384xf32> -> vector<16x384xf32>
    %c0_9 = arith.constant 0 : index
    %c0_10 = arith.constant 0 : index
    %12 = vector.load %arg6[%c0_9, %c0_10] : memref<1x384xf32, #tpu.memory_space<vmem>>, vector<1x384xf32>
    %13 = vector.broadcast %12 : vector<1x384xf32> to vector<16x384xf32>
    %14 = arith.addf %11, %13 : vector<16x384xf32>
    %c0_11 = arith.constant 0 : index
    %c0_12 = arith.constant 0 : index
    %15 = vector.load %arg2[%c0_11, %c0_12] : memref<16x384xf32, #tpu.memory_space<vmem>>, vector<16x384xf32>
    %16 = arith.mulf %14, %15 : vector<16x384xf32>
    %c0_13 = arith.constant 0 : index
    %c0_14 = arith.constant 0 : index
    %17 = vector.load %arg7[%c0_13, %c0_14] : memref<16x384xf32, #tpu.memory_space<vmem>>, vector<16x384xf32>
    tpu.vector_store %arg7[%c0_13, %c0_14], %16 {strides = array<i32>} : memref<16x384xf32, #tpu.memory_space<vmem>>, vector<16x384xf32>,
    return
  }
  func.func @transform_0(%arg0: i32) -> (i32, i32) {
    %c0_i32 = arith.constant 0 : i32
    %c0_i32_0 = arith.constant 0 : i32
    return %arg0, %c0_i32 : i32, i32
  }
  func.func @transform_1(%arg0: i32) -> (i32, i32) {
    %c0_i32 = arith.constant 0 : i32
    %c0_i32_0 = arith.constant 0 : i32
    return %arg0, %c0_i32 : i32, i32
  }
  func.func @transform_2(%arg0: i32) -> (i32, i32) {
    %c0_i32 = arith.constant 0 : i32
    %c0_i32_0 = arith.constant 0 : i32
    %c0_i32_1 = arith.constant 0 : i32
    return %c0_i32, %c0_i32_0 : i32, i32
  }
  func.func @transform_3(%arg0: i32) -> (i32, i32) {
    %c0_i32 = arith.constant 0 : i32
    %c0_i32_0 = arith.constant 0 : i32
    %c0_i32_1 = arith.constant 0 : i32
    return %c0_i32, %c0_i32_0 : i32, i32
  }
  func.func @transform_4(%arg0: i32) -> (i32, i32) {
    %c0_i32 = arith.constant 0 : i32
    %c0_i32_0 = arith.constant 0 : i32
    %c0_i32_1 = arith.constant 0 : i32
    return %c0_i32, %c0_i32_0 : i32, i32
  }
  func.func @transform_5(%arg0: i32) -> (i32, i32) {
    %c0_i32 = arith.constant 0 : i32
    %c0_i32_0 = arith.constant 0 : i32
    %c0_i32_1 = arith.constant 0 : i32
    return %c0_i32, %c0_i32_0 : i32, i32
  }
  func.func @transform_6(%arg0: i32) -> (i32, i32) {
    %c0_i32 = arith.constant 0 : i32
    %c0_i32_0 = arith.constant 0 : i32
    return %arg0, %c0_i32 : i32, i32
  }
}

</mosaic_0001>

<llo_original>
// kernel: feed_forward.1
$region0: #{feed_forward.1}
  #allocation0 [shape = 'u32[]', space=smem, size = 0x4, offset = 0x4, fixed_abs, tag = 'smem constant byte address 0x4 - core index']
  #allocation1 [shape = 'u32[144,128]{1,0:T(1,128)}', space=vmem, size = 0x12000, scoped, tag = 'internal scratch']
  %s0 = inlined_call_operand.vmem [shape: f32[16,384], index: 0, kind: input, shape index: {}]
  %s1 = inlined_call_operand.vmem [shape: f32[16,384], index: 1, kind: input, shape index: {}]
  %s2 = inlined_call_operand.vmem [shape: bf16[384,1536], index: 2, kind: input, shape index: {}]
  %s3 = inlined_call_operand.vmem [shape: f32[1,1536], index: 3, kind: input, shape index: {}]
  %s4 = inlined_call_operand.vmem [shape: bf16[1536,384], index: 4, kind: input, shape index: {}]
  %s5 = inlined_call_operand.vmem [shape: f32[1,384], index: 5, kind: input, shape index: {}]
  %s6 = inlined_call_operand.hbm [shape: f32[16,384], index: 6, kind: output, shape index: {}]
  %s7 = sld [smem:[#allocation0]]
  $region34: #{feed_forward.1} parent=0
    _
  %s9 = ssub.s32 1, %s7
  %s10 = scalar_select 0, %s9, %s7
  $region1: #{feed_forward.1} parent=0
    #allocation2 [shape = 'u8[24576]{0}', space=vmem, size = 0x6000, scoped, tag = 'output window, operand 0, single buffered']
    #allocation3 [shape = 's32[1]{0}', space=sflag, size = 0x4, scoped, tag = 'scoped memory for feed_forward.1']
    %11 = vsyncpa [#allocation3], 0
    // Predicated region
    $region2: #{feed_forward.1} parent=1 // pred_check
      _
    $region3: #{feed_forward.1} parent=1 // pred_check_branch
      %13 = sbr.rel (0) target = $region5
    $region4: #{feed_forward.1} parent=1 // pred_region
      _
    $region5: #{feed_forward.1} parent=1 // pred_fallthru
      _
    // Predicated region
    $region6: #{feed_forward.1} parent=1 // pred_check
      _
    $region7: #{feed_forward.1} parent=1 // pred_check_branch
      %15 = sbr.rel (0) target = $region9
    $region8: #{feed_forward.1} parent=1 // pred_region
      _
    $region9: #{feed_forward.1} parent=1 // pred_fallthru
      _
    // Predicated region
    $region10: #{feed_forward.1} parent=1 // pred_check
      _
    $region11: #{feed_forward.1} parent=1 // pred_check_branch
      %17 = sbr.rel (0) target = $region13
    $region12: #{feed_forward.1} parent=1 // pred_region
      _
    $region13: #{feed_forward.1} parent=1 // pred_fallthru
      _
    // Predicated region
    $region14: #{feed_forward.1} parent=1 // pred_check
      _
    $region15: #{feed_forward.1} parent=1 // pred_check_branch
      %19 = sbr.rel (0) target = $region17
    $region16: #{feed_forward.1} parent=1 // pred_region
      _
    $region17: #{feed_forward.1} parent=1 // pred_fallthru
      _
    // Predicated region
    $region18: #{feed_forward.1} parent=1 // pred_check
      _
    $region19: #{feed_forward.1} parent=1 // pred_check_branch
      %21 = sbr.rel (0) target = $region21
    $region20: #{feed_forward.1} parent=1 // pred_region
      _
    $region21: #{feed_forward.1} parent=1 // pred_fallthru
      _
    // Predicated region
    $region22: #{feed_forward.1} parent=1 // pred_check
      _
    $region23: #{feed_forward.1} parent=1 // pred_check_branch
      %23 = sbr.rel (0) target = $region25
    $region24: #{feed_forward.1} parent=1 // pred_region
      _
    $region25: #{feed_forward.1} parent=1 // pred_fallthru
      _
    %v25 = vld [vmem:[%s0] sm:$0xff]
    %v26 = vld [vmem:[%s0 + $0x8] sm:$0xff]
    %v27 = vld [vmem:[%s0 + $0x10] sm:$0xff]
    %v28 = vld [vmem:[%s0 + $0x18] sm:$0xff]
    %v29 = vld [vmem:[%s0 + $0x20] sm:$0xff]
    %v30 = vld [vmem:[%s0 + $0x28] sm:$0xff]
    %v31 = vpack.c.bf16 %v28, %v25
    %v32 = vpack.c.bf16 %v29, %v26
    %v33 = vpack.c.bf16 %v30, %v27
    %v34 = vld [vmem:[%s2] sm:$0xff]
    %v35 = vld [vmem:[%s2 + $0x8] sm:$0xff]
    %v36 = vld [vmem:[%s2 + $0x10] sm:$0xff]
    %v37 = vld [vmem:[%s2 + $0x18] sm:$0xff]
    %v38 = vld [vmem:[%s2 + $0x20] sm:$0xff]
    %v39 = vld [vmem:[%s2 + $0x28] sm:$0xff]
    %v40 = vld [vmem:[%s2 + $0x30] sm:$0xff]
    %v41 = vld [vmem:[%s2 + $0x38] sm:$0xff]
    %v42 = vld [vmem:[%s2 + $0x40] sm:$0xff]
    %v43 = vld [vmem:[%s2 + $0x48] sm:$0xff]
    %v44 = vld [vmem:[%s2 + $0x50] sm:$0xff]
    %v45 = vld [vmem:[%s2 + $0x58] sm:$0xff]
    %v46 = vld [vmem:[%s2 + $0x60] sm:$0xff]
    %v47 = vld [vmem:[%s2 + $0x68] sm:$0xff]
    %v48 = vld [vmem:[%s2 + $0x70] sm:$0xff]
    %v49 = vld [vmem:[%s2 + $0x78] sm:$0xff]
    %v50 = vld [vmem:[%s2 + $0x80] sm:$0xff]
    %v51 = vld [vmem:[%s2 + $0x88] sm:$0xff]
    %v52 = vld [vmem:[%s2 + $0x90] sm:$0xff]
    %v53 = vld [vmem:[%s2 + $0x98] sm:$0xff]
    %v54 = vld [vmem:[%s2 + $0xa0] sm:$0xff]
    %v55 = vld [vmem:[%s2 + $0xa8] sm:$0xff]
    %v56 = vld [vmem:[%s2 + $0xb0] sm:$0xff]
    %v57 = vld [vmem:[%s2 + $0xb8] sm:$0xff]
    %v58 = vld [vmem:[%s2 + $0xc0] sm:$0xff]
    %v59 = vld [vmem:[%s2 + $0xc8] sm:$0xff]
    %v60 = vld [vmem:[%s2 + $0xd0] sm:$0xff]
    %v61 = vld [vmem:[%s2 + $0xd8] sm:$0xff]
    %v62 = vld [vmem:[%s2 + $0xe0] sm:$0xff]
    %v63 = vld [vmem:[%s2 + $0xe8] sm:$0xff]
    %v64 = vld [vmem:[%s2 + $0xf0] sm:$0xff]
    %v65 = vld [vmem:[%s2 + $0xf8] sm:$0xff]
    %v66 = vld [vmem:[%s2 + $0x100] sm:$0xff]
    %v67 = vld [vmem:[%s2 + $0x108] sm:$0xff]
    %v68 = vld [vmem:[%s2 + $0x110] sm:$0xff]
    %v69 = vld [vmem:[%s2 + $0x118] sm:$0xff]
    %v70 = vld [vmem:[%s2 + $0x120] sm:$0xff]
    %v71 = vld [vmem:[%s2 + $0x128] sm:$0xff]
    %v72 = vld [vmem:[%s2 + $0x130] sm:$0xff]
    %v73 = vld [vmem:[%s2 + $0x138] sm:$0xff]
    %v74 = vld [vmem:[%s2 + $0x140] sm:$0xff]
    %v75 = vld [vmem:[%s2 + $0x148] sm:$0xff]
    %v76 = vld [vmem:[%s2 + $0x150] sm:$0xff]
    %v77 = vld [vmem:[%s2 + $0x158] sm:$0xff]
    %v78 = vld [vmem:[%s2 + $0x160] sm:$0xff]
    %v79 = vld [vmem:[%s2 + $0x168] sm:$0xff]
    %v80 = vld [vmem:[%s2 + $0x170] sm:$0xff]
    %v81 = vld [vmem:[%s2 + $0x178] sm:$0xff]
    %v82 = vld [vmem:[%s2 + $0x180] sm:$0xff]
    %v83 = vld [vmem:[%s2 + $0x188] sm:$0xff]
    %v84 = vld [vmem:[%s2 + $0x190] sm:$0xff]
    %v85 = vld [vmem:[%s2 + $0x198] sm:$0xff]
    %v86 = vld [vmem:[%s2 + $0x1a0] sm:$0xff]
    %v87 = vld [vmem:[%s2 + $0x1a8] sm:$0xff]
    %v88 = vld [vmem:[%s2 + $0x1b0] sm:$0xff]
    %v89 = vld [vmem:[%s2 + $0x1b8] sm:$0xff]
    %v90 = vld [vmem:[%s2 + $0x1c0] sm:$0xff]
    %v91 = vld [vmem:[%s2 + $0x1c8] sm:$0xff]
    %v92 = vld [vmem:[%s2 + $0x1d0] sm:$0xff]
    %v93 = vld [vmem:[%s2 + $0x1d8] sm:$0xff]
    %v94 = vld [vmem:[%s2 + $0x1e0] sm:$0xff]
    %v95 = vld [vmem:[%s2 + $0x1e8] sm:$0xff]
    %v96 = vld [vmem:[%s2 + $0x1f0] sm:$0xff]
    %v97 = vld [vmem:[%s2 + $0x1f8] sm:$0xff]
    %v98 = vld [vmem:[%s2 + $0x200] sm:$0xff]
    %v99 = vld [vmem:[%s2 + $0x208] sm:$0xff]
    %v100 = vld [vmem:[%s2 + $0x210] sm:$0xff]
    %v101 = vld [vmem:[%s2 + $0x218] sm:$0xff]
    %v102 = vld [vmem:[%s2 + $0x220] sm:$0xff]
    %v103 = vld [vmem:[%s2 + $0x228] sm:$0xff]
    %v104 = vld [vmem:[%s2 + $0x230] sm:$0xff]
    %v105 = vld [vmem:[%s2 + $0x238] sm:$0xff]
    %v106 = vld [vmem:[%s2 + $0x240] sm:$0xff]
    %v107 = vld [vmem:[%s2 + $0x248] sm:$0xff]
    %v108 = vld [vmem:[%s2 + $0x250] sm:$0xff]
    %v109 = vld [vmem:[%s2 + $0x258] sm:$0xff]
    %v110 = vld [vmem:[%s2 + $0x260] sm:$0xff]
    %v111 = vld [vmem:[%s2 + $0x268] sm:$0xff]
    %v112 = vld [vmem:[%s2 + $0x270] sm:$0xff]
    %v113 = vld [vmem:[%s2 + $0x278] sm:$0xff]
    %v114 = vld [vmem:[%s2 + $0x280] sm:$0xff]
    %v115 = vld [vmem:[%s2 + $0x288] sm:$0xff]
    %v116 = vld [vmem:[%s2 + $0x290] sm:$0xff]
    %v117 = vld [vmem:[%s2 + $0x298] sm:$0xff]
    %v118 = vld [vmem:[%s2 + $0x2a0] sm:$0xff]
    %v119 = vld [vmem:[%s2 + $0x2a8] sm:$0xff]
    %v120 = vld [vmem:[%s2 + $0x2b0] sm:$0xff]
    %v121 = vld [vmem:[%s2 + $0x2b8] sm:$0xff]
    %v122 = vld [vmem:[%s2 + $0x2c0] sm:$0xff]
    %v123 = vld [vmem:[%s2 + $0x2c8] sm:$0xff]
    %v124 = vld [vmem:[%s2 + $0x2d0] sm:$0xff]
    %v125 = vld [vmem:[%s2 + $0x2d8] sm:$0xff]
    %v126 = vld [vmem:[%s2 + $0x2e0] sm:$0xff]
    %v127 = vld [vmem:[%s2 + $0x2e8] sm:$0xff]
    %v128 = vld [vmem:[%s2 + $0x2f0] sm:$0xff]
    %v129 = vld [vmem:[%s2 + $0x2f8] sm:$0xff]
    %v130 = vld [vmem:[%s2 + $0x300] sm:$0xff]
    %v131 = vld [vmem:[%s2 + $0x308] sm:$0xff]
    %v132 = vld [vmem:[%s2 + $0x310] sm:$0xff]
    %v133 = vld [vmem:[%s2 + $0x318] sm:$0xff]
    %v134 = vld [vmem:[%s2 + $0x320] sm:$0xff]
    %v135 = vld [vmem:[%s2 + $0x328] sm:$0xff]
    %v136 = vld [vmem:[%s2 + $0x330] sm:$0xff]
    %v137 = vld [vmem:[%s2 + $0x338] sm:$0xff]
    %v138 = vld [vmem:[%s2 + $0x340] sm:$0xff]
    %v139 = vld [vmem:[%s2 + $0x348] sm:$0xff]
    %v140 = vld [vmem:[%s2 + $0x350] sm:$0xff]
    %v141 = vld [vmem:[%s2 + $0x358] sm:$0xff]
    %v142 = vld [vmem:[%s2 + $0x360] sm:$0xff]
    %v143 = vld [vmem:[%s2 + $0x368] sm:$0xff]
    %v144 = vld [vmem:[%s2 + $0x370] sm:$0xff]
    %v145 = vld [vmem:[%s2 + $0x378] sm:$0xff]
    %v146 = vld [vmem:[%s2 + $0x380] sm:$0xff]
    %v147 = vld [vmem:[%s2 + $0x388] sm:$0xff]
    %v148 = vld [vmem:[%s2 + $0x390] sm:$0xff]
    %v149 = vld [vmem:[%s2 + $0x398] sm:$0xff]
    %v150 = vld [vmem:[%s2 + $0x3a0] sm:$0xff]
    %v151 = vld [vmem:[%s2 + $0x3a8] sm:$0xff]
    %v152 = vld [vmem:[%s2 + $0x3b0] sm:$0xff]
    %v153 = vld [vmem:[%s2 + $0x3b8] sm:$0xff]
    %v154 = vld [vmem:[%s2 + $0x3c0] sm:$0xff]
    %v155 = vld [vmem:[%s2 + $0x3c8] sm:$0xff]
    %v156 = vld [vmem:[%s2 + $0x3d0] sm:$0xff]
    %v157 = vld [vmem:[%s2 + $0x3d8] sm:$0xff]
    %v158 = vld [vmem:[%s2 + $0x3e0] sm:$0xff]
    %v159 = vld [vmem:[%s2 + $0x3e8] sm:$0xff]
    %v160 = vld [vmem:[%s2 + $0x3f0] sm:$0xff]
    %v161 = vld [vmem:[%s2 + $0x3f8] sm:$0xff]
    %v162 = vld [vmem:[%s2 + $0x400] sm:$0xff]
    %v163 = vld [vmem:[%s2 + $0x408] sm:$0xff]
    %v164 = vld [vmem:[%s2 + $0x410] sm:$0xff]
    %v165 = vld [vmem:[%s2 + $0x418] sm:$0xff]
    %v166 = vld [vmem:[%s2 + $0x420] sm:$0xff]
    %v167 = vld [vmem:[%s2 + $0x428] sm:$0xff]
    %v168 = vld [vmem:[%s2 + $0x430] sm:$0xff]
    %v169 = vld [vmem:[%s2 + $0x438] sm:$0xff]
    %v170 = vld [vmem:[%s2 + $0x440] sm:$0xff]
    %v171 = vld [vmem:[%s2 + $0x448] sm:$0xff]
    %v172 = vld [vmem:[%s2 + $0x450] sm:$0xff]
    %v173 = vld [vmem:[%s2 + $0x458] sm:$0xff]
    %v174 = vld [vmem:[%s2 + $0x460] sm:$0xff]
    %v175 = vld [vmem:[%s2 + $0x468] sm:$0xff]
    %v176 = vld [vmem:[%s2 + $0x470] sm:$0xff]
    %v177 = vld [vmem:[%s2 + $0x478] sm:$0xff]
    %v178 = vld [vmem:[%s2 + $0x480] sm:$0xff]
    %v179 = vld [vmem:[%s2 + $0x488] sm:$0xff]
    %v180 = vld [vmem:[%s2 + $0x490] sm:$0xff]
    %v181 = vld [vmem:[%s2 + $0x498] sm:$0xff]
    %v182 = vld [vmem:[%s2 + $0x4a0] sm:$0xff]
    %v183 = vld [vmem:[%s2 + $0x4a8] sm:$0xff]
    %v184 = vld [vmem:[%s2 + $0x4b0] sm:$0xff]
    %v185 = vld [vmem:[%s2 + $0x4b8] sm:$0xff]
    %v186 = vld [vmem:[%s2 + $0x4c0] sm:$0xff]
    %v187 = vld [vmem:[%s2 + $0x4c8] sm:$0xff]
    %v188 = vld [vmem:[%s2 + $0x4d0] sm:$0xff]
    %v189 = vld [vmem:[%s2 + $0x4d8] sm:$0xff]
    %v190 = vld [vmem:[%s2 + $0x4e0] sm:$0xff]
    %v191 = vld [vmem:[%s2 + $0x4e8] sm:$0xff]
    %v192 = vld [vmem:[%s2 + $0x4f0] sm:$0xff]
    %v193 = vld [vmem:[%s2 + $0x4f8] sm:$0xff]
    %v194 = vld [vmem:[%s2 + $0x500] sm:$0xff]
    %v195 = vld [vmem:[%s2 + $0x508] sm:$0xff]
    %v196 = vld [vmem:[%s2 + $0x510] sm:$0xff]
    %v197 = vld [vmem:[%s2 + $0x518] sm:$0xff]
    %v198 = vld [vmem:[%s2 + $0x520] sm:$0xff]
    %v199 = vld [vmem:[%s2 + $0x528] sm:$0xff]
    %v200 = vld [vmem:[%s2 + $0x530] sm:$0xff]
    %v201 = vld [vmem:[%s2 + $0x538] sm:$0xff]
    %v202 = vld [vmem:[%s2 + $0x540] sm:$0xff]
    %v203 = vld [vmem:[%s2 + $0x548] sm:$0xff]
    %v204 = vld [vmem:[%s2 + $0x550] sm:$0xff]
    %v205 = vld [vmem:[%s2 + $0x558] sm:$0xff]
    %v206 = vld [vmem:[%s2 + $0x560] sm:$0xff]
    %v207 = vld [vmem:[%s2 + $0x568] sm:$0xff]
    %v208 = vld [vmem:[%s2 + $0x570] sm:$0xff]
    %v209 = vld [vmem:[%s2 + $0x578] sm:$0xff]
    %v210 = vld [vmem:[%s2 + $0x580] sm:$0xff]
    %v211 = vld [vmem:[%s2 + $0x588] sm:$0xff]
    %v212 = vld [vmem:[%s2 + $0x590] sm:$0xff]
    %v213 = vld [vmem:[%s2 + $0x598] sm:$0xff]
    %v214 = vld [vmem:[%s2 + $0x5a0] sm:$0xff]
    %v215 = vld [vmem:[%s2 + $0x5a8] sm:$0xff]
    %v216 = vld [vmem:[%s2 + $0x5b0] sm:$0xff]
    %v217 = vld [vmem:[%s2 + $0x5b8] sm:$0xff]
    %v218 = vld [vmem:[%s2 + $0x5c0] sm:$0xff]
    %v219 = vld [vmem:[%s2 + $0x5c8] sm:$0xff]
    %v220 = vld [vmem:[%s2 + $0x5d0] sm:$0xff]
    %v221 = vld [vmem:[%s2 + $0x5d8] sm:$0xff]
    %v222 = vld [vmem:[%s2 + $0x5e0] sm:$0xff]
    %v223 = vld [vmem:[%s2 + $0x5e8] sm:$0xff]
    %v224 = vld [vmem:[%s2 + $0x5f0] sm:$0xff]
    %v225 = vld [vmem:[%s2 + $0x5f8] sm:$0xff]
    %v226 = vld [vmem:[%s2 + $0x600] sm:$0xff]
    %v227 = vld [vmem:[%s2 + $0x608] sm:$0xff]
    %v228 = vld [vmem:[%s2 + $0x610] sm:$0xff]
    %v229 = vld [vmem:[%s2 + $0x618] sm:$0xff]
    %v230 = vld [vmem:[%s2 + $0x620] sm:$0xff]
    %v231 = vld [vmem:[%s2 + $0x628] sm:$0xff]
    %v232 = vld [vmem:[%s2 + $0x630] sm:$0xff]
    %v233 = vld [vmem:[%s2 + $0x638] sm:$0xff]
    %v234 = vld [vmem:[%s2 + $0x640] sm:$0xff]
    %v235 = vld [vmem:[%s2 + $0x648] sm:$0xff]
    %v236 = vld [vmem:[%s2 + $0x650] sm:$0xff]
    %v237 = vld [vmem:[%s2 + $0x658] sm:$0xff]
    %v238 = vld [vmem:[%s2 + $0x660] sm:$0xff]
    %v239 = vld [vmem:[%s2 + $0x668] sm:$0xff]
    %v240 = vld [vmem:[%s2 + $0x670] sm:$0xff]
    %v241 = vld [vmem:[%s2 + $0x678] sm:$0xff]
    %v242 = vld [vmem:[%s2 + $0x680] sm:$0xff]
    %v243 = vld [vmem:[%s2 + $0x688] sm:$0xff]
    %v244 = vld [vmem:[%s2 + $0x690] sm:$0xff]
    %v245 = vld [vmem:[%s2 + $0x698] sm:$0xff]
    %v246 = vld [vmem:[%s2 + $0x6a0] sm:$0xff]
    %v247 = vld [vmem:[%s2 + $0x6a8] sm:$0xff]
    %v248 = vld [vmem:[%s2 + $0x6b0] sm:$0xff]
    %v249 = vld [vmem:[%s2 + $0x6b8] sm:$0xff]
    %v250 = vld [vmem:[%s2 + $0x6c0] sm:$0xff]
    %v251 = vld [vmem:[%s2 + $0x6c8] sm:$0xff]
    %v252 = vld [vmem:[%s2 + $0x6d0] sm:$0xff]
    %v253 = vld [vmem:[%s2 + $0x6d8] sm:$0xff]
    %v254 = vld [vmem:[%s2 + $0x6e0] sm:$0xff]
    %v255 = vld [vmem:[%s2 + $0x6e8] sm:$0xff]
    %v256 = vld [vmem:[%s2 + $0x6f0] sm:$0xff]
    %v257 = vld [vmem:[%s2 + $0x6f8] sm:$0xff]
    %v258 = vld [vmem:[%s2 + $0x700] sm:$0xff]
    %v259 = vld [vmem:[%s2 + $0x708] sm:$0xff]
    %v260 = vld [vmem:[%s2 + $0x710] sm:$0xff]
    %v261 = vld [vmem:[%s2 + $0x718] sm:$0xff]
    %v262 = vld [vmem:[%s2 + $0x720] sm:$0xff]
    %v263 = vld [vmem:[%s2 + $0x728] sm:$0xff]
    %v264 = vld [vmem:[%s2 + $0x730] sm:$0xff]
    %v265 = vld [vmem:[%s2 + $0x738] sm:$0xff]
    %v266 = vld [vmem:[%s2 + $0x740] sm:$0xff]
    %v267 = vld [vmem:[%s2 + $0x748] sm:$0xff]
    %v268 = vld [vmem:[%s2 + $0x750] sm:$0xff]
    %v269 = vld [vmem:[%s2 + $0x758] sm:$0xff]
    %v270 = vld [vmem:[%s2 + $0x760] sm:$0xff]
    %v271 = vld [vmem:[%s2 + $0x768] sm:$0xff]
    %v272 = vld [vmem:[%s2 + $0x770] sm:$0xff]
    %v273 = vld [vmem:[%s2 + $0x778] sm:$0xff]
    %v274 = vld [vmem:[%s2 + $0x780] sm:$0xff]
    %v275 = vld [vmem:[%s2 + $0x788] sm:$0xff]
    %v276 = vld [vmem:[%s2 + $0x790] sm:$0xff]
    %v277 = vld [vmem:[%s2 + $0x798] sm:$0xff]
    %v278 = vld [vmem:[%s2 + $0x7a0] sm:$0xff]
    %v279 = vld [vmem:[%s2 + $0x7a8] sm:$0xff]
    %v280 = vld [vmem:[%s2 + $0x7b0] sm:$0xff]
    %v281 = vld [vmem:[%s2 + $0x7b8] sm:$0xff]
    %v282 = vld [vmem:[%s2 + $0x7c0] sm:$0xff]
    %v283 = vld [vmem:[%s2 + $0x7c8] sm:$0xff]
    %v284 = vld [vmem:[%s2 + $0x7d0] sm:$0xff]
    %v285 = vld [vmem:[%s2 + $0x7d8] sm:$0xff]
    %v286 = vld [vmem:[%s2 + $0x7e0] sm:$0xff]
    %v287 = vld [vmem:[%s2 + $0x7e8] sm:$0xff]
    %v288 = vld [vmem:[%s2 + $0x7f0] sm:$0xff]
    %v289 = vld [vmem:[%s2 + $0x7f8] sm:$0xff]
    %v290 = vld [vmem:[%s2 + $0x800] sm:$0xff]
    %v291 = vld [vmem:[%s2 + $0x808] sm:$0xff]
    %v292 = vld [vmem:[%s2 + $0x810] sm:$0xff]
    %v293 = vld [vmem:[%s2 + $0x818] sm:$0xff]
    %v294 = vld [vmem:[%s2 + $0x820] sm:$0xff]
    %v295 = vld [vmem:[%s2 + $0x828] sm:$0xff]
    %v296 = vld [vmem:[%s2 + $0x830] sm:$0xff]
    %v297 = vld [vmem:[%s2 + $0x838] sm:$0xff]
    %v298 = vld [vmem:[%s2 + $0x840] sm:$0xff]
    %v299 = vld [vmem:[%s2 + $0x848] sm:$0xff]
    %v300 = vld [vmem:[%s2 + $0x850] sm:$0xff]
    %v301 = vld [vmem:[%s2 + $0x858] sm:$0xff]
    %v302 = vld [vmem:[%s2 + $0x860] sm:$0xff]
    %v303 = vld [vmem:[%s2 + $0x868] sm:$0xff]
    %v304 = vld [vmem:[%s2 + $0x870] sm:$0xff]
    %v305 = vld [vmem:[%s2 + $0x878] sm:$0xff]
    %v306 = vld [vmem:[%s2 + $0x880] sm:$0xff]
    %v307 = vld [vmem:[%s2 + $0x888] sm:$0xff]
    %v308 = vld [vmem:[%s2 + $0x890] sm:$0xff]
    %v309 = vld [vmem:[%s2 + $0x898] sm:$0xff]
    %v310 = vld [vmem:[%s2 + $0x8a0] sm:$0xff]
    %v311 = vld [vmem:[%s2 + $0x8a8] sm:$0xff]
    %v312 = vld [vmem:[%s2 + $0x8b0] sm:$0xff]
    %v313 = vld [vmem:[%s2 + $0x8b8] sm:$0xff]
    %v314 = vld [vmem:[%s2 + $0x8c0] sm:$0xff]
    %v315 = vld [vmem:[%s2 + $0x8c8] sm:$0xff]
    %v316 = vld [vmem:[%s2 + $0x8d0] sm:$0xff]
    %v317 = vld [vmem:[%s2 + $0x8d8] sm:$0xff]
    %v318 = vld [vmem:[%s2 + $0x8e0] sm:$0xff]
    %v319 = vld [vmem:[%s2 + $0x8e8] sm:$0xff]
    %v320 = vld [vmem:[%s2 + $0x8f0] sm:$0xff]
    %v321 = vld [vmem:[%s2 + $0x8f8] sm:$0xff]
    %v322 = vld [vmem:[%s3] sm:$0xff]
    %v323 = vld [vmem:[%s3 + $0x8] sm:$0xf]
    %v326 = vlaneseq
    %v327 = vshrl.u32 %v326, 7
    %v328 = vsub.s32 0, %v327
    %v329 = vrot.slane %v322, %v328
    %v330 = vlaneseq
    %v331 = vshrl.u32 %v330, 7
    %v332 = vsub.s32 1, %v331
    %v333 = vrot.slane %v322, %v332
    %v334 = vlaneseq
    %v335 = vshrl.u32 %v334, 7
    %v336 = vsub.s32 2, %v335
    %v337 = vrot.slane %v322, %v336
    %v338 = vlaneseq
    %v339 = vshrl.u32 %v338, 7
    %v340 = vsub.s32 3, %v339
    %v341 = vrot.slane %v322, %v340
    %v342 = vlaneseq
    %v343 = vshrl.u32 %v342, 7
    %v344 = vsub.s32 4, %v343
    %v345 = vrot.slane %v322, %v344
    %v346 = vlaneseq
    %v347 = vshrl.u32 %v346, 7
    %v348 = vsub.s32 5, %v347
    %v349 = vrot.slane %v322, %v348
    %v350 = vlaneseq
    %v351 = vshrl.u32 %v350, 7
    %v352 = vsub.s32 6, %v351
    %v353 = vrot.slane %v322, %v352
    %v354 = vlaneseq
    %v355 = vshrl.u32 %v354, 7
    %v356 = vsub.s32 7, %v355
    %v357 = vrot.slane %v322, %v356
    %v358 = vlaneseq
    %v359 = vshrl.u32 %v358, 7
    %v360 = vsub.s32 0, %v359
    %v361 = vrot.slane %v323, %v360
    %v362 = vlaneseq
    %v363 = vshrl.u32 %v362, 7
    %v364 = vsub.s32 1, %v363
    %v365 = vrot.slane %v323, %v364
    %v366 = vlaneseq
    %v367 = vshrl.u32 %v366, 7
    %v368 = vsub.s32 2, %v367
    %v369 = vrot.slane %v323, %v368
    %v370 = vlaneseq
    %v371 = vshrl.u32 %v370, 7
    %v372 = vsub.s32 3, %v371
    %v373 = vrot.slane %v323, %v372
    %v674 = vunpack.c.l.b16 %v34
    %v675 = vunpack.c.h.b16 %v34
    %v676 = vunpack.c.l.b16 %v35
    %v677 = vunpack.c.h.b16 %v35
    %v678 = vunpack.c.l.b16 %v36
    %v679 = vunpack.c.h.b16 %v36
    %v680 = vunpack.c.l.b16 %v37
    %v681 = vunpack.c.h.b16 %v37
    %v682 = vunpack.c.l.b16 %v38
    %v683 = vunpack.c.h.b16 %v38
    %v684 = vunpack.c.l.b16 %v39
    %v685 = vunpack.c.h.b16 %v39
    %v686 = vunpack.c.l.b16 %v40
    %v687 = vunpack.c.h.b16 %v40
    %v688 = vunpack.c.l.b16 %v41
    %v689 = vunpack.c.h.b16 %v41
    %v690 = vunpack.c.l.b16 %v42
    %v691 = vunpack.c.h.b16 %v42
    %v692 = vunpack.c.l.b16 %v43
    %v693 = vunpack.c.h.b16 %v43
    %v694 = vunpack.c.l.b16 %v44
    %v695 = vunpack.c.h.b16 %v44
    %v696 = vunpack.c.l.b16 %v45
    %v697 = vunpack.c.h.b16 %v45
    %v698 = vunpack.c.l.b16 %v46
    %v699 = vunpack.c.h.b16 %v46
    %v700 = vunpack.c.l.b16 %v47
    %v701 = vunpack.c.h.b16 %v47
    %v702 = vunpack.c.l.b16 %v48
    %v703 = vunpack.c.h.b16 %v48
    %v704 = vunpack.c.l.b16 %v49
    %v705 = vunpack.c.h.b16 %v49
    %v706 = vunpack.c.l.b16 %v50
    %v707 = vunpack.c.h.b16 %v50
    %v708 = vunpack.c.l.b16 %v51
    %v709 = vunpack.c.h.b16 %v51
    %v710 = vunpack.c.l.b16 %v52
    %v711 = vunpack.c.h.b16 %v52
    %v712 = vunpack.c.l.b16 %v53
    %v713 = vunpack.c.h.b16 %v53
    %v714 = vunpack.c.l.b16 %v54
    %v715 = vunpack.c.h.b16 %v54
    %v716 = vunpack.c.l.b16 %v55
    %v717 = vunpack.c.h.b16 %v55
    %v718 = vunpack.c.l.b16 %v56
    %v719 = vunpack.c.h.b16 %v56
    %v720 = vunpack.c.l.b16 %v57
    %v721 = vunpack.c.h.b16 %v57
    %v722 = vunpack.c.l.b16 %v58
    %v723 = vunpack.c.h.b16 %v58
    %v724 = vunpack.c.l.b16 %v59
    %v725 = vunpack.c.h.b16 %v59
    %v726 = vunpack.c.l.b16 %v60
    %v727 = vunpack.c.h.b16 %v60
    %v728 = vunpack.c.l.b16 %v61
    %v729 = vunpack.c.h.b16 %v61
    %v730 = vunpack.c.l.b16 %v62
    %v731 = vunpack.c.h.b16 %v62
    %v732 = vunpack.c.l.b16 %v63
    %v733 = vunpack.c.h.b16 %v63
    %v734 = vunpack.c.l.b16 %v64
    %v735 = vunpack.c.h.b16 %v64
    %v736 = vunpack.c.l.b16 %v65
    %v737 = vunpack.c.h.b16 %v65
    %v738 = vunpack.c.l.b16 %v66
    %v739 = vunpack.c.h.b16 %v66
    %v740 = vunpack.c.l.b16 %v67
    %v741 = vunpack.c.h.b16 %v67
    %v742 = vunpack.c.l.b16 %v68
    %v743 = vunpack.c.h.b16 %v68
    %v744 = vunpack.c.l.b16 %v69
    %v745 = vunpack.c.h.b16 %v69
    %v746 = vunpack.c.l.b16 %v70
    %v747 = vunpack.c.h.b16 %v70
    %v748 = vunpack.c.l.b16 %v71
    %v749 = vunpack.c.h.b16 %v71
    %v750 = vunpack.c.l.b16 %v72
    %v751 = vunpack.c.h.b16 %v72
    %v752 = vunpack.c.l.b16 %v73
    %v753 = vunpack.c.h.b16 %v73
    %v754 = vunpack.c.l.b16 %v74
    %v755 = vunpack.c.h.b16 %v74
    %v756 = vunpack.c.l.b16 %v75
    %v757 = vunpack.c.h.b16 %v75
    %v758 = vunpack.c.l.b16 %v76
    %v759 = vunpack.c.h.b16 %v76
    %v760 = vunpack.c.l.b16 %v77
    %v761 = vunpack.c.h.b16 %v77
    %v762 = vunpack.c.l.b16 %v78
    %v763 = vunpack.c.h.b16 %v78
    %v764 = vunpack.c.l.b16 %v79
    %v765 = vunpack.c.h.b16 %v79
    %v766 = vunpack.c.l.b16 %v80
    %v767 = vunpack.c.h.b16 %v80
    %v768 = vunpack.c.l.b16 %v81
    %v769 = vunpack.c.h.b16 %v81
    %v770 = vunpack.c.l.b16 %v82
    %v771 = vunpack.c.h.b16 %v82
    %v772 = vunpack.c.l.b16 %v83
    %v773 = vunpack.c.h.b16 %v83
    %v774 = vunpack.c.l.b16 %v84
    %v775 = vunpack.c.h.b16 %v84
    %v776 = vunpack.c.l.b16 %v85
    %v777 = vunpack.c.h.b16 %v85
    %v778 = vunpack.c.l.b16 %v86
    %v779 = vunpack.c.h.b16 %v86
    %v780 = vunpack.c.l.b16 %v87
    %v781 = vunpack.c.h.b16 %v87
    %v782 = vunpack.c.l.b16 %v88
    %v783 = vunpack.c.h.b16 %v88
    %v784 = vunpack.c.l.b16 %v89
    %v785 = vunpack.c.h.b16 %v89
    %v786 = vunpack.c.l.b16 %v90
    %v787 = vunpack.c.h.b16 %v90
    %v788 = vunpack.c.l.b16 %v91
    %v789 = vunpack.c.h.b16 %v91
    %v790 = vunpack.c.l.b16 %v92
    %v791 = vunpack.c.h.b16 %v92
    %v792 = vunpack.c.l.b16 %v93
    %v793 = vunpack.c.h.b16 %v93
    %v794 = vunpack.c.l.b16 %v94
    %v795 = vunpack.c.h.b16 %v94
    %v796 = vunpack.c.l.b16 %v95
    %v797 = vunpack.c.h.b16 %v95
    %v798 = vunpack.c.l.b16 %v96
    %v799 = vunpack.c.h.b16 %v96
    %v800 = vunpack.c.l.b16 %v97
    %v801 = vunpack.c.h.b16 %v97
    %v802 = vunpack.c.l.b16 %v98
    %v803 = vunpack.c.h.b16 %v98
    %v804 = vunpack.c.l.b16 %v99
    %v805 = vunpack.c.h.b16 %v99
    %v806 = vunpack.c.l.b16 %v100
    %v807 = vunpack.c.h.b16 %v100
    %v808 = vunpack.c.l.b16 %v101
    %v809 = vunpack.c.h.b16 %v101
    %v810 = vunpack.c.l.b16 %v102
    %v811 = vunpack.c.h.b16 %v102
    %v812 = vunpack.c.l.b16 %v103
    %v813 = vunpack.c.h.b16 %v103
    %v814 = vunpack.c.l.b16 %v104
    %v815 = vunpack.c.h.b16 %v104
    %v816 = vunpack.c.l.b16 %v105
    %v817 = vunpack.c.h.b16 %v105
    %v818 = vunpack.c.l.b16 %v106
    %v819 = vunpack.c.h.b16 %v106
    %v820 = vunpack.c.l.b16 %v107
    %v821 = vunpack.c.h.b16 %v107
    %v822 = vunpack.c.l.b16 %v108
    %v823 = vunpack.c.h.b16 %v108
    %v824 = vunpack.c.l.b16 %v109
    %v825 = vunpack.c.h.b16 %v109
    %v826 = vunpack.c.l.b16 %v110
    %v827 = vunpack.c.h.b16 %v110
    %v828 = vunpack.c.l.b16 %v111
    %v829 = vunpack.c.h.b16 %v111
    %v830 = vunpack.c.l.b16 %v112
    %v831 = vunpack.c.h.b16 %v112
    %v832 = vunpack.c.l.b16 %v113
    %v833 = vunpack.c.h.b16 %v113
    %v834 = vunpack.c.l.b16 %v114
    %v835 = vunpack.c.h.b16 %v114
    %v836 = vunpack.c.l.b16 %v115
    %v837 = vunpack.c.h.b16 %v115
    %v838 = vunpack.c.l.b16 %v116
    %v839 = vunpack.c.h.b16 %v116
    %v840 = vunpack.c.l.b16 %v117
    %v841 = vunpack.c.h.b16 %v117
    %v842 = vunpack.c.l.b16 %v118
    %v843 = vunpack.c.h.b16 %v118
    %v844 = vunpack.c.l.b16 %v119
    %v845 = vunpack.c.h.b16 %v119
    %v846 = vunpack.c.l.b16 %v120
    %v847 = vunpack.c.h.b16 %v120
    %v848 = vunpack.c.l.b16 %v121
    %v849 = vunpack.c.h.b16 %v121
    %v850 = vunpack.c.l.b16 %v122
    %v851 = vunpack.c.h.b16 %v122
    %v852 = vunpack.c.l.b16 %v123
    %v853 = vunpack.c.h.b16 %v123
    %v854 = vunpack.c.l.b16 %v124
    %v855 = vunpack.c.h.b16 %v124
    %v856 = vunpack.c.l.b16 %v125
    %v857 = vunpack.c.h.b16 %v125
    %v858 = vunpack.c.l.b16 %v126
    %v859 = vunpack.c.h.b16 %v126
    %v860 = vunpack.c.l.b16 %v127
    %v861 = vunpack.c.h.b16 %v127
    %v862 = vunpack.c.l.b16 %v128
    %v863 = vunpack.c.h.b16 %v128
    %v864 = vunpack.c.l.b16 %v129
    %v865 = vunpack.c.h.b16 %v129
    %v866 = vunpack.c.l.b16 %v130
    %v867 = vunpack.c.h.b16 %v130
    %v868 = vunpack.c.l.b16 %v131
    %v869 = vunpack.c.h.b16 %v131
    %v870 = vunpack.c.l.b16 %v132
    %v871 = vunpack.c.h.b16 %v132
    %v872 = vunpack.c.l.b16 %v133
    %v873 = vunpack.c.h.b16 %v133
    %v874 = vunpack.c.l.b16 %v134
    %v875 = vunpack.c.h.b16 %v134
    %v876 = vunpack.c.l.b16 %v135
    %v877 = vunpack.c.h.b16 %v135
    %v878 = vunpack.c.l.b16 %v136
    %v879 = vunpack.c.h.b16 %v136
    %v880 = vunpack.c.l.b16 %v137
    %v881 = vunpack.c.h.b16 %v137
    %v882 = vunpack.c.l.b16 %v138
    %v883 = vunpack.c.h.b16 %v138
    %v884 = vunpack.c.l.b16 %v139
    %v885 = vunpack.c.h.b16 %v139
    %v886 = vunpack.c.l.b16 %v140
    %v887 = vunpack.c.h.b16 %v140
    %v888 = vunpack.c.l.b16 %v141
    %v889 = vunpack.c.h.b16 %v141
    %v890 = vunpack.c.l.b16 %v142
    %v891 = vunpack.c.h.b16 %v142
    %v892 = vunpack.c.l.b16 %v143
    %v893 = vunpack.c.h.b16 %v143
    %v894 = vunpack.c.l.b16 %v144
    %v895 = vunpack.c.h.b16 %v144
    %v896 = vunpack.c.l.b16 %v145
    %v897 = vunpack.c.h.b16 %v145
    %v898 = vunpack.c.l.b16 %v146
    %v899 = vunpack.c.h.b16 %v146
    %v900 = vunpack.c.l.b16 %v147
    %v901 = vunpack.c.h.b16 %v147
    %v902 = vunpack.c.l.b16 %v148
    %v903 = vunpack.c.h.b16 %v148
    %v904 = vunpack.c.l.b16 %v149
    %v905 = vunpack.c.h.b16 %v149
    %v906 = vunpack.c.l.b16 %v150
    %v907 = vunpack.c.h.b16 %v150
    %v908 = vunpack.c.l.b16 %v151
    %v909 = vunpack.c.h.b16 %v151
    %v910 = vunpack.c.l.b16 %v152
    %v911 = vunpack.c.h.b16 %v152
    %v912 = vunpack.c.l.b16 %v153
    %v913 = vunpack.c.h.b16 %v153
    %v914 = vunpack.c.l.b16 %v154
    %v915 = vunpack.c.h.b16 %v154
    %v916 = vunpack.c.l.b16 %v155
    %v917 = vunpack.c.h.b16 %v155
    %v918 = vunpack.c.l.b16 %v156
    %v919 = vunpack.c.h.b16 %v156
    %v920 = vunpack.c.l.b16 %v157
    %v921 = vunpack.c.h.b16 %v157
    %v922 = vunpack.c.l.b16 %v158
    %v923 = vunpack.c.h.b16 %v158
    %v924 = vunpack.c.l.b16 %v159
    %v925 = vunpack.c.h.b16 %v159
    %v926 = vunpack.c.l.b16 %v160
    %v927 = vunpack.c.h.b16 %v160
    %v928 = vunpack.c.l.b16 %v161
    %v929 = vunpack.c.h.b16 %v161
    %v930 = vunpack.c.l.b16 %v162
    %v931 = vunpack.c.h.b16 %v162
    %v932 = vunpack.c.l.b16 %v163
    %v933 = vunpack.c.h.b16 %v163
    %v934 = vunpack.c.l.b16 %v164
    %v935 = vunpack.c.h.b16 %v164
    %v936 = vunpack.c.l.b16 %v165
    %v937 = vunpack.c.h.b16 %v165
    %v938 = vunpack.c.l.b16 %v166
    %v939 = vunpack.c.h.b16 %v166
    %v940 = vunpack.c.l.b16 %v167
    %v941 = vunpack.c.h.b16 %v167
    %v942 = vunpack.c.l.b16 %v168
    %v943 = vunpack.c.h.b16 %v168
    %v944 = vunpack.c.l.b16 %v169
    %v945 = vunpack.c.h.b16 %v169
    %v946 = vunpack.c.l.b16 %v170
    %v947 = vunpack.c.h.b16 %v170
    %v948 = vunpack.c.l.b16 %v171
    %v949 = vunpack.c.h.b16 %v171
    %v950 = vunpack.c.l.b16 %v172
    %v951 = vunpack.c.h.b16 %v172
    %v952 = vunpack.c.l.b16 %v173
    %v953 = vunpack.c.h.b16 %v173
    %v954 = vunpack.c.l.b16 %v174
    %v955 = vunpack.c.h.b16 %v174
    %v956 = vunpack.c.l.b16 %v175
    %v957 = vunpack.c.h.b16 %v175
    %v958 = vunpack.c.l.b16 %v176
    %v959 = vunpack.c.h.b16 %v176
    %v960 = vunpack.c.l.b16 %v177
    %v961 = vunpack.c.h.b16 %v177
    %v962 = vunpack.c.l.b16 %v178
    %v963 = vunpack.c.h.b16 %v178
    %v964 = vunpack.c.l.b16 %v179
    %v965 = vunpack.c.h.b16 %v179
    %v966 = vunpack.c.l.b16 %v180
    %v967 = vunpack.c.h.b16 %v180
    %v968 = vunpack.c.l.b16 %v181
    %v969 = vunpack.c.h.b16 %v181
    %v970 = vunpack.c.l.b16 %v182
    %v971 = vunpack.c.h.b16 %v182
    %v972 = vunpack.c.l.b16 %v183
    %v973 = vunpack.c.h.b16 %v183
    %v974 = vunpack.c.l.b16 %v184
    %v975 = vunpack.c.h.b16 %v184
    %v976 = vunpack.c.l.b16 %v185
    %v977 = vunpack.c.h.b16 %v185
    %v978 = vunpack.c.l.b16 %v186
    %v979 = vunpack.c.h.b16 %v186
    %v980 = vunpack.c.l.b16 %v187
    %v981 = vunpack.c.h.b16 %v187
    %v982 = vunpack.c.l.b16 %v188
    %v983 = vunpack.c.h.b16 %v188
    %v984 = vunpack.c.l.b16 %v189
    %v985 = vunpack.c.h.b16 %v189
    %v986 = vunpack.c.l.b16 %v190
    %v987 = vunpack.c.h.b16 %v190
    %v988 = vunpack.c.l.b16 %v191
    %v989 = vunpack.c.h.b16 %v191
    %v990 = vunpack.c.l.b16 %v192
    %v991 = vunpack.c.h.b16 %v192
    %v992 = vunpack.c.l.b16 %v193
    %v993 = vunpack.c.h.b16 %v193
    %v994 = vunpack.c.l.b16 %v194
    %v995 = vunpack.c.h.b16 %v194
    %v996 = vunpack.c.l.b16 %v195
    %v997 = vunpack.c.h.b16 %v195
    %v998 = vunpack.c.l.b16 %v196
    %v999 = vunpack.c.h.b16 %v196
    %v1000 = vunpack.c.l.b16 %v197
    %v1001 = vunpack.c.h.b16 %v197
    %v1002 = vunpack.c.l.b16 %v198
    %v1003 = vunpack.c.h.b16 %v198
    %v1004 = vunpack.c.l.b16 %v199
    %v1005 = vunpack.c.h.b16 %v199
    %v1006 = vunpack.c.l.b16 %v200
    %v1007 = vunpack.c.h.b16 %v200
    %v1008 = vunpack.c.l.b16 %v201
    %v1009 = vunpack.c.h.b16 %v201
    %v1010 = vunpack.c.l.b16 %v202
    %v1011 = vunpack.c.h.b16 %v202
    %v1012 = vunpack.c.l.b16 %v203
    %v1013 = vunpack.c.h.b16 %v203
    %v1014 = vunpack.c.l.b16 %v204
    %v1015 = vunpack.c.h.b16 %v204
    %v1016 = vunpack.c.l.b16 %v205
    %v1017 = vunpack.c.h.b16 %v205
    %v1018 = vunpack.c.l.b16 %v206
    %v1019 = vunpack.c.h.b16 %v206
    %v1020 = vunpack.c.l.b16 %v207
    %v1021 = vunpack.c.h.b16 %v207
    %v1022 = vunpack.c.l.b16 %v208
    %v1023 = vunpack.c.h.b16 %v208
    %v1024 = vunpack.c.l.b16 %v209
    %v1025 = vunpack.c.h.b16 %v209
    %v1026 = vunpack.c.l.b16 %v210
    %v1027 = vunpack.c.h.b16 %v210
    %v1028 = vunpack.c.l.b16 %v211
    %v1029 = vunpack.c.h.b16 %v211
    %v1030 = vunpack.c.l.b16 %v212
    %v1031 = vunpack.c.h.b16 %v212
    %v1032 = vunpack.c.l.b16 %v213
    %v1033 = vunpack.c.h.b16 %v213
    %v1034 = vunpack.c.l.b16 %v214
    %v1035 = vunpack.c.h.b16 %v214
    %v1036 = vunpack.c.l.b16 %v215
    %v1037 = vunpack.c.h.b16 %v215
    %v1038 = vunpack.c.l.b16 %v216
    %v1039 = vunpack.c.h.b16 %v216
    %v1040 = vunpack.c.l.b16 %v217
    %v1041 = vunpack.c.h.b16 %v217
    %v1042 = vunpack.c.l.b16 %v218
    %v1043 = vunpack.c.h.b16 %v218
    %v1044 = vunpack.c.l.b16 %v219
    %v1045 = vunpack.c.h.b16 %v219
    %v1046 = vunpack.c.l.b16 %v220
    %v1047 = vunpack.c.h.b16 %v220
    %v1048 = vunpack.c.l.b16 %v221
    %v1049 = vunpack.c.h.b16 %v221
    %v1050 = vunpack.c.l.b16 %v222
    %v1051 = vunpack.c.h.b16 %v222
    %v1052 = vunpack.c.l.b16 %v223
    %v1053 = vunpack.c.h.b16 %v223
    %v1054 = vunpack.c.l.b16 %v224
    %v1055 = vunpack.c.h.b16 %v224
    %v1056 = vunpack.c.l.b16 %v225
    %v1057 = vunpack.c.h.b16 %v225
    %v1058 = vunpack.c.l.b16 %v226
    %v1059 = vunpack.c.h.b16 %v226
    %v1060 = vunpack.c.l.b16 %v227
    %v1061 = vunpack.c.h.b16 %v227
    %v1062 = vunpack.c.l.b16 %v228
    %v1063 = vunpack.c.h.b16 %v228
    %v1064 = vunpack.c.l.b16 %v229
    %v1065 = vunpack.c.h.b16 %v229
    %v1066 = vunpack.c.l.b16 %v230
    %v1067 = vunpack.c.h.b16 %v230
    %v1068 = vunpack.c.l.b16 %v231
    %v1069 = vunpack.c.h.b16 %v231
    %v1070 = vunpack.c.l.b16 %v232
    %v1071 = vunpack.c.h.b16 %v232
    %v1072 = vunpack.c.l.b16 %v233
    %v1073 = vunpack.c.h.b16 %v233
    %v1074 = vunpack.c.l.b16 %v234
    %v1075 = vunpack.c.h.b16 %v234
    %v1076 = vunpack.c.l.b16 %v235
    %v1077 = vunpack.c.h.b16 %v235
    %v1078 = vunpack.c.l.b16 %v236
    %v1079 = vunpack.c.h.b16 %v236
    %v1080 = vunpack.c.l.b16 %v237
    %v1081 = vunpack.c.h.b16 %v237
    %v1082 = vunpack.c.l.b16 %v238
    %v1083 = vunpack.c.h.b16 %v238
    %v1084 = vunpack.c.l.b16 %v239
    %v1085 = vunpack.c.h.b16 %v239
    %v1086 = vunpack.c.l.b16 %v240
    %v1087 = vunpack.c.h.b16 %v240
    %v1088 = vunpack.c.l.b16 %v241
    %v1089 = vunpack.c.h.b16 %v241
    %v1090 = vunpack.c.l.b16 %v242
    %v1091 = vunpack.c.h.b16 %v242
    %v1092 = vunpack.c.l.b16 %v243
    %v1093 = vunpack.c.h.b16 %v243
    %v1094 = vunpack.c.l.b16 %v244
    %v1095 = vunpack.c.h.b16 %v244
    %v1096 = vunpack.c.l.b16 %v245
    %v1097 = vunpack.c.h.b16 %v245
    %v1098 = vunpack.c.l.b16 %v246
    %v1099 = vunpack.c.h.b16 %v246
    %v1100 = vunpack.c.l.b16 %v247
    %v1101 = vunpack.c.h.b16 %v247
    %v1102 = vunpack.c.l.b16 %v248
    %v1103 = vunpack.c.h.b16 %v248
    %v1104 = vunpack.c.l.b16 %v249
    %v1105 = vunpack.c.h.b16 %v249
    %v1106 = vunpack.c.l.b16 %v250
    %v1107 = vunpack.c.h.b16 %v250
    %v1108 = vunpack.c.l.b16 %v251
    %v1109 = vunpack.c.h.b16 %v251
    %v1110 = vunpack.c.l.b16 %v252
    %v1111 = vunpack.c.h.b16 %v252
    %v1112 = vunpack.c.l.b16 %v253
    %v1113 = vunpack.c.h.b16 %v253
    %v1114 = vunpack.c.l.b16 %v254
    %v1115 = vunpack.c.h.b16 %v254
    %v1116 = vunpack.c.l.b16 %v255
    %v1117 = vunpack.c.h.b16 %v255
    %v1118 = vunpack.c.l.b16 %v256
    %v1119 = vunpack.c.h.b16 %v256
    %v1120 = vunpack.c.l.b16 %v257
    %v1121 = vunpack.c.h.b16 %v257
    %v1122 = vunpack.c.l.b16 %v258
    %v1123 = vunpack.c.h.b16 %v258
    %v1124 = vunpack.c.l.b16 %v259
    %v1125 = vunpack.c.h.b16 %v259
    %v1126 = vunpack.c.l.b16 %v260
    %v1127 = vunpack.c.h.b16 %v260
    %v1128 = vunpack.c.l.b16 %v261
    %v1129 = vunpack.c.h.b16 %v261
    %v1130 = vunpack.c.l.b16 %v262
    %v1131 = vunpack.c.h.b16 %v262
    %v1132 = vunpack.c.l.b16 %v263
    %v1133 = vunpack.c.h.b16 %v263
    %v1134 = vunpack.c.l.b16 %v264
    %v1135 = vunpack.c.h.b16 %v264
    %v1136 = vunpack.c.l.b16 %v265
    %v1137 = vunpack.c.h.b16 %v265
    %v1138 = vunpack.c.l.b16 %v266
    %v1139 = vunpack.c.h.b16 %v266
    %v1140 = vunpack.c.l.b16 %v267
    %v1141 = vunpack.c.h.b16 %v267
    %v1142 = vunpack.c.l.b16 %v268
    %v1143 = vunpack.c.h.b16 %v268
    %v1144 = vunpack.c.l.b16 %v269
    %v1145 = vunpack.c.h.b16 %v269
    %v1146 = vunpack.c.l.b16 %v270
    %v1147 = vunpack.c.h.b16 %v270
    %v1148 = vunpack.c.l.b16 %v271
    %v1149 = vunpack.c.h.b16 %v271
    %v1150 = vunpack.c.l.b16 %v272
    %v1151 = vunpack.c.h.b16 %v272
    %v1152 = vunpack.c.l.b16 %v273
    %v1153 = vunpack.c.h.b16 %v273
    %v1154 = vunpack.c.l.b16 %v274
    %v1155 = vunpack.c.h.b16 %v274
    %v1156 = vunpack.c.l.b16 %v275
    %v1157 = vunpack.c.h.b16 %v275
    %v1158 = vunpack.c.l.b16 %v276
    %v1159 = vunpack.c.h.b16 %v276
    %v1160 = vunpack.c.l.b16 %v277
    %v1161 = vunpack.c.h.b16 %v277
    %v1162 = vunpack.c.l.b16 %v278
    %v1163 = vunpack.c.h.b16 %v278
    %v1164 = vunpack.c.l.b16 %v279
    %v1165 = vunpack.c.h.b16 %v279
    %v1166 = vunpack.c.l.b16 %v280
    %v1167 = vunpack.c.h.b16 %v280
    %v1168 = vunpack.c.l.b16 %v281
    %v1169 = vunpack.c.h.b16 %v281
    %v1170 = vunpack.c.l.b16 %v282
    %v1171 = vunpack.c.h.b16 %v282
    %v1172 = vunpack.c.l.b16 %v283
    %v1173 = vunpack.c.h.b16 %v283
    %v1174 = vunpack.c.l.b16 %v284
    %v1175 = vunpack.c.h.b16 %v284
    %v1176 = vunpack.c.l.b16 %v285
    %v1177 = vunpack.c.h.b16 %v285
    %v1178 = vunpack.c.l.b16 %v286
    %v1179 = vunpack.c.h.b16 %v286
    %v1180 = vunpack.c.l.b16 %v287
    %v1181 = vunpack.c.h.b16 %v287
    %v1182 = vunpack.c.l.b16 %v288
    %v1183 = vunpack.c.h.b16 %v288
    %v1184 = vunpack.c.l.b16 %v289
    %v1185 = vunpack.c.h.b16 %v289
    %v1186 = vunpack.c.l.b16 %v290
    %v1187 = vunpack.c.h.b16 %v290
    %v1188 = vunpack.c.l.b16 %v291
    %v1189 = vunpack.c.h.b16 %v291
    %v1190 = vunpack.c.l.b16 %v292
    %v1191 = vunpack.c.h.b16 %v292
    %v1192 = vunpack.c.l.b16 %v293
    %v1193 = vunpack.c.h.b16 %v293
    %v1194 = vunpack.c.l.b16 %v294
    %v1195 = vunpack.c.h.b16 %v294
    %v1196 = vunpack.c.l.b16 %v295
    %v1197 = vunpack.c.h.b16 %v295
    %v1198 = vunpack.c.l.b16 %v296
    %v1199 = vunpack.c.h.b16 %v296
    %v1200 = vunpack.c.l.b16 %v297
    %v1201 = vunpack.c.h.b16 %v297
    %v1202 = vunpack.c.l.b16 %v298
    %v1203 = vunpack.c.h.b16 %v298
    %v1204 = vunpack.c.l.b16 %v299
    %v1205 = vunpack.c.h.b16 %v299
    %v1206 = vunpack.c.l.b16 %v300
    %v1207 = vunpack.c.h.b16 %v300
    %v1208 = vunpack.c.l.b16 %v301
    %v1209 = vunpack.c.h.b16 %v301
    %v1210 = vunpack.c.l.b16 %v302
    %v1211 = vunpack.c.h.b16 %v302
    %v1212 = vunpack.c.l.b16 %v303
    %v1213 = vunpack.c.h.b16 %v303
    %v1214 = vunpack.c.l.b16 %v304
    %v1215 = vunpack.c.h.b16 %v304
    %v1216 = vunpack.c.l.b16 %v305
    %v1217 = vunpack.c.h.b16 %v305
    %v1218 = vunpack.c.l.b16 %v306
    %v1219 = vunpack.c.h.b16 %v306
    %v1220 = vunpack.c.l.b16 %v307
    %v1221 = vunpack.c.h.b16 %v307
    %v1222 = vunpack.c.l.b16 %v308
    %v1223 = vunpack.c.h.b16 %v308
    %v1224 = vunpack.c.l.b16 %v309
    %v1225 = vunpack.c.h.b16 %v309
    %v1226 = vunpack.c.l.b16 %v310
    %v1227 = vunpack.c.h.b16 %v310
    %v1228 = vunpack.c.l.b16 %v311
    %v1229 = vunpack.c.h.b16 %v311
    %v1230 = vunpack.c.l.b16 %v312
    %v1231 = vunpack.c.h.b16 %v312
    %v1232 = vunpack.c.l.b16 %v313
    %v1233 = vunpack.c.h.b16 %v313
    %v1234 = vunpack.c.l.b16 %v314
    %v1235 = vunpack.c.h.b16 %v314
    %v1236 = vunpack.c.l.b16 %v315
    %v1237 = vunpack.c.h.b16 %v315
    %v1238 = vunpack.c.l.b16 %v316
    %v1239 = vunpack.c.h.b16 %v316
    %v1240 = vunpack.c.l.b16 %v317
    %v1241 = vunpack.c.h.b16 %v317
    %v1242 = vunpack.c.l.b16 %v318
    %v1243 = vunpack.c.h.b16 %v318
    %v1244 = vunpack.c.l.b16 %v319
    %v1245 = vunpack.c.h.b16 %v319
    %v1246 = vunpack.c.l.b16 %v320
    %v1247 = vunpack.c.h.b16 %v320
    %v1248 = vunpack.c.l.b16 %v321
    %v1249 = vunpack.c.h.b16 %v321
    %v1250 = vpack.c.b16 %v686, %v674
    %v1251 = vpack.c.b16 %v687, %v675
    %v1252 = vpack.c.b16 %v688, %v676
    %v1253 = vpack.c.b16 %v689, %v677
    %v1254 = vpack.c.b16 %v690, %v678
    %v1255 = vpack.c.b16 %v691, %v679
    %v1256 = vpack.c.b16 %v692, %v680
    %v1257 = vpack.c.b16 %v693, %v681
    %v1258 = vpack.c.b16 %v694, %v682
    %v1259 = vpack.c.b16 %v695, %v683
    %v1260 = vpack.c.b16 %v696, %v684
    %v1261 = vpack.c.b16 %v697, %v685
    %v1262 = vpack.c.b16 %v710, %v698
    %v1263 = vpack.c.b16 %v711, %v699
    %v1264 = vpack.c.b16 %v712, %v700
    %v1265 = vpack.c.b16 %v713, %v701
    %v1266 = vpack.c.b16 %v714, %v702
    %v1267 = vpack.c.b16 %v715, %v703
    %v1268 = vpack.c.b16 %v716, %v704
    %v1269 = vpack.c.b16 %v717, %v705
    %v1270 = vpack.c.b16 %v718, %v706
    %v1271 = vpack.c.b16 %v719, %v707
    %v1272 = vpack.c.b16 %v720, %v708
    %v1273 = vpack.c.b16 %v721, %v709
    %v1274 = vpack.c.b16 %v734, %v722
    %v1275 = vpack.c.b16 %v735, %v723
    %v1276 = vpack.c.b16 %v736, %v724
    %v1277 = vpack.c.b16 %v737, %v725
    %v1278 = vpack.c.b16 %v738, %v726
    %v1279 = vpack.c.b16 %v739, %v727
    %v1280 = vpack.c.b16 %v740, %v728
    %v1281 = vpack.c.b16 %v741, %v729
    %v1282 = vpack.c.b16 %v742, %v730
    %v1283 = vpack.c.b16 %v743, %v731
    %v1284 = vpack.c.b16 %v744, %v732
    %v1285 = vpack.c.b16 %v745, %v733
    %v1286 = vpack.c.b16 %v758, %v746
    %v1287 = vpack.c.b16 %v759, %v747
    %v1288 = vpack.c.b16 %v760, %v748
    %v1289 = vpack.c.b16 %v761, %v749
    %v1290 = vpack.c.b16 %v762, %v750
    %v1291 = vpack.c.b16 %v763, %v751
    %v1292 = vpack.c.b16 %v764, %v752
    %v1293 = vpack.c.b16 %v765, %v753
    %v1294 = vpack.c.b16 %v766, %v754
    %v1295 = vpack.c.b16 %v767, %v755
    %v1296 = vpack.c.b16 %v768, %v756
    %v1297 = vpack.c.b16 %v769, %v757
    %v1298 = vpack.c.b16 %v782, %v770
    %v1299 = vpack.c.b16 %v783, %v771
    %v1300 = vpack.c.b16 %v784, %v772
    %v1301 = vpack.c.b16 %v785, %v773
    %v1302 = vpack.c.b16 %v786, %v774
    %v1303 = vpack.c.b16 %v787, %v775
    %v1304 = vpack.c.b16 %v788, %v776
    %v1305 = vpack.c.b16 %v789, %v777
    %v1306 = vpack.c.b16 %v790, %v778
    %v1307 = vpack.c.b16 %v791, %v779
    %v1308 = vpack.c.b16 %v792, %v780
    %v1309 = vpack.c.b16 %v793, %v781
    %v1310 = vpack.c.b16 %v806, %v794
    %v1311 = vpack.c.b16 %v807, %v795
    %v1312 = vpack.c.b16 %v808, %v796
    %v1313 = vpack.c.b16 %v809, %v797
    %v1314 = vpack.c.b16 %v810, %v798
    %v1315 = vpack.c.b16 %v811, %v799
    %v1316 = vpack.c.b16 %v812, %v800
    %v1317 = vpack.c.b16 %v813, %v801
    %v1318 = vpack.c.b16 %v814, %v802
    %v1319 = vpack.c.b16 %v815, %v803
    %v1320 = vpack.c.b16 %v816, %v804
    %v1321 = vpack.c.b16 %v817, %v805
    %v1322 = vpack.c.b16 %v830, %v818
    %v1323 = vpack.c.b16 %v831, %v819
    %v1324 = vpack.c.b16 %v832, %v820
    %v1325 = vpack.c.b16 %v833, %v821
    %v1326 = vpack.c.b16 %v834, %v822
    %v1327 = vpack.c.b16 %v835, %v823
    %v1328 = vpack.c.b16 %v836, %v824
    %v1329 = vpack.c.b16 %v837, %v825
    %v1330 = vpack.c.b16 %v838, %v826
    %v1331 = vpack.c.b16 %v839, %v827
    %v1332 = vpack.c.b16 %v840, %v828
    %v1333 = vpack.c.b16 %v841, %v829
    %v1334 = vpack.c.b16 %v854, %v842
    %v1335 = vpack.c.b16 %v855, %v843
    %v1336 = vpack.c.b16 %v856, %v844
    %v1337 = vpack.c.b16 %v857, %v845
    %v1338 = vpack.c.b16 %v858, %v846
    %v1339 = vpack.c.b16 %v859, %v847
    %v1340 = vpack.c.b16 %v860, %v848
    %v1341 = vpack.c.b16 %v861, %v849
    %v1342 = vpack.c.b16 %v862, %v850
    %v1343 = vpack.c.b16 %v863, %v851
    %v1344 = vpack.c.b16 %v864, %v852
    %v1345 = vpack.c.b16 %v865, %v853
    %v1346 = vpack.c.b16 %v878, %v866
    %v1347 = vpack.c.b16 %v879, %v867
    %v1348 = vpack.c.b16 %v880, %v868
    %v1349 = vpack.c.b16 %v881, %v869
    %v1350 = vpack.c.b16 %v882, %v870
    %v1351 = vpack.c.b16 %v883, %v871
    %v1352 = vpack.c.b16 %v884, %v872
    %v1353 = vpack.c.b16 %v885, %v873
    %v1354 = vpack.c.b16 %v886, %v874
    %v1355 = vpack.c.b16 %v887, %v875
    %v1356 = vpack.c.b16 %v888, %v876
    %v1357 = vpack.c.b16 %v889, %v877
    %v1358 = vpack.c.b16 %v902, %v890
    %v1359 = vpack.c.b16 %v903, %v891
    %v1360 = vpack.c.b16 %v904, %v892
    %v1361 = vpack.c.b16 %v905, %v893
    %v1362 = vpack.c.b16 %v906, %v894
    %v1363 = vpack.c.b16 %v907, %v895
    %v1364 = vpack.c.b16 %v908, %v896
    %v1365 = vpack.c.b16 %v909, %v897
    %v1366 = vpack.c.b16 %v910, %v898
    %v1367 = vpack.c.b16 %v911, %v899
    %v1368 = vpack.c.b16 %v912, %v900
    %v1369 = vpack.c.b16 %v913, %v901
    %v1370 = vpack.c.b16 %v926, %v914
    %v1371 = vpack.c.b16 %v927, %v915
    %v1372 = vpack.c.b16 %v928, %v916
    %v1373 = vpack.c.b16 %v929, %v917
    %v1374 = vpack.c.b16 %v930, %v918
    %v1375 = vpack.c.b16 %v931, %v919
    %v1376 = vpack.c.b16 %v932, %v920
    %v1377 = vpack.c.b16 %v933, %v921
    %v1378 = vpack.c.b16 %v934, %v922
    %v1379 = vpack.c.b16 %v935, %v923
    %v1380 = vpack.c.b16 %v936, %v924
    %v1381 = vpack.c.b16 %v937, %v925
    %v1382 = vpack.c.b16 %v950, %v938
    %v1383 = vpack.c.b16 %v951, %v939
    %v1384 = vpack.c.b16 %v952, %v940
    %v1385 = vpack.c.b16 %v953, %v941
    %v1386 = vpack.c.b16 %v954, %v942
    %v1387 = vpack.c.b16 %v955, %v943
    %v1388 = vpack.c.b16 %v956, %v944
    %v1389 = vpack.c.b16 %v957, %v945
    %v1390 = vpack.c.b16 %v958, %v946
    %v1391 = vpack.c.b16 %v959, %v947
    %v1392 = vpack.c.b16 %v960, %v948
    %v1393 = vpack.c.b16 %v961, %v949
    %v1394 = vpack.c.b16 %v974, %v962
    %v1395 = vpack.c.b16 %v975, %v963
    %v1396 = vpack.c.b16 %v976, %v964
    %v1397 = vpack.c.b16 %v977, %v965
    %v1398 = vpack.c.b16 %v978, %v966
    %v1399 = vpack.c.b16 %v979, %v967
    %v1400 = vpack.c.b16 %v980, %v968
    %v1401 = vpack.c.b16 %v981, %v969
    %v1402 = vpack.c.b16 %v982, %v970
    %v1403 = vpack.c.b16 %v983, %v971
    %v1404 = vpack.c.b16 %v984, %v972
    %v1405 = vpack.c.b16 %v985, %v973
    %v1406 = vpack.c.b16 %v998, %v986
    %v1407 = vpack.c.b16 %v999, %v987
    %v1408 = vpack.c.b16 %v1000, %v988
    %v1409 = vpack.c.b16 %v1001, %v989
    %v1410 = vpack.c.b16 %v1002, %v990
    %v1411 = vpack.c.b16 %v1003, %v991
    %v1412 = vpack.c.b16 %v1004, %v992
    %v1413 = vpack.c.b16 %v1005, %v993
    %v1414 = vpack.c.b16 %v1006, %v994
    %v1415 = vpack.c.b16 %v1007, %v995
    %v1416 = vpack.c.b16 %v1008, %v996
    %v1417 = vpack.c.b16 %v1009, %v997
    %v1418 = vpack.c.b16 %v1022, %v1010
    %v1419 = vpack.c.b16 %v1023, %v1011
    %v1420 = vpack.c.b16 %v1024, %v1012
    %v1421 = vpack.c.b16 %v1025, %v1013
    %v1422 = vpack.c.b16 %v1026, %v1014
    %v1423 = vpack.c.b16 %v1027, %v1015
    %v1424 = vpack.c.b16 %v1028, %v1016
    %v1425 = vpack.c.b16 %v1029, %v1017
    %v1426 = vpack.c.b16 %v1030, %v1018
    %v1427 = vpack.c.b16 %v1031, %v1019
    %v1428 = vpack.c.b16 %v1032, %v1020
    %v1429 = vpack.c.b16 %v1033, %v1021
    %v1430 = vpack.c.b16 %v1046, %v1034
    %v1431 = vpack.c.b16 %v1047, %v1035
    %v1432 = vpack.c.b16 %v1048, %v1036
    %v1433 = vpack.c.b16 %v1049, %v1037
    %v1434 = vpack.c.b16 %v1050, %v1038
    %v1435 = vpack.c.b16 %v1051, %v1039
    %v1436 = vpack.c.b16 %v1052, %v1040
    %v1437 = vpack.c.b16 %v1053, %v1041
    %v1438 = vpack.c.b16 %v1054, %v1042
    %v1439 = vpack.c.b16 %v1055, %v1043
    %v1440 = vpack.c.b16 %v1056, %v1044
    %v1441 = vpack.c.b16 %v1057, %v1045
    %v1442 = vpack.c.b16 %v1070, %v1058
    %v1443 = vpack.c.b16 %v1071, %v1059
    %v1444 = vpack.c.b16 %v1072, %v1060
    %v1445 = vpack.c.b16 %v1073, %v1061
    %v1446 = vpack.c.b16 %v1074, %v1062
    %v1447 = vpack.c.b16 %v1075, %v1063
    %v1448 = vpack.c.b16 %v1076, %v1064
    %v1449 = vpack.c.b16 %v1077, %v1065
    %v1450 = vpack.c.b16 %v1078, %v1066
    %v1451 = vpack.c.b16 %v1079, %v1067
    %v1452 = vpack.c.b16 %v1080, %v1068
    %v1453 = vpack.c.b16 %v1081, %v1069
    %v1454 = vpack.c.b16 %v1094, %v1082
    %v1455 = vpack.c.b16 %v1095, %v1083
    %v1456 = vpack.c.b16 %v1096, %v1084
    %v1457 = vpack.c.b16 %v1097, %v1085
    %v1458 = vpack.c.b16 %v1098, %v1086
    %v1459 = vpack.c.b16 %v1099, %v1087
    %v1460 = vpack.c.b16 %v1100, %v1088
    %v1461 = vpack.c.b16 %v1101, %v1089
    %v1462 = vpack.c.b16 %v1102, %v1090
    %v1463 = vpack.c.b16 %v1103, %v1091
    %v1464 = vpack.c.b16 %v1104, %v1092
    %v1465 = vpack.c.b16 %v1105, %v1093
    %v1466 = vpack.c.b16 %v1118, %v1106
    %v1467 = vpack.c.b16 %v1119, %v1107
    %v1468 = vpack.c.b16 %v1120, %v1108
    %v1469 = vpack.c.b16 %v1121, %v1109
    %v1470 = vpack.c.b16 %v1122, %v1110
    %v1471 = vpack.c.b16 %v1123, %v1111
    %v1472 = vpack.c.b16 %v1124, %v1112
    %v1473 = vpack.c.b16 %v1125, %v1113
    %v1474 = vpack.c.b16 %v1126, %v1114
    %v1475 = vpack.c.b16 %v1127, %v1115
    %v1476 = vpack.c.b16 %v1128, %v1116
    %v1477 = vpack.c.b16 %v1129, %v1117
    %v1478 = vpack.c.b16 %v1142, %v1130
    %v1479 = vpack.c.b16 %v1143, %v1131
    %v1480 = vpack.c.b16 %v1144, %v1132
    %v1481 = vpack.c.b16 %v1145, %v1133
    %v1482 = vpack.c.b16 %v1146, %v1134
    %v1483 = vpack.c.b16 %v1147, %v1135
    %v1484 = vpack.c.b16 %v1148, %v1136
    %v1485 = vpack.c.b16 %v1149, %v1137
    %v1486 = vpack.c.b16 %v1150, %v1138
    %v1487 = vpack.c.b16 %v1151, %v1139
    %v1488 = vpack.c.b16 %v1152, %v1140
    %v1489 = vpack.c.b16 %v1153, %v1141
    %v1490 = vpack.c.b16 %v1166, %v1154
    %v1491 = vpack.c.b16 %v1167, %v1155
    %v1492 = vpack.c.b16 %v1168, %v1156
    %v1493 = vpack.c.b16 %v1169, %v1157
    %v1494 = vpack.c.b16 %v1170, %v1158
    %v1495 = vpack.c.b16 %v1171, %v1159
    %v1496 = vpack.c.b16 %v1172, %v1160
    %v1497 = vpack.c.b16 %v1173, %v1161
    %v1498 = vpack.c.b16 %v1174, %v1162
    %v1499 = vpack.c.b16 %v1175, %v1163
    %v1500 = vpack.c.b16 %v1176, %v1164
    %v1501 = vpack.c.b16 %v1177, %v1165
    %v1502 = vpack.c.b16 %v1190, %v1178
    %v1503 = vpack.c.b16 %v1191, %v1179
    %v1504 = vpack.c.b16 %v1192, %v1180
    %v1505 = vpack.c.b16 %v1193, %v1181
    %v1506 = vpack.c.b16 %v1194, %v1182
    %v1507 = vpack.c.b16 %v1195, %v1183
    %v1508 = vpack.c.b16 %v1196, %v1184
    %v1509 = vpack.c.b16 %v1197, %v1185
    %v1510 = vpack.c.b16 %v1198, %v1186
    %v1511 = vpack.c.b16 %v1199, %v1187
    %v1512 = vpack.c.b16 %v1200, %v1188
    %v1513 = vpack.c.b16 %v1201, %v1189
    %v1514 = vpack.c.b16 %v1214, %v1202
    %v1515 = vpack.c.b16 %v1215, %v1203
    %v1516 = vpack.c.b16 %v1216, %v1204
    %v1517 = vpack.c.b16 %v1217, %v1205
    %v1518 = vpack.c.b16 %v1218, %v1206
    %v1519 = vpack.c.b16 %v1219, %v1207
    %v1520 = vpack.c.b16 %v1220, %v1208
    %v1521 = vpack.c.b16 %v1221, %v1209
    %v1522 = vpack.c.b16 %v1222, %v1210
    %v1523 = vpack.c.b16 %v1223, %v1211
    %v1524 = vpack.c.b16 %v1224, %v1212
    %v1525 = vpack.c.b16 %v1225, %v1213
    %v1526 = vpack.c.b16 %v1238, %v1226
    %v1527 = vpack.c.b16 %v1239, %v1227
    %v1528 = vpack.c.b16 %v1240, %v1228
    %v1529 = vpack.c.b16 %v1241, %v1229
    %v1530 = vpack.c.b16 %v1242, %v1230
    %v1531 = vpack.c.b16 %v1243, %v1231
    %v1532 = vpack.c.b16 %v1244, %v1232
    %v1533 = vpack.c.b16 %v1245, %v1233
    %v1534 = vpack.c.b16 %v1246, %v1234
    %v1535 = vpack.c.b16 %v1247, %v1235
    %v1536 = vpack.c.b16 %v1248, %v1236
    %v1537 = vpack.c.b16 %v1249, %v1237
    %1826 = vmatprep.subr.bf16.mxu0 %v1335
    %1827 = vmatpush1.bf16.msra.mxu0 %v1334
    %1828 = vmatprep.subr.bf16.mxu0 %v1323
    %1829 = vmatpush1.bf16.msra.mxu0 %v1322
    %1830 = vmatprep.subr.bf16.mxu0 %v1311
    %1831 = vmatpush1.bf16.msra.mxu0 %v1310
    %1832 = vmatprep.subr.bf16.mxu0 %v1299
    %1833 = vmatpush1.bf16.msra.mxu0 %v1298
    %1834 = vmatprep.subr.bf16.mxu0 %v1287
    %1835 = vmatpush1.bf16.msra.mxu0 %v1286
    %1836 = vmatprep.subr.bf16.mxu0 %v1275
    %1837 = vmatpush1.bf16.msra.mxu0 %v1274
    %1838 = vmatprep.subr.bf16.mxu0 %v1263
    %1839 = vmatpush1.bf16.msra.mxu0 %v1262
    %1840 = vmatprep.subr.bf16.mxu0 %v1251
    %1841 = vmatpush1.bf16.msra.mxu0 %v1250
    %1842 = vmatprep.subr.bf16.mxu0 %v1431
    %1843 = vmatpush2.bf16.msra.mxu0 %v1430
    %1844 = vmatprep.subr.bf16.mxu0 %v1419
    %1845 = vmatpush2.bf16.msra.mxu0 %v1418
    %1846 = vmatprep.subr.bf16.mxu0 %v1407
    %1847 = vmatpush2.bf16.msra.mxu0 %v1406
    %1848 = vmatprep.subr.bf16.mxu0 %v1395
    %1849 = vmatpush2.bf16.msra.mxu0 %v1394
    %1850 = vmatprep.subr.bf16.mxu0 %v1383
    %1851 = vmatpush2.bf16.msra.mxu0 %v1382
    %1852 = vmatprep.subr.bf16.mxu0 %v1371
    %1853 = vmatpush2.bf16.msra.mxu0 %v1370
    %1854 = vmatprep.subr.bf16.mxu0 %v1359
    %1855 = vmatpush2.bf16.msra.mxu0 %v1358
    %1856 = vmatprep.subr.bf16.mxu0 %v1347
    %1857 = vmatpush2.bf16.msra.mxu0 %v1346
    %1858 = vmatprep.mubr.bf16.mxu0 %v32
    %1859 = vmatmul.mubr.bf16.gmra.mxu0 %v31
    %v1860 = vpop.f32.mrf.mxu0
    %v1861 = vadd.f32 %v329, %v1860
    %v1862 = vpop.f32.mrf.mxu0
    %v1863 = vadd.f32 %v333, %v1862
    %v1864 = vpop.f32.mrf.mxu0
    %v1865 = vadd.f32 %v329, %v1864
    %v1866 = vpop.f32.mrf.mxu0
    %v1867 = vadd.f32 %v333, %v1866
    %1868 = vdwg.mxu0
    %1869 = vmatprep.subr.bf16.mxu0 %v1527
    %1870 = vmatpush1.bf16.msra.mxu0 %v1526
    %1871 = vmatprep.subr.bf16.mxu0 %v1515
    %1872 = vmatpush1.bf16.msra.mxu0 %v1514
    %1873 = vmatprep.subr.bf16.mxu0 %v1503
    %1874 = vmatpush1.bf16.msra.mxu0 %v1502
    %1875 = vmatprep.subr.bf16.mxu0 %v1491
    %1876 = vmatpush1.bf16.msra.mxu0 %v1490
    %1877 = vmatprep.subr.bf16.mxu0 %v1479
    %1878 = vmatpush1.bf16.msra.mxu0 %v1478
    %1879 = vmatprep.subr.bf16.mxu0 %v1467
    %1880 = vmatpush1.bf16.msra.mxu0 %v1466
    %1881 = vmatprep.subr.bf16.mxu0 %v1455
    %1882 = vmatpush1.bf16.msra.mxu0 %v1454
    %1883 = vmatprep.subr.bf16.mxu0 %v1443
    %1884 = vmatpush1.bf16.msra.mxu0 %v1442
    %1885 = vmatprep.subr.bf16.mxu0 0
    %1886 = vmatpush2.bf16.msra.mxu0 0
    %1887 = vmatprep.subr.bf16.mxu0 0
    %1888 = vmatpush2.bf16.msra.mxu0 0
    %1889 = vmatprep.subr.bf16.mxu0 0
    %1890 = vmatpush2.bf16.msra.mxu0 0
    %1891 = vmatprep.subr.bf16.mxu0 0
    %1892 = vmatpush2.bf16.msra.mxu0 0
    %1893 = vmatprep.subr.bf16.mxu0 0
    %1894 = vmatpush2.bf16.msra.mxu0 0
    %1895 = vmatprep.subr.bf16.mxu0 0
    %1896 = vmatpush2.bf16.msra.mxu0 0
    %1897 = vmatprep.subr.bf16.mxu0 0
    %1898 = vmatpush2.bf16.msra.mxu0 0
    %1899 = vmatprep.subr.bf16.mxu0 0
    %1900 = vmatpush2.bf16.msra.mxu0 0
    %1901 = vmatprep.mubr.bf16.mxu0 0
    %1902 = vmatmul.mubr.bf16.gmra.mxu0 %v33
    %v1903 = vpop.f32.mrf.mxu0
    %v1904 = vadd.f32 %v1861, %v1903
    %v1905 = vpop.f32.mrf.mxu0
    %v1906 = vadd.f32 %v1863, %v1905
    %v1907 = vpop.f32.mrf.mxu0
    %v1908 = vadd.f32 %v1865, %v1907
    %v1909 = vpop.f32.mrf.mxu0
    %v1910 = vadd.f32 %v1867, %v1909
    %1911 = vdwg.mxu0
    %1912 = vmatprep.subr.bf16.mxu0 %v1337
    %1913 = vmatpush1.bf16.msra.mxu0 %v1336
    %1914 = vmatprep.subr.bf16.mxu0 %v1325
    %1915 = vmatpush1.bf16.msra.mxu0 %v1324
    %1916 = vmatprep.subr.bf16.mxu0 %v1313
    %1917 = vmatpush1.bf16.msra.mxu0 %v1312
    %1918 = vmatprep.subr.bf16.mxu0 %v1301
    %1919 = vmatpush1.bf16.msra.mxu0 %v1300
    %1920 = vmatprep.subr.bf16.mxu0 %v1289
    %1921 = vmatpush1.bf16.msra.mxu0 %v1288
    %1922 = vmatprep.subr.bf16.mxu0 %v1277
    %1923 = vmatpush1.bf16.msra.mxu0 %v1276
    %1924 = vmatprep.subr.bf16.mxu0 %v1265
    %1925 = vmatpush1.bf16.msra.mxu0 %v1264
    %1926 = vmatprep.subr.bf16.mxu0 %v1253
    %1927 = vmatpush1.bf16.msra.mxu0 %v1252
    %1928 = vmatprep.subr.bf16.mxu0 %v1433
    %1929 = vmatpush2.bf16.msra.mxu0 %v1432
    %1930 = vmatprep.subr.bf16.mxu0 %v1421
    %1931 = vmatpush2.bf16.msra.mxu0 %v1420
    %1932 = vmatprep.subr.bf16.mxu0 %v1409
    %1933 = vmatpush2.bf16.msra.mxu0 %v1408
    %1934 = vmatprep.subr.bf16.mxu0 %v1397
    %1935 = vmatpush2.bf16.msra.mxu0 %v1396
    %1936 = vmatprep.subr.bf16.mxu0 %v1385
    %1937 = vmatpush2.bf16.msra.mxu0 %v1384
    %1938 = vmatprep.subr.bf16.mxu0 %v1373
    %1939 = vmatpush2.bf16.msra.mxu0 %v1372
    %1940 = vmatprep.subr.bf16.mxu0 %v1361
    %1941 = vmatpush2.bf16.msra.mxu0 %v1360
    %1942 = vmatprep.subr.bf16.mxu0 %v1349
    %1943 = vmatpush2.bf16.msra.mxu0 %v1348
    %1944 = vmatprep.mubr.bf16.mxu0 %v32
    %1945 = vmatmul.mubr.bf16.gmra.mxu0 %v31
    %v1946 = vpop.f32.mrf.mxu0
    %v1947 = vadd.f32 %v337, %v1946
    %v1948 = vpop.f32.mrf.mxu0
    %v1949 = vadd.f32 %v341, %v1948
    %v1950 = vpop.f32.mrf.mxu0
    %v1951 = vadd.f32 %v337, %v1950
    %v1952 = vpop.f32.mrf.mxu0
    %v1953 = vadd.f32 %v341, %v1952
    %1954 = vdwg.mxu0
    %1955 = vmatprep.subr.bf16.mxu0 %v1529
    %1956 = vmatpush1.bf16.msra.mxu0 %v1528
    %1957 = vmatprep.subr.bf16.mxu0 %v1517
    %1958 = vmatpush1.bf16.msra.mxu0 %v1516
    %1959 = vmatprep.subr.bf16.mxu0 %v1505
    %1960 = vmatpush1.bf16.msra.mxu0 %v1504
    %1961 = vmatprep.subr.bf16.mxu0 %v1493
    %1962 = vmatpush1.bf16.msra.mxu0 %v1492
    %1963 = vmatprep.subr.bf16.mxu0 %v1481
    %1964 = vmatpush1.bf16.msra.mxu0 %v1480
    %1965 = vmatprep.subr.bf16.mxu0 %v1469
    %1966 = vmatpush1.bf16.msra.mxu0 %v1468
    %1967 = vmatprep.subr.bf16.mxu0 %v1457
    %1968 = vmatpush1.bf16.msra.mxu0 %v1456
    %1969 = vmatprep.subr.bf16.mxu0 %v1445
    %1970 = vmatpush1.bf16.msra.mxu0 %v1444
    %1971 = vmatprep.subr.bf16.mxu0 0
    %1972 = vmatpush2.bf16.msra.mxu0 0
    %1973 = vmatprep.subr.bf16.mxu0 0
    %1974 = vmatpush2.bf16.msra.mxu0 0
    %1975 = vmatprep.subr.bf16.mxu0 0
    %1976 = vmatpush2.bf16.msra.mxu0 0
    %1977 = vmatprep.subr.bf16.mxu0 0
    %1978 = vmatpush2.bf16.msra.mxu0 0
    %1979 = vmatprep.subr.bf16.mxu0 0
    %1980 = vmatpush2.bf16.msra.mxu0 0
    %1981 = vmatprep.subr.bf16.mxu0 0
    %1982 = vmatpush2.bf16.msra.mxu0 0
    %1983 = vmatprep.subr.bf16.mxu0 0
    %1984 = vmatpush2.bf16.msra.mxu0 0
    %1985 = vmatprep.subr.bf16.mxu0 0
    %1986 = vmatpush2.bf16.msra.mxu0 0
    %1987 = vmatprep.mubr.bf16.mxu0 0
    %1988 = vmatmul.mubr.bf16.gmra.mxu0 %v33
    %v1989 = vpop.f32.mrf.mxu0
    %v1990 = vadd.f32 %v1947, %v1989
    %v1991 = vpop.f32.mrf.mxu0
    %v1992 = vadd.f32 %v1949, %v1991
    %v1993 = vpop.f32.mrf.mxu0
    %v1994 = vadd.f32 %v1951, %v1993
    %v1995 = vpop.f32.mrf.mxu0
    %v1996 = vadd.f32 %v1953, %v1995
    %1997 = vdwg.mxu0
    %1998 = vmatprep.subr.bf16.mxu0 %v1339
    %1999 = vmatpush1.bf16.msra.mxu0 %v1338
    %2000 = vmatprep.subr.bf16.mxu0 %v1327
    %2001 = vmatpush1.bf16.msra.mxu0 %v1326
    %2002 = vmatprep.subr.bf16.mxu0 %v1315
    %2003 = vmatpush1.bf16.msra.mxu0 %v1314
    %2004 = vmatprep.subr.bf16.mxu0 %v1303
    %2005 = vmatpush1.bf16.msra.mxu0 %v1302
    %2006 = vmatprep.subr.bf16.mxu0 %v1291
    %2007 = vmatpush1.bf16.msra.mxu0 %v1290
    %2008 = vmatprep.subr.bf16.mxu0 %v1279
    %2009 = vmatpush1.bf16.msra.mxu0 %v1278
    %2010 = vmatprep.subr.bf16.mxu0 %v1267
    %2011 = vmatpush1.bf16.msra.mxu0 %v1266
    %2012 = vmatprep.subr.bf16.mxu0 %v1255
    %2013 = vmatpush1.bf16.msra.mxu0 %v1254
    %2014 = vmatprep.subr.bf16.mxu0 %v1435
    %2015 = vmatpush2.bf16.msra.mxu0 %v1434
    %2016 = vmatprep.subr.bf16.mxu0 %v1423
    %2017 = vmatpush2.bf16.msra.mxu0 %v1422
    %2018 = vmatprep.subr.bf16.mxu0 %v1411
    %2019 = vmatpush2.bf16.msra.mxu0 %v1410
    %2020 = vmatprep.subr.bf16.mxu0 %v1399
    %2021 = vmatpush2.bf16.msra.mxu0 %v1398
    %2022 = vmatprep.subr.bf16.mxu0 %v1387
    %2023 = vmatpush2.bf16.msra.mxu0 %v1386
    %2024 = vmatprep.subr.bf16.mxu0 %v1375
    %2025 = vmatpush2.bf16.msra.mxu0 %v1374
    %2026 = vmatprep.subr.bf16.mxu0 %v1363
    %2027 = vmatpush2.bf16.msra.mxu0 %v1362
    %2028 = vmatprep.subr.bf16.mxu0 %v1351
    %2029 = vmatpush2.bf16.msra.mxu0 %v1350
    %2030 = vmatprep.mubr.bf16.mxu0 %v32
    %2031 = vmatmul.mubr.bf16.gmra.mxu0 %v31
    %v2032 = vpop.f32.mrf.mxu0
    %v2033 = vadd.f32 %v345, %v2032
    %v2034 = vpop.f32.mrf.mxu0
    %v2035 = vadd.f32 %v349, %v2034
    %v2036 = vpop.f32.mrf.mxu0
    %v2037 = vadd.f32 %v345, %v2036
    %v2038 = vpop.f32.mrf.mxu0
    %v2039 = vadd.f32 %v349, %v2038
    %2040 = vdwg.mxu0
    %2041 = vmatprep.subr.bf16.mxu0 %v1531
    %2042 = vmatpush1.bf16.msra.mxu0 %v1530
    %2043 = vmatprep.subr.bf16.mxu0 %v1519
    %2044 = vmatpush1.bf16.msra.mxu0 %v1518
    %2045 = vmatprep.subr.bf16.mxu0 %v1507
    %2046 = vmatpush1.bf16.msra.mxu0 %v1506
    %2047 = vmatprep.subr.bf16.mxu0 %v1495
    %2048 = vmatpush1.bf16.msra.mxu0 %v1494
    %2049 = vmatprep.subr.bf16.mxu0 %v1483
    %2050 = vmatpush1.bf16.msra.mxu0 %v1482
    %2051 = vmatprep.subr.bf16.mxu0 %v1471
    %2052 = vmatpush1.bf16.msra.mxu0 %v1470
    %2053 = vmatprep.subr.bf16.mxu0 %v1459
    %2054 = vmatpush1.bf16.msra.mxu0 %v1458
    %2055 = vmatprep.subr.bf16.mxu0 %v1447
    %2056 = vmatpush1.bf16.msra.mxu0 %v1446
    %2057 = vmatprep.subr.bf16.mxu0 0
    %2058 = vmatpush2.bf16.msra.mxu0 0
    %2059 = vmatprep.subr.bf16.mxu0 0
    %2060 = vmatpush2.bf16.msra.mxu0 0
    %2061 = vmatprep.subr.bf16.mxu0 0
    %2062 = vmatpush2.bf16.msra.mxu0 0
    %2063 = vmatprep.subr.bf16.mxu0 0
    %2064 = vmatpush2.bf16.msra.mxu0 0
    %2065 = vmatprep.subr.bf16.mxu0 0
    %2066 = vmatpush2.bf16.msra.mxu0 0
    %2067 = vmatprep.subr.bf16.mxu0 0
    %2068 = vmatpush2.bf16.msra.mxu0 0
    %2069 = vmatprep.subr.bf16.mxu0 0
    %2070 = vmatpush2.bf16.msra.mxu0 0
    %2071 = vmatprep.subr.bf16.mxu0 0
    %2072 = vmatpush2.bf16.msra.mxu0 0
    %2073 = vmatprep.mubr.bf16.mxu0 0
    %2074 = vmatmul.mubr.bf16.gmra.mxu0 %v33
    %v2075 = vpop.f32.mrf.mxu0
    %v2076 = vadd.f32 %v2033, %v2075
    %v2077 = vpop.f32.mrf.mxu0
    %v2078 = vadd.f32 %v2035, %v2077
    %v2079 = vpop.f32.mrf.mxu0
    %v2080 = vadd.f32 %v2037, %v2079
    %v2081 = vpop.f32.mrf.mxu0
    %v2082 = vadd.f32 %v2039, %v2081
    %2083 = vdwg.mxu0
    %2084 = vmatprep.subr.bf16.mxu0 %v1341
    %2085 = vmatpush1.bf16.msra.mxu0 %v1340
    %2086 = vmatprep.subr.bf16.mxu0 %v1329
    %2087 = vmatpush1.bf16.msra.mxu0 %v1328
    %2088 = vmatprep.subr.bf16.mxu0 %v1317
    %2089 = vmatpush1.bf16.msra.mxu0 %v1316
    %2090 = vmatprep.subr.bf16.mxu0 %v1305
    %2091 = vmatpush1.bf16.msra.mxu0 %v1304
    %2092 = vmatprep.subr.bf16.mxu0 %v1293
    %2093 = vmatpush1.bf16.msra.mxu0 %v1292
    %2094 = vmatprep.subr.bf16.mxu0 %v1281
    %2095 = vmatpush1.bf16.msra.mxu0 %v1280
    %2096 = vmatprep.subr.bf16.mxu0 %v1269
    %2097 = vmatpush1.bf16.msra.mxu0 %v1268
    %2098 = vmatprep.subr.bf16.mxu0 %v1257
    %2099 = vmatpush1.bf16.msra.mxu0 %v1256
    %2100 = vmatprep.subr.bf16.mxu0 %v1437
    %2101 = vmatpush2.bf16.msra.mxu0 %v1436
    %2102 = vmatprep.subr.bf16.mxu0 %v1425
    %2103 = vmatpush2.bf16.msra.mxu0 %v1424
    %2104 = vmatprep.subr.bf16.mxu0 %v1413
    %2105 = vmatpush2.bf16.msra.mxu0 %v1412
    %2106 = vmatprep.subr.bf16.mxu0 %v1401
    %2107 = vmatpush2.bf16.msra.mxu0 %v1400
    %2108 = vmatprep.subr.bf16.mxu0 %v1389
    %2109 = vmatpush2.bf16.msra.mxu0 %v1388
    %2110 = vmatprep.subr.bf16.mxu0 %v1377
    %2111 = vmatpush2.bf16.msra.mxu0 %v1376
    %2112 = vmatprep.subr.bf16.mxu0 %v1365
    %2113 = vmatpush2.bf16.msra.mxu0 %v1364
    %2114 = vmatprep.subr.bf16.mxu0 %v1353
    %2115 = vmatpush2.bf16.msra.mxu0 %v1352
    %2116 = vmatprep.mubr.bf16.mxu0 %v32
    %2117 = vmatmul.mubr.bf16.gmra.mxu0 %v31
    %v2118 = vpop.f32.mrf.mxu0
    %v2119 = vadd.f32 %v353, %v2118
    %v2120 = vpop.f32.mrf.mxu0
    %v2121 = vadd.f32 %v357, %v2120
    %v2122 = vpop.f32.mrf.mxu0
    %v2123 = vadd.f32 %v353, %v2122
    %v2124 = vpop.f32.mrf.mxu0
    %v2125 = vadd.f32 %v357, %v2124
    %2126 = vdwg.mxu0
    %2127 = vmatprep.subr.bf16.mxu0 %v1533
    %2128 = vmatpush1.bf16.msra.mxu0 %v1532
    %2129 = vmatprep.subr.bf16.mxu0 %v1521
    %2130 = vmatpush1.bf16.msra.mxu0 %v1520
    %2131 = vmatprep.subr.bf16.mxu0 %v1509
    %2132 = vmatpush1.bf16.msra.mxu0 %v1508
    %2133 = vmatprep.subr.bf16.mxu0 %v1497
    %2134 = vmatpush1.bf16.msra.mxu0 %v1496
    %2135 = vmatprep.subr.bf16.mxu0 %v1485
    %2136 = vmatpush1.bf16.msra.mxu0 %v1484
    %2137 = vmatprep.subr.bf16.mxu0 %v1473
    %2138 = vmatpush1.bf16.msra.mxu0 %v1472
    %2139 = vmatprep.subr.bf16.mxu0 %v1461
    %2140 = vmatpush1.bf16.msra.mxu0 %v1460
    %2141 = vmatprep.subr.bf16.mxu0 %v1449
    %2142 = vmatpush1.bf16.msra.mxu0 %v1448
    %2143 = vmatprep.subr.bf16.mxu0 0
    %2144 = vmatpush2.bf16.msra.mxu0 0
    %2145 = vmatprep.subr.bf16.mxu0 0
    %2146 = vmatpush2.bf16.msra.mxu0 0
    %2147 = vmatprep.subr.bf16.mxu0 0
    %2148 = vmatpush2.bf16.msra.mxu0 0
    %2149 = vmatprep.subr.bf16.mxu0 0
    %2150 = vmatpush2.bf16.msra.mxu0 0
    %2151 = vmatprep.subr.bf16.mxu0 0
    %2152 = vmatpush2.bf16.msra.mxu0 0
    %2153 = vmatprep.subr.bf16.mxu0 0
    %2154 = vmatpush2.bf16.msra.mxu0 0
    %2155 = vmatprep.subr.bf16.mxu0 0
    %2156 = vmatpush2.bf16.msra.mxu0 0
    %2157 = vmatprep.subr.bf16.mxu0 0
    %2158 = vmatpush2.bf16.msra.mxu0 0
    %2159 = vmatprep.mubr.bf16.mxu0 0
    %2160 = vmatmul.mubr.bf16.gmra.mxu0 %v33
    %v2161 = vpop.f32.mrf.mxu0
    %v2162 = vadd.f32 %v2119, %v2161
    %v2163 = vpop.f32.mrf.mxu0
    %v2164 = vadd.f32 %v2121, %v2163
    %v2165 = vpop.f32.mrf.mxu0
    %v2166 = vadd.f32 %v2123, %v2165
    %v2167 = vpop.f32.mrf.mxu0
    %v2168 = vadd.f32 %v2125, %v2167
    %2169 = vdwg.mxu0
    %2170 = vmatprep.subr.bf16.mxu0 %v1343
    %2171 = vmatpush1.bf16.msra.mxu0 %v1342
    %2172 = vmatprep.subr.bf16.mxu0 %v1331
    %2173 = vmatpush1.bf16.msra.mxu0 %v1330
    %2174 = vmatprep.subr.bf16.mxu0 %v1319
    %2175 = vmatpush1.bf16.msra.mxu0 %v1318
    %2176 = vmatprep.subr.bf16.mxu0 %v1307
    %2177 = vmatpush1.bf16.msra.mxu0 %v1306
    %2178 = vmatprep.subr.bf16.mxu0 %v1295
    %2179 = vmatpush1.bf16.msra.mxu0 %v1294
    %2180 = vmatprep.subr.bf16.mxu0 %v1283
    %2181 = vmatpush1.bf16.msra.mxu0 %v1282
    %2182 = vmatprep.subr.bf16.mxu0 %v1271
    %2183 = vmatpush1.bf16.msra.mxu0 %v1270
    %2184 = vmatprep.subr.bf16.mxu0 %v1259
    %2185 = vmatpush1.bf16.msra.mxu0 %v1258
    %2186 = vmatprep.subr.bf16.mxu0 %v1439
    %2187 = vmatpush2.bf16.msra.mxu0 %v1438
    %2188 = vmatprep.subr.bf16.mxu0 %v1427
    %2189 = vmatpush2.bf16.msra.mxu0 %v1426
    %2190 = vmatprep.subr.bf16.mxu0 %v1415
    %2191 = vmatpush2.bf16.msra.mxu0 %v1414
    %2192 = vmatprep.subr.bf16.mxu0 %v1403
    %2193 = vmatpush2.bf16.msra.mxu0 %v1402
    %2194 = vmatprep.subr.bf16.mxu0 %v1391
    %2195 = vmatpush2.bf16.msra.mxu0 %v1390
    %2196 = vmatprep.subr.bf16.mxu0 %v1379
    %2197 = vmatpush2.bf16.msra.mxu0 %v1378
    %2198 = vmatprep.subr.bf16.mxu0 %v1367
    %2199 = vmatpush2.bf16.msra.mxu0 %v1366
    %2200 = vmatprep.subr.bf16.mxu0 %v1355
    %2201 = vmatpush2.bf16.msra.mxu0 %v1354
    %2202 = vmatprep.mubr.bf16.mxu0 %v32
    %2203 = vmatmul.mubr.bf16.gmra.mxu0 %v31
    %v2204 = vpop.f32.mrf.mxu0
    %v2205 = vadd.f32 %v361, %v2204
    %v2206 = vpop.f32.mrf.mxu0
    %v2207 = vadd.f32 %v365, %v2206
    %v2208 = vpop.f32.mrf.mxu0
    %v2209 = vadd.f32 %v361, %v2208
    %v2210 = vpop.f32.mrf.mxu0
    %v2211 = vadd.f32 %v365, %v2210
    %2212 = vdwg.mxu0
    %2213 = vmatprep.subr.bf16.mxu0 %v1535
    %2214 = vmatpush1.bf16.msra.mxu0 %v1534
    %2215 = vmatprep.subr.bf16.mxu0 %v1523
    %2216 = vmatpush1.bf16.msra.mxu0 %v1522
    %2217 = vmatprep.subr.bf16.mxu0 %v1511
    %2218 = vmatpush1.bf16.msra.mxu0 %v1510
    %2219 = vmatprep.subr.bf16.mxu0 %v1499
    %2220 = vmatpush1.bf16.msra.mxu0 %v1498
    %2221 = vmatprep.subr.bf16.mxu0 %v1487
    %2222 = vmatpush1.bf16.msra.mxu0 %v1486
    %2223 = vmatprep.subr.bf16.mxu0 %v1475
    %2224 = vmatpush1.bf16.msra.mxu0 %v1474
    %2225 = vmatprep.subr.bf16.mxu0 %v1463
    %2226 = vmatpush1.bf16.msra.mxu0 %v1462
    %2227 = vmatprep.subr.bf16.mxu0 %v1451
    %2228 = vmatpush1.bf16.msra.mxu0 %v1450
    %2229 = vmatprep.subr.bf16.mxu0 0
    %2230 = vmatpush2.bf16.msra.mxu0 0
    %2231 = vmatprep.subr.bf16.mxu0 0
    %2232 = vmatpush2.bf16.msra.mxu0 0
    %2233 = vmatprep.subr.bf16.mxu0 0
    %2234 = vmatpush2.bf16.msra.mxu0 0
    %2235 = vmatprep.subr.bf16.mxu0 0
    %2236 = vmatpush2.bf16.msra.mxu0 0
    %2237 = vmatprep.subr.bf16.mxu0 0
    %2238 = vmatpush2.bf16.msra.mxu0 0
    %2239 = vmatprep.subr.bf16.mxu0 0
    %2240 = vmatpush2.bf16.msra.mxu0 0
    %2241 = vmatprep.subr.bf16.mxu0 0
    %2242 = vmatpush2.bf16.msra.mxu0 0
    %2243 = vmatprep.subr.bf16.mxu0 0
    %2244 = vmatpush2.bf16.msra.mxu0 0
    %2245 = vmatprep.mubr.bf16.mxu0 0
    %2246 = vmatmul.mubr.bf16.gmra.mxu0 %v33
    %v2247 = vpop.f32.mrf.mxu0
    %v2248 = vadd.f32 %v2205, %v2247
    %v2249 = vpop.f32.mrf.mxu0
    %v2250 = vadd.f32 %v2207, %v2249
    %v2251 = vpop.f32.mrf.mxu0
    %v2252 = vadd.f32 %v2209, %v2251
    %v2253 = vpop.f32.mrf.mxu0
    %v2254 = vadd.f32 %v2211, %v2253
    %2255 = vdwg.mxu0
    %2256 = vmatprep.subr.bf16.mxu0 %v1345
    %2257 = vmatpush1.bf16.msra.mxu0 %v1344
    %2258 = vmatprep.subr.bf16.mxu0 %v1333
    %2259 = vmatpush1.bf16.msra.mxu0 %v1332
    %2260 = vmatprep.subr.bf16.mxu0 %v1321
    %2261 = vmatpush1.bf16.msra.mxu0 %v1320
    %2262 = vmatprep.subr.bf16.mxu0 %v1309
    %2263 = vmatpush1.bf16.msra.mxu0 %v1308
    %2264 = vmatprep.subr.bf16.mxu0 %v1297
    %2265 = vmatpush1.bf16.msra.mxu0 %v1296
    %2266 = vmatprep.subr.bf16.mxu0 %v1285
    %2267 = vmatpush1.bf16.msra.mxu0 %v1284
    %2268 = vmatprep.subr.bf16.mxu0 %v1273
    %2269 = vmatpush1.bf16.msra.mxu0 %v1272
    %2270 = vmatprep.subr.bf16.mxu0 %v1261
    %2271 = vmatpush1.bf16.msra.mxu0 %v1260
    %2272 = vmatprep.subr.bf16.mxu0 %v1441
    %2273 = vmatpush2.bf16.msra.mxu0 %v1440
    %2274 = vmatprep.subr.bf16.mxu0 %v1429
    %2275 = vmatpush2.bf16.msra.mxu0 %v1428
    %2276 = vmatprep.subr.bf16.mxu0 %v1417
    %2277 = vmatpush2.bf16.msra.mxu0 %v1416
    %2278 = vmatprep.subr.bf16.mxu0 %v1405
    %2279 = vmatpush2.bf16.msra.mxu0 %v1404
    %2280 = vmatprep.subr.bf16.mxu0 %v1393
    %2281 = vmatpush2.bf16.msra.mxu0 %v1392
    %2282 = vmatprep.subr.bf16.mxu0 %v1381
    %2283 = vmatpush2.bf16.msra.mxu0 %v1380
    %2284 = vmatprep.subr.bf16.mxu0 %v1369
    %2285 = vmatpush2.bf16.msra.mxu0 %v1368
    %2286 = vmatprep.subr.bf16.mxu0 %v1357
    %2287 = vmatpush2.bf16.msra.mxu0 %v1356
    %2288 = vmatprep.mubr.bf16.mxu0 %v32
    %2289 = vmatmul.mubr.bf16.gmra.mxu0 %v31
    %v2290 = vpop.f32.mrf.mxu0
    %v2291 = vadd.f32 %v369, %v2290
    %v2292 = vpop.f32.mrf.mxu0
    %v2293 = vadd.f32 %v373, %v2292
    %v2294 = vpop.f32.mrf.mxu0
    %v2295 = vadd.f32 %v369, %v2294
    %v2296 = vpop.f32.mrf.mxu0
    %v2297 = vadd.f32 %v373, %v2296
    %2298 = vdwg.mxu0
    %2299 = vmatprep.subr.bf16.mxu0 %v1537
    %2300 = vmatpush1.bf16.msra.mxu0 %v1536
    %2301 = vmatprep.subr.bf16.mxu0 %v1525
    %2302 = vmatpush1.bf16.msra.mxu0 %v1524
    %2303 = vmatprep.subr.bf16.mxu0 %v1513
    %2304 = vmatpush1.bf16.msra.mxu0 %v1512
    %2305 = vmatprep.subr.bf16.mxu0 %v1501
    %2306 = vmatpush1.bf16.msra.mxu0 %v1500
    %2307 = vmatprep.subr.bf16.mxu0 %v1489
    %2308 = vmatpush1.bf16.msra.mxu0 %v1488
    %2309 = vmatprep.subr.bf16.mxu0 %v1477
    %2310 = vmatpush1.bf16.msra.mxu0 %v1476
    %2311 = vmatprep.subr.bf16.mxu0 %v1465
    %2312 = vmatpush1.bf16.msra.mxu0 %v1464
    %2313 = vmatprep.subr.bf16.mxu0 %v1453
    %2314 = vmatpush1.bf16.msra.mxu0 %v1452
    %2315 = vmatprep.subr.bf16.mxu0 0
    %2316 = vmatpush2.bf16.msra.mxu0 0
    %2317 = vmatprep.subr.bf16.mxu0 0
    %2318 = vmatpush2.bf16.msra.mxu0 0
    %2319 = vmatprep.subr.bf16.mxu0 0
    %2320 = vmatpush2.bf16.msra.mxu0 0
    %2321 = vmatprep.subr.bf16.mxu0 0
    %2322 = vmatpush2.bf16.msra.mxu0 0
    %2323 = vmatprep.subr.bf16.mxu0 0
    %2324 = vmatpush2.bf16.msra.mxu0 0
    %2325 = vmatprep.subr.bf16.mxu0 0
    %2326 = vmatpush2.bf16.msra.mxu0 0
    %2327 = vmatprep.subr.bf16.mxu0 0
    %2328 = vmatpush2.bf16.msra.mxu0 0
    %2329 = vmatprep.subr.bf16.mxu0 0
    %2330 = vmatpush2.bf16.msra.mxu0 0
    %2331 = vmatprep.mubr.bf16.mxu0 0
    %2332 = vmatmul.mubr.bf16.gmra.mxu0 %v33
    %v2333 = vpop.f32.mrf.mxu0
    %v2334 = vadd.f32 %v2291, %v2333
    %v2335 = vpop.f32.mrf.mxu0
    %v2336 = vadd.f32 %v2293, %v2335
    %v2337 = vpop.f32.mrf.mxu0
    %v2338 = vadd.f32 %v2295, %v2337
    %v2339 = vpop.f32.mrf.mxu0
    %v2340 = vadd.f32 %v2297, %v2339
    %2341 = vdwg.mxu0
    %v2342 = vmax.f32 %v1904, 0.0
    %v2343 = vmax.f32 %v1906, 0.0
    %v2344 = vmax.f32 %v1990, 0.0
    %v2345 = vmax.f32 %v1992, 0.0
    %v2346 = vmax.f32 %v2076, 0.0
    %v2347 = vmax.f32 %v2078, 0.0
    %v2348 = vmax.f32 %v2162, 0.0
    %v2349 = vmax.f32 %v2164, 0.0
    %v2350 = vmax.f32 %v2248, 0.0
    %v2351 = vmax.f32 %v2250, 0.0
    %v2352 = vmax.f32 %v2334, 0.0
    %v2353 = vmax.f32 %v2336, 0.0
    %v2354 = vmax.f32 %v1908, 0.0
    %v2355 = vmax.f32 %v1910, 0.0
    %v2356 = vmax.f32 %v1994, 0.0
    %v2357 = vmax.f32 %v1996, 0.0
    %v2358 = vmax.f32 %v2080, 0.0
    %v2359 = vmax.f32 %v2082, 0.0
    %v2360 = vmax.f32 %v2166, 0.0
    %v2361 = vmax.f32 %v2168, 0.0
    %v2362 = vmax.f32 %v2252, 0.0
    %v2363 = vmax.f32 %v2254, 0.0
    %v2364 = vmax.f32 %v2338, 0.0
    %v2365 = vmax.f32 %v2340, 0.0
    %v2366 = vpack.c.bf16 %v2354, %v2342
    %v2367 = vpack.c.bf16 %v2355, %v2343
    %v2368 = vpack.c.bf16 %v2356, %v2344
    %v2369 = vpack.c.bf16 %v2357, %v2345
    %v2370 = vpack.c.bf16 %v2358, %v2346
    %v2371 = vpack.c.bf16 %v2359, %v2347
    %v2372 = vpack.c.bf16 %v2360, %v2348
    %v2373 = vpack.c.bf16 %v2361, %v2349
    %v2374 = vpack.c.bf16 %v2362, %v2350
    %v2375 = vpack.c.bf16 %v2363, %v2351
    %v2376 = vpack.c.bf16 %v2364, %v2352
    %v2377 = vpack.c.bf16 %v2365, %v2353
    %v2378 = vld [vmem:[%s4] sm:$0xff]
    %v2379 = vld [vmem:[%s4 + $0x8] sm:$0xf]
    %v2380 = vld [vmem:[%s4 + $0xc] sm:$0xff]
    %v2381 = vld [vmem:[%s4 + $0x14] sm:$0xf]
    %v2382 = vld [vmem:[%s4 + $0x18] sm:$0xff]
    %v2383 = vld [vmem:[%s4 + $0x20] sm:$0xf]
    %v2384 = vld [vmem:[%s4 + $0x24] sm:$0xff]
    %v2385 = vld [vmem:[%s4 + $0x2c] sm:$0xf]
    %v2386 = vld [vmem:[%s4 + $0x30] sm:$0xff]
    %v2387 = vld [vmem:[%s4 + $0x38] sm:$0xf]
    %v2388 = vld [vmem:[%s4 + $0x3c] sm:$0xff]
    %v2389 = vld [vmem:[%s4 + $0x44] sm:$0xf]
    %v2390 = vld [vmem:[%s4 + $0x48] sm:$0xff]
    %v2391 = vld [vmem:[%s4 + $0x50] sm:$0xf]
    %v2392 = vld [vmem:[%s4 + $0x54] sm:$0xff]
    %v2393 = vld [vmem:[%s4 + $0x5c] sm:$0xf]
    %v2394 = vld [vmem:[%s4 + $0x60] sm:$0xff]
    %v2395 = vld [vmem:[%s4 + $0x68] sm:$0xf]
    %v2396 = vld [vmem:[%s4 + $0x6c] sm:$0xff]
    %v2397 = vld [vmem:[%s4 + $0x74] sm:$0xf]
    %v2398 = vld [vmem:[%s4 + $0x78] sm:$0xff]
    %v2399 = vld [vmem:[%s4 + $0x80] sm:$0xf]
    %v2400 = vld [vmem:[%s4 + $0x84] sm:$0xff]
    %v2401 = vld [vmem:[%s4 + $0x8c] sm:$0xf]
    %v2402 = vld [vmem:[%s4 + $0x90] sm:$0xff]
    %v2403 = vld [vmem:[%s4 + $0x98] sm:$0xf]
    %v2404 = vld [vmem:[%s4 + $0x9c] sm:$0xff]
    %v2405 = vld [vmem:[%s4 + $0xa4] sm:$0xf]
    %v2406 = vld [vmem:[%s4 + $0xa8] sm:$0xff]
    %v2407 = vld [vmem:[%s4 + $0xb0] sm:$0xf]
    %v2408 = vld [vmem:[%s4 + $0xb4] sm:$0xff]
    %v2409 = vld [vmem:[%s4 + $0xbc] sm:$0xf]
    %v2410 = vld [vmem:[%s4 + $0xc0] sm:$0xff]
    %v2411 = vld [vmem:[%s4 + $0xc8] sm:$0xf]
    %v2412 = vld [vmem:[%s4 + $0xcc] sm:$0xff]
    %v2413 = vld [vmem:[%s4 + $0xd4] sm:$0xf]
    %v2414 = vld [vmem:[%s4 + $0xd8] sm:$0xff]
    %v2415 = vld [vmem:[%s4 + $0xe0] sm:$0xf]
    %v2416 = vld [vmem:[%s4 + $0xe4] sm:$0xff]
    %v2417 = vld [vmem:[%s4 + $0xec] sm:$0xf]
    %v2418 = vld [vmem:[%s4 + $0xf0] sm:$0xff]
    %v2419 = vld [vmem:[%s4 + $0xf8] sm:$0xf]
    %v2420 = vld [vmem:[%s4 + $0xfc] sm:$0xff]
    %v2421 = vld [vmem:[%s4 + $0x104] sm:$0xf]
    %v2422 = vld [vmem:[%s4 + $0x108] sm:$0xff]
    %v2423 = vld [vmem:[%s4 + $0x110] sm:$0xf]
    %v2424 = vld [vmem:[%s4 + $0x114] sm:$0xff]
    %v2425 = vld [vmem:[%s4 + $0x11c] sm:$0xf]
    %v2426 = vld [vmem:[%s4 + $0x120] sm:$0xff]
    %v2427 = vld [vmem:[%s4 + $0x128] sm:$0xf]
    %v2428 = vld [vmem:[%s4 + $0x12c] sm:$0xff]
    %v2429 = vld [vmem:[%s4 + $0x134] sm:$0xf]
    %v2430 = vld [vmem:[%s4 + $0x138] sm:$0xff]
    %v2431 = vld [vmem:[%s4 + $0x140] sm:$0xf]
    %v2432 = vld [vmem:[%s4 + $0x144] sm:$0xff]
    %v2433 = vld [vmem:[%s4 + $0x14c] sm:$0xf]
    %v2434 = vld [vmem:[%s4 + $0x150] sm:$0xff]
    %v2435 = vld [vmem:[%s4 + $0x158] sm:$0xf]
    %v2436 = vld [vmem:[%s4 + $0x15c] sm:$0xff]
    %v2437 = vld [vmem:[%s4 + $0x164] sm:$0xf]
    %v2438 = vld [vmem:[%s4 + $0x168] sm:$0xff]
    %v2439 = vld [vmem:[%s4 + $0x170] sm:$0xf]
    %v2440 = vld [vmem:[%s4 + $0x174] sm:$0xff]
    %v2441 = vld [vmem:[%s4 + $0x17c] sm:$0xf]
    %v2442 = vld [vmem:[%s4 + $0x180] sm:$0xff]
    %v2443 = vld [vmem:[%s4 + $0x188] sm:$0xf]
    %v2444 = vld [vmem:[%s4 + $0x18c] sm:$0xff]
    %v2445 = vld [vmem:[%s4 + $0x194] sm:$0xf]
    %v2446 = vld [vmem:[%s4 + $0x198] sm:$0xff]
    %v2447 = vld [vmem:[%s4 + $0x1a0] sm:$0xf]
    %v2448 = vld [vmem:[%s4 + $0x1a4] sm:$0xff]
    %v2449 = vld [vmem:[%s4 + $0x1ac] sm:$0xf]
    %v2450 = vld [vmem:[%s4 + $0x1b0] sm:$0xff]
    %v2451 = vld [vmem:[%s4 + $0x1b8] sm:$0xf]
    %v2452 = vld [vmem:[%s4 + $0x1bc] sm:$0xff]
    %v2453 = vld [vmem:[%s4 + $0x1c4] sm:$0xf]
    %v2454 = vld [vmem:[%s4 + $0x1c8] sm:$0xff]
    %v2455 = vld [vmem:[%s4 + $0x1d0] sm:$0xf]
    %v2456 = vld [vmem:[%s4 + $0x1d4] sm:$0xff]
    %v2457 = vld [vmem:[%s4 + $0x1dc] sm:$0xf]
    %v2458 = vld [vmem:[%s4 + $0x1e0] sm:$0xff]
    %v2459 = vld [vmem:[%s4 + $0x1e8] sm:$0xf]
    %v2460 = vld [vmem:[%s4 + $0x1ec] sm:$0xff]
    %v2461 = vld [vmem:[%s4 + $0x1f4] sm:$0xf]
    %v2462 = vld [vmem:[%s4 + $0x1f8] sm:$0xff]
    %v2463 = vld [vmem:[%s4 + $0x200] sm:$0xf]
    %v2464 = vld [vmem:[%s4 + $0x204] sm:$0xff]
    %v2465 = vld [vmem:[%s4 + $0x20c] sm:$0xf]
    %v2466 = vld [vmem:[%s4 + $0x210] sm:$0xff]
    %v2467 = vld [vmem:[%s4 + $0x218] sm:$0xf]
    %v2468 = vld [vmem:[%s4 + $0x21c] sm:$0xff]
    %v2469 = vld [vmem:[%s4 + $0x224] sm:$0xf]
    %v2470 = vld [vmem:[%s4 + $0x228] sm:$0xff]
    %v2471 = vld [vmem:[%s4 + $0x230] sm:$0xf]
    %v2472 = vld [vmem:[%s4 + $0x234] sm:$0xff]
    %v2473 = vld [vmem:[%s4 + $0x23c] sm:$0xf]
    %v2474 = vld [vmem:[%s4 + $0x240] sm:$0xff]
    %v2475 = vld [vmem:[%s4 + $0x248] sm:$0xf]
    %v2476 = vld [vmem:[%s4 + $0x24c] sm:$0xff]
    %v2477 = vld [vmem:[%s4 + $0x254] sm:$0xf]
    %v2478 = vld [vmem:[%s4 + $0x258] sm:$0xff]
    %v2479 = vld [vmem:[%s4 + $0x260] sm:$0xf]
    %v2480 = vld [vmem:[%s4 + $0x264] sm:$0xff]
    %v2481 = vld [vmem:[%s4 + $0x26c] sm:$0xf]
    %v2482 = vld [vmem:[%s4 + $0x270] sm:$0xff]
    %v2483 = vld [vmem:[%s4 + $0x278] sm:$0xf]
    %v2484 = vld [vmem:[%s4 + $0x27c] sm:$0xff]
    %v2485 = vld [vmem:[%s4 + $0x284] sm:$0xf]
    %v2486 = vld [vmem:[%s4 + $0x288] sm:$0xff]
    %v2487 = vld [vmem:[%s4 + $0x290] sm:$0xf]
    %v2488 = vld [vmem:[%s4 + $0x294] sm:$0xff]
    %v2489 = vld [vmem:[%s4 + $0x29c] sm:$0xf]
    %v2490 = vld [vmem:[%s4 + $0x2a0] sm:$0xff]
    %v2491 = vld [vmem:[%s4 + $0x2a8] sm:$0xf]
    %v2492 = vld [vmem:[%s4 + $0x2ac] sm:$0xff]
    %v2493 = vld [vmem:[%s4 + $0x2b4] sm:$0xf]
    %v2494 = vld [vmem:[%s4 + $0x2b8] sm:$0xff]
    %v2495 = vld [vmem:[%s4 + $0x2c0] sm:$0xf]
    %v2496 = vld [vmem:[%s4 + $0x2c4] sm:$0xff]
    %v2497 = vld [vmem:[%s4 + $0x2cc] sm:$0xf]
    %v2498 = vld [vmem:[%s4 + $0x2d0] sm:$0xff]
    %v2499 = vld [vmem:[%s4 + $0x2d8] sm:$0xf]
    %v2500 = vld [vmem:[%s4 + $0x2dc] sm:$0xff]
    %v2501 = vld [vmem:[%s4 + $0x2e4] sm:$0xf]
    %v2502 = vld [vmem:[%s4 + $0x2e8] sm:$0xff]
    %v2503 = vld [vmem:[%s4 + $0x2f0] sm:$0xf]
    %v2504 = vld [vmem:[%s4 + $0x2f4] sm:$0xff]
    %v2505 = vld [vmem:[%s4 + $0x2fc] sm:$0xf]
    %v2506 = vld [vmem:[%s4 + $0x300] sm:$0xff]
    %v2507 = vld [vmem:[%s4 + $0x308] sm:$0xf]
    %v2508 = vld [vmem:[%s4 + $0x30c] sm:$0xff]
    %v2509 = vld [vmem:[%s4 + $0x314] sm:$0xf]
    %v2510 = vld [vmem:[%s4 + $0x318] sm:$0xff]
    %v2511 = vld [vmem:[%s4 + $0x320] sm:$0xf]
    %v2512 = vld [vmem:[%s4 + $0x324] sm:$0xff]
    %v2513 = vld [vmem:[%s4 + $0x32c] sm:$0xf]
    %v2514 = vld [vmem:[%s4 + $0x330] sm:$0xff]
    %v2515 = vld [vmem:[%s4 + $0x338] sm:$0xf]
    %v2516 = vld [vmem:[%s4 + $0x33c] sm:$0xff]
    %v2517 = vld [vmem:[%s4 + $0x344] sm:$0xf]
    %v2518 = vld [vmem:[%s4 + $0x348] sm:$0xff]
    %v2519 = vld [vmem:[%s4 + $0x350] sm:$0xf]
    %v2520 = vld [vmem:[%s4 + $0x354] sm:$0xff]
    %v2521 = vld [vmem:[%s4 + $0x35c] sm:$0xf]
    %v2522 = vld [vmem:[%s4 + $0x360] sm:$0xff]
    %v2523 = vld [vmem:[%s4 + $0x368] sm:$0xf]
    %v2524 = vld [vmem:[%s4 + $0x36c] sm:$0xff]
    %v2525 = vld [vmem:[%s4 + $0x374] sm:$0xf]
    %v2526 = vld [vmem:[%s4 + $0x378] sm:$0xff]
    %v2527 = vld [vmem:[%s4 + $0x380] sm:$0xf]
    %v2528 = vld [vmem:[%s4 + $0x384] sm:$0xff]
    %v2529 = vld [vmem:[%s4 + $0x38c] sm:$0xf]
    %v2530 = vld [vmem:[%s4 + $0x390] sm:$0xff]
    %v2531 = vld [vmem:[%s4 + $0x398] sm:$0xf]
    %v2532 = vld [vmem:[%s4 + $0x39c] sm:$0xff]
    %v2533 = vld [vmem:[%s4 + $0x3a4] sm:$0xf]
    %v2534 = vld [vmem:[%s4 + $0x3a8] sm:$0xff]
    %v2535 = vld [vmem:[%s4 + $0x3b0] sm:$0xf]
    %v2536 = vld [vmem:[%s4 + $0x3b4] sm:$0xff]
    %v2537 = vld [vmem:[%s4 + $0x3bc] sm:$0xf]
    %v2538 = vld [vmem:[%s4 + $0x3c0] sm:$0xff]
    %v2539 = vld [vmem:[%s4 + $0x3c8] sm:$0xf]
    %v2540 = vld [vmem:[%s4 + $0x3cc] sm:$0xff]
    %v2541 = vld [vmem:[%s4 + $0x3d4] sm:$0xf]
    %v2542 = vld [vmem:[%s4 + $0x3d8] sm:$0xff]
    %v2543 = vld [vmem:[%s4 + $0x3e0] sm:$0xf]
    %v2544 = vld [vmem:[%s4 + $0x3e4] sm:$0xff]
    %v2545 = vld [vmem:[%s4 + $0x3ec] sm:$0xf]
    %v2546 = vld [vmem:[%s4 + $0x3f0] sm:$0xff]
    %v2547 = vld [vmem:[%s4 + $0x3f8] sm:$0xf]
    %v2548 = vld [vmem:[%s4 + $0x3fc] sm:$0xff]
    %v2549 = vld [vmem:[%s4 + $0x404] sm:$0xf]
    %v2550 = vld [vmem:[%s4 + $0x408] sm:$0xff]
    %v2551 = vld [vmem:[%s4 + $0x410] sm:$0xf]
    %v2552 = vld [vmem:[%s4 + $0x414] sm:$0xff]
    %v2553 = vld [vmem:[%s4 + $0x41c] sm:$0xf]
    %v2554 = vld [vmem:[%s4 + $0x420] sm:$0xff]
    %v2555 = vld [vmem:[%s4 + $0x428] sm:$0xf]
    %v2556 = vld [vmem:[%s4 + $0x42c] sm:$0xff]
    %v2557 = vld [vmem:[%s4 + $0x434] sm:$0xf]
    %v2558 = vld [vmem:[%s4 + $0x438] sm:$0xff]
    %v2559 = vld [vmem:[%s4 + $0x440] sm:$0xf]
    %v2560 = vld [vmem:[%s4 + $0x444] sm:$0xff]
    %v2561 = vld [vmem:[%s4 + $0x44c] sm:$0xf]
    %v2562 = vld [vmem:[%s4 + $0x450] sm:$0xff]
    %v2563 = vld [vmem:[%s4 + $0x458] sm:$0xf]
    %v2564 = vld [vmem:[%s4 + $0x45c] sm:$0xff]
    %v2565 = vld [vmem:[%s4 + $0x464] sm:$0xf]
    %v2566 = vld [vmem:[%s4 + $0x468] sm:$0xff]
    %v2567 = vld [vmem:[%s4 + $0x470] sm:$0xf]
    %v2568 = vld [vmem:[%s4 + $0x474] sm:$0xff]
    %v2569 = vld [vmem:[%s4 + $0x47c] sm:$0xf]
    %v2570 = vld [vmem:[%s4 + $0x480] sm:$0xff]
    %v2571 = vld [vmem:[%s4 + $0x488] sm:$0xf]
    %v2572 = vld [vmem:[%s4 + $0x48c] sm:$0xff]
    %v2573 = vld [vmem:[%s4 + $0x494] sm:$0xf]
    %v2574 = vld [vmem:[%s4 + $0x498] sm:$0xff]
    %v2575 = vld [vmem:[%s4 + $0x4a0] sm:$0xf]
    %v2576 = vld [vmem:[%s4 + $0x4a4] sm:$0xff]
    %v2577 = vld [vmem:[%s4 + $0x4ac] sm:$0xf]
    %v2578 = vld [vmem:[%s4 + $0x4b0] sm:$0xff]
    %v2579 = vld [vmem:[%s4 + $0x4b8] sm:$0xf]
    %v2580 = vld [vmem:[%s4 + $0x4bc] sm:$0xff]
    %v2581 = vld [vmem:[%s4 + $0x4c4] sm:$0xf]
    %v2582 = vld [vmem:[%s4 + $0x4c8] sm:$0xff]
    %v2583 = vld [vmem:[%s4 + $0x4d0] sm:$0xf]
    %v2584 = vld [vmem:[%s4 + $0x4d4] sm:$0xff]
    %v2585 = vld [vmem:[%s4 + $0x4dc] sm:$0xf]
    %v2586 = vld [vmem:[%s4 + $0x4e0] sm:$0xff]
    %v2587 = vld [vmem:[%s4 + $0x4e8] sm:$0xf]
    %v2588 = vld [vmem:[%s4 + $0x4ec] sm:$0xff]
    %v2589 = vld [vmem:[%s4 + $0x4f4] sm:$0xf]
    %v2590 = vld [vmem:[%s4 + $0x4f8] sm:$0xff]
    %v2591 = vld [vmem:[%s4 + $0x500] sm:$0xf]
    %v2592 = vld [vmem:[%s4 + $0x504] sm:$0xff]
    %v2593 = vld [vmem:[%s4 + $0x50c] sm:$0xf]
    %v2594 = vld [vmem:[%s4 + $0x510] sm:$0xff]
    %v2595 = vld [vmem:[%s4 + $0x518] sm:$0xf]
    %v2596 = vld [vmem:[%s4 + $0x51c] sm:$0xff]
    %v2597 = vld [vmem:[%s4 + $0x524] sm:$0xf]
    %v2598 = vld [vmem:[%s4 + $0x528] sm:$0xff]
    %v2599 = vld [vmem:[%s4 + $0x530] sm:$0xf]
    %v2600 = vld [vmem:[%s4 + $0x534] sm:$0xff]
    %v2601 = vld [vmem:[%s4 + $0x53c] sm:$0xf]
    %v2602 = vld [vmem:[%s4 + $0x540] sm:$0xff]
    %v2603 = vld [vmem:[%s4 + $0x548] sm:$0xf]
    %v2604 = vld [vmem:[%s4 + $0x54c] sm:$0xff]
    %v2605 = vld [vmem:[%s4 + $0x554] sm:$0xf]
    %v2606 = vld [vmem:[%s4 + $0x558] sm:$0xff]
    %v2607 = vld [vmem:[%s4 + $0x560] sm:$0xf]
    %v2608 = vld [vmem:[%s4 + $0x564] sm:$0xff]
    %v2609 = vld [vmem:[%s4 + $0x56c] sm:$0xf]
    %v2610 = vld [vmem:[%s4 + $0x570] sm:$0xff]
    %v2611 = vld [vmem:[%s4 + $0x578] sm:$0xf]
    %v2612 = vld [vmem:[%s4 + $0x57c] sm:$0xff]
    %v2613 = vld [vmem:[%s4 + $0x584] sm:$0xf]
    %v2614 = vld [vmem:[%s4 + $0x588] sm:$0xff]
    %v2615 = vld [vmem:[%s4 + $0x590] sm:$0xf]
    %v2616 = vld [vmem:[%s4 + $0x594] sm:$0xff]
    %v2617 = vld [vmem:[%s4 + $0x59c] sm:$0xf]
    %v2618 = vld [vmem:[%s4 + $0x5a0] sm:$0xff]
    %v2619 = vld [vmem:[%s4 + $0x5a8] sm:$0xf]
    %v2620 = vld [vmem:[%s4 + $0x5ac] sm:$0xff]
    %v2621 = vld [vmem:[%s4 + $0x5b4] sm:$0xf]
    %v2622 = vld [vmem:[%s4 + $0x5b8] sm:$0xff]
    %v2623 = vld [vmem:[%s4 + $0x5c0] sm:$0xf]
    %v2624 = vld [vmem:[%s4 + $0x5c4] sm:$0xff]
    %v2625 = vld [vmem:[%s4 + $0x5cc] sm:$0xf]
    %v2626 = vld [vmem:[%s4 + $0x5d0] sm:$0xff]
    %v2627 = vld [vmem:[%s4 + $0x5d8] sm:$0xf]
    %v2628 = vld [vmem:[%s4 + $0x5dc] sm:$0xff]
    %v2629 = vld [vmem:[%s4 + $0x5e4] sm:$0xf]
    %v2630 = vld [vmem:[%s4 + $0x5e8] sm:$0xff]
    %v2631 = vld [vmem:[%s4 + $0x5f0] sm:$0xf]
    %v2632 = vld [vmem:[%s4 + $0x5f4] sm:$0xff]
    %v2633 = vld [vmem:[%s4 + $0x5fc] sm:$0xf]
    %v2634 = vld [vmem:[%s4 + $0x600] sm:$0xff]
    %v2635 = vld [vmem:[%s4 + $0x608] sm:$0xf]
    %v2636 = vld [vmem:[%s4 + $0x60c] sm:$0xff]
    %v2637 = vld [vmem:[%s4 + $0x614] sm:$0xf]
    %v2638 = vld [vmem:[%s4 + $0x618] sm:$0xff]
    %v2639 = vld [vmem:[%s4 + $0x620] sm:$0xf]
    %v2640 = vld [vmem:[%s4 + $0x624] sm:$0xff]
    %v2641 = vld [vmem:[%s4 + $0x62c] sm:$0xf]
    %v2642 = vld [vmem:[%s4 + $0x630] sm:$0xff]
    %v2643 = vld [vmem:[%s4 + $0x638] sm:$0xf]
    %v2644 = vld [vmem:[%s4 + $0x63c] sm:$0xff]
    %v2645 = vld [vmem:[%s4 + $0x644] sm:$0xf]
    %v2646 = vld [vmem:[%s4 + $0x648] sm:$0xff]
    %v2647 = vld [vmem:[%s4 + $0x650] sm:$0xf]
    %v2648 = vld [vmem:[%s4 + $0x654] sm:$0xff]
    %v2649 = vld [vmem:[%s4 + $0x65c] sm:$0xf]
    %v2650 = vld [vmem:[%s4 + $0x660] sm:$0xff]
    %v2651 = vld [vmem:[%s4 + $0x668] sm:$0xf]
    %v2652 = vld [vmem:[%s4 + $0x66c] sm:$0xff]
    %v2653 = vld [vmem:[%s4 + $0x674] sm:$0xf]
    %v2654 = vld [vmem:[%s4 + $0x678] sm:$0xff]
    %v2655 = vld [vmem:[%s4 + $0x680] sm:$0xf]
    %v2656 = vld [vmem:[%s4 + $0x684] sm:$0xff]
    %v2657 = vld [vmem:[%s4 + $0x68c] sm:$0xf]
    %v2658 = vld [vmem:[%s4 + $0x690] sm:$0xff]
    %v2659 = vld [vmem:[%s4 + $0x698] sm:$0xf]
    %v2660 = vld [vmem:[%s4 + $0x69c] sm:$0xff]
    %v2661 = vld [vmem:[%s4 + $0x6a4] sm:$0xf]
    %v2662 = vld [vmem:[%s4 + $0x6a8] sm:$0xff]
    %v2663 = vld [vmem:[%s4 + $0x6b0] sm:$0xf]
    %v2664 = vld [vmem:[%s4 + $0x6b4] sm:$0xff]
    %v2665 = vld [vmem:[%s4 + $0x6bc] sm:$0xf]
    %v2666 = vld [vmem:[%s4 + $0x6c0] sm:$0xff]
    %v2667 = vld [vmem:[%s4 + $0x6c8] sm:$0xf]
    %v2668 = vld [vmem:[%s4 + $0x6cc] sm:$0xff]
    %v2669 = vld [vmem:[%s4 + $0x6d4] sm:$0xf]
    %v2670 = vld [vmem:[%s4 + $0x6d8] sm:$0xff]
    %v2671 = vld [vmem:[%s4 + $0x6e0] sm:$0xf]
    %v2672 = vld [vmem:[%s4 + $0x6e4] sm:$0xff]
    %v2673 = vld [vmem:[%s4 + $0x6ec] sm:$0xf]
    %v2674 = vld [vmem:[%s4 + $0x6f0] sm:$0xff]
    %v2675 = vld [vmem:[%s4 + $0x6f8] sm:$0xf]
    %v2676 = vld [vmem:[%s4 + $0x6fc] sm:$0xff]
    %v2677 = vld [vmem:[%s4 + $0x704] sm:$0xf]
    %v2678 = vld [vmem:[%s4 + $0x708] sm:$0xff]
    %v2679 = vld [vmem:[%s4 + $0x710] sm:$0xf]
    %v2680 = vld [vmem:[%s4 + $0x714] sm:$0xff]
    %v2681 = vld [vmem:[%s4 + $0x71c] sm:$0xf]
    %v2682 = vld [vmem:[%s4 + $0x720] sm:$0xff]
    %v2683 = vld [vmem:[%s4 + $0x728] sm:$0xf]
    %v2684 = vld [vmem:[%s4 + $0x72c] sm:$0xff]
    %v2685 = vld [vmem:[%s4 + $0x734] sm:$0xf]
    %v2686 = vld [vmem:[%s4 + $0x738] sm:$0xff]
    %v2687 = vld [vmem:[%s4 + $0x740] sm:$0xf]
    %v2688 = vld [vmem:[%s4 + $0x744] sm:$0xff]
    %v2689 = vld [vmem:[%s4 + $0x74c] sm:$0xf]
    %v2690 = vld [vmem:[%s4 + $0x750] sm:$0xff]
    %v2691 = vld [vmem:[%s4 + $0x758] sm:$0xf]
    %v2692 = vld [vmem:[%s4 + $0x75c] sm:$0xff]
    %v2693 = vld [vmem:[%s4 + $0x764] sm:$0xf]
    %v2694 = vld [vmem:[%s4 + $0x768] sm:$0xff]
    %v2695 = vld [vmem:[%s4 + $0x770] sm:$0xf]
    %v2696 = vld [vmem:[%s4 + $0x774] sm:$0xff]
    %v2697 = vld [vmem:[%s4 + $0x77c] sm:$0xf]
    %v2698 = vld [vmem:[%s4 + $0x780] sm:$0xff]
    %v2699 = vld [vmem:[%s4 + $0x788] sm:$0xf]
    %v2700 = vld [vmem:[%s4 + $0x78c] sm:$0xff]
    %v2701 = vld [vmem:[%s4 + $0x794] sm:$0xf]
    %v2702 = vld [vmem:[%s4 + $0x798] sm:$0xff]
    %v2703 = vld [vmem:[%s4 + $0x7a0] sm:$0xf]
    %v2704 = vld [vmem:[%s4 + $0x7a4] sm:$0xff]
    %v2705 = vld [vmem:[%s4 + $0x7ac] sm:$0xf]
    %v2706 = vld [vmem:[%s4 + $0x7b0] sm:$0xff]
    %v2707 = vld [vmem:[%s4 + $0x7b8] sm:$0xf]
    %v2708 = vld [vmem:[%s4 + $0x7bc] sm:$0xff]
    %v2709 = vld [vmem:[%s4 + $0x7c4] sm:$0xf]
    %v2710 = vld [vmem:[%s4 + $0x7c8] sm:$0xff]
    %v2711 = vld [vmem:[%s4 + $0x7d0] sm:$0xf]
    %v2712 = vld [vmem:[%s4 + $0x7d4] sm:$0xff]
    %v2713 = vld [vmem:[%s4 + $0x7dc] sm:$0xf]
    %v2714 = vld [vmem:[%s4 + $0x7e0] sm:$0xff]
    %v2715 = vld [vmem:[%s4 + $0x7e8] sm:$0xf]
    %v2716 = vld [vmem:[%s4 + $0x7ec] sm:$0xff]
    %v2717 = vld [vmem:[%s4 + $0x7f4] sm:$0xf]
    %v2718 = vld [vmem:[%s4 + $0x7f8] sm:$0xff]
    %v2719 = vld [vmem:[%s4 + $0x800] sm:$0xf]
    %v2720 = vld [vmem:[%s4 + $0x804] sm:$0xff]
    %v2721 = vld [vmem:[%s4 + $0x80c] sm:$0xf]
    %v2722 = vld [vmem:[%s4 + $0x810] sm:$0xff]
    %v2723 = vld [vmem:[%s4 + $0x818] sm:$0xf]
    %v2724 = vld [vmem:[%s4 + $0x81c] sm:$0xff]
    %v2725 = vld [vmem:[%s4 + $0x824] sm:$0xf]
    %v2726 = vld [vmem:[%s4 + $0x828] sm:$0xff]
    %v2727 = vld [vmem:[%s4 + $0x830] sm:$0xf]
    %v2728 = vld [vmem:[%s4 + $0x834] sm:$0xff]
    %v2729 = vld [vmem:[%s4 + $0x83c] sm:$0xf]
    %v2730 = vld [vmem:[%s4 + $0x840] sm:$0xff]
    %v2731 = vld [vmem:[%s4 + $0x848] sm:$0xf]
    %v2732 = vld [vmem:[%s4 + $0x84c] sm:$0xff]
    %v2733 = vld [vmem:[%s4 + $0x854] sm:$0xf]
    %v2734 = vld [vmem:[%s4 + $0x858] sm:$0xff]
    %v2735 = vld [vmem:[%s4 + $0x860] sm:$0xf]
    %v2736 = vld [vmem:[%s4 + $0x864] sm:$0xff]
    %v2737 = vld [vmem:[%s4 + $0x86c] sm:$0xf]
    %v2738 = vld [vmem:[%s4 + $0x870] sm:$0xff]
    %v2739 = vld [vmem:[%s4 + $0x878] sm:$0xf]
    %v2740 = vld [vmem:[%s4 + $0x87c] sm:$0xff]
    %v2741 = vld [vmem:[%s4 + $0x884] sm:$0xf]
    %v2742 = vld [vmem:[%s4 + $0x888] sm:$0xff]
    %v2743 = vld [vmem:[%s4 + $0x890] sm:$0xf]
    %v2744 = vld [vmem:[%s4 + $0x894] sm:$0xff]
    %v2745 = vld [vmem:[%s4 + $0x89c] sm:$0xf]
    %v2746 = vld [vmem:[%s4 + $0x8a0] sm:$0xff]
    %v2747 = vld [vmem:[%s4 + $0x8a8] sm:$0xf]
    %v2748 = vld [vmem:[%s4 + $0x8ac] sm:$0xff]
    %v2749 = vld [vmem:[%s4 + $0x8b4] sm:$0xf]
    %v2750 = vld [vmem:[%s4 + $0x8b8] sm:$0xff]
    %v2751 = vld [vmem:[%s4 + $0x8c0] sm:$0xf]
    %v2752 = vld [vmem:[%s4 + $0x8c4] sm:$0xff]
    %v2753 = vld [vmem:[%s4 + $0x8cc] sm:$0xf]
    %v2754 = vld [vmem:[%s4 + $0x8d0] sm:$0xff]
    %v2755 = vld [vmem:[%s4 + $0x8d8] sm:$0xf]
    %v2756 = vld [vmem:[%s4 + $0x8dc] sm:$0xff]
    %v2757 = vld [vmem:[%s4 + $0x8e4] sm:$0xf]
    %v2758 = vld [vmem:[%s4 + $0x8e8] sm:$0xff]
    %v2759 = vld [vmem:[%s4 + $0x8f0] sm:$0xf]
    %v2760 = vld [vmem:[%s4 + $0x8f4] sm:$0xff]
    %v2761 = vld [vmem:[%s4 + $0x8fc] sm:$0xf]
    %v2762 = vld [vmem:[%s5] sm:$0x7]
    %v2764 = vlaneseq
    %v2765 = vshrl.u32 %v2764, 7
    %v2766 = vsub.s32 0, %v2765
    %v2767 = vrot.slane %v2762, %v2766
    %v2768 = vlaneseq
    %v2769 = vshrl.u32 %v2768, 7
    %v2770 = vsub.s32 1, %v2769
    %v2771 = vrot.slane %v2762, %v2770
    %v2772 = vlaneseq
    %v2773 = vshrl.u32 %v2772, 7
    %v2774 = vsub.s32 2, %v2773
    %v2775 = vrot.slane %v2762, %v2774
    %v3163 = vunpack.c.l.b16 %v2378
    %v3164 = vunpack.c.h.b16 %v2378
    %v3165 = vunpack.c.l.b16 %v2379
    %v3166 = vunpack.c.l.b16 %v2380
    %v3167 = vunpack.c.h.b16 %v2380
    %v3168 = vunpack.c.l.b16 %v2381
    %v3169 = vunpack.c.l.b16 %v2382
    %v3170 = vunpack.c.h.b16 %v2382
    %v3171 = vunpack.c.l.b16 %v2383
    %v3172 = vunpack.c.l.b16 %v2384
    %v3173 = vunpack.c.h.b16 %v2384
    %v3174 = vunpack.c.l.b16 %v2385
    %v3175 = vunpack.c.l.b16 %v2386
    %v3176 = vunpack.c.h.b16 %v2386
    %v3177 = vunpack.c.l.b16 %v2387
    %v3178 = vunpack.c.l.b16 %v2388
    %v3179 = vunpack.c.h.b16 %v2388
    %v3180 = vunpack.c.l.b16 %v2389
    %v3181 = vunpack.c.l.b16 %v2390
    %v3182 = vunpack.c.h.b16 %v2390
    %v3183 = vunpack.c.l.b16 %v2391
    %v3184 = vunpack.c.l.b16 %v2392
    %v3185 = vunpack.c.h.b16 %v2392
    %v3186 = vunpack.c.l.b16 %v2393
    %v3187 = vunpack.c.l.b16 %v2394
    %v3188 = vunpack.c.h.b16 %v2394
    %v3189 = vunpack.c.l.b16 %v2395
    %v3190 = vunpack.c.l.b16 %v2396
    %v3191 = vunpack.c.h.b16 %v2396
    %v3192 = vunpack.c.l.b16 %v2397
    %v3193 = vunpack.c.l.b16 %v2398
    %v3194 = vunpack.c.h.b16 %v2398
    %v3195 = vunpack.c.l.b16 %v2399
    %v3196 = vunpack.c.l.b16 %v2400
    %v3197 = vunpack.c.h.b16 %v2400
    %v3198 = vunpack.c.l.b16 %v2401
    %v3199 = vunpack.c.l.b16 %v2402
    %v3200 = vunpack.c.h.b16 %v2402
    %v3201 = vunpack.c.l.b16 %v2403
    %v3202 = vunpack.c.l.b16 %v2404
    %v3203 = vunpack.c.h.b16 %v2404
    %v3204 = vunpack.c.l.b16 %v2405
    %v3205 = vunpack.c.l.b16 %v2406
    %v3206 = vunpack.c.h.b16 %v2406
    %v3207 = vunpack.c.l.b16 %v2407
    %v3208 = vunpack.c.l.b16 %v2408
    %v3209 = vunpack.c.h.b16 %v2408
    %v3210 = vunpack.c.l.b16 %v2409
    %v3211 = vunpack.c.l.b16 %v2410
    %v3212 = vunpack.c.h.b16 %v2410
    %v3213 = vunpack.c.l.b16 %v2411
    %v3214 = vunpack.c.l.b16 %v2412
    %v3215 = vunpack.c.h.b16 %v2412
    %v3216 = vunpack.c.l.b16 %v2413
    %v3217 = vunpack.c.l.b16 %v2414
    %v3218 = vunpack.c.h.b16 %v2414
    %v3219 = vunpack.c.l.b16 %v2415
    %v3220 = vunpack.c.l.b16 %v2416
    %v3221 = vunpack.c.h.b16 %v2416
    %v3222 = vunpack.c.l.b16 %v2417
    %v3223 = vunpack.c.l.b16 %v2418
    %v3224 = vunpack.c.h.b16 %v2418
    %v3225 = vunpack.c.l.b16 %v2419
    %v3226 = vunpack.c.l.b16 %v2420
    %v3227 = vunpack.c.h.b16 %v2420
    %v3228 = vunpack.c.l.b16 %v2421
    %v3229 = vunpack.c.l.b16 %v2422
    %v3230 = vunpack.c.h.b16 %v2422
    %v3231 = vunpack.c.l.b16 %v2423
    %v3232 = vunpack.c.l.b16 %v2424
    %v3233 = vunpack.c.h.b16 %v2424
    %v3234 = vunpack.c.l.b16 %v2425
    %v3235 = vunpack.c.l.b16 %v2426
    %v3236 = vunpack.c.h.b16 %v2426
    %v3237 = vunpack.c.l.b16 %v2427
    %v3238 = vunpack.c.l.b16 %v2428
    %v3239 = vunpack.c.h.b16 %v2428
    %v3240 = vunpack.c.l.b16 %v2429
    %v3241 = vunpack.c.l.b16 %v2430
    %v3242 = vunpack.c.h.b16 %v2430
    %v3243 = vunpack.c.l.b16 %v2431
    %v3244 = vunpack.c.l.b16 %v2432
    %v3245 = vunpack.c.h.b16 %v2432
    %v3246 = vunpack.c.l.b16 %v2433
    %v3247 = vunpack.c.l.b16 %v2434
    %v3248 = vunpack.c.h.b16 %v2434
    %v3249 = vunpack.c.l.b16 %v2435
    %v3250 = vunpack.c.l.b16 %v2436
    %v3251 = vunpack.c.h.b16 %v2436
    %v3252 = vunpack.c.l.b16 %v2437
    %v3253 = vunpack.c.l.b16 %v2438
    %v3254 = vunpack.c.h.b16 %v2438
    %v3255 = vunpack.c.l.b16 %v2439
    %v3256 = vunpack.c.l.b16 %v2440
    %v3257 = vunpack.c.h.b16 %v2440
    %v3258 = vunpack.c.l.b16 %v2441
    %v3259 = vunpack.c.l.b16 %v2442
    %v3260 = vunpack.c.h.b16 %v2442
    %v3261 = vunpack.c.l.b16 %v2443
    %v3262 = vunpack.c.l.b16 %v2444
    %v3263 = vunpack.c.h.b16 %v2444
    %v3264 = vunpack.c.l.b16 %v2445
    %v3265 = vunpack.c.l.b16 %v2446
    %v3266 = vunpack.c.h.b16 %v2446
    %v3267 = vunpack.c.l.b16 %v2447
    %v3268 = vunpack.c.l.b16 %v2448
    %v3269 = vunpack.c.h.b16 %v2448
    %v3270 = vunpack.c.l.b16 %v2449
    %v3271 = vunpack.c.l.b16 %v2450
    %v3272 = vunpack.c.h.b16 %v2450
    %v3273 = vunpack.c.l.b16 %v2451
    %v3274 = vunpack.c.l.b16 %v2452
    %v3275 = vunpack.c.h.b16 %v2452
    %v3276 = vunpack.c.l.b16 %v2453
    %v3277 = vunpack.c.l.b16 %v2454
    %v3278 = vunpack.c.h.b16 %v2454
    %v3279 = vunpack.c.l.b16 %v2455
    %v3280 = vunpack.c.l.b16 %v2456
    %v3281 = vunpack.c.h.b16 %v2456
    %v3282 = vunpack.c.l.b16 %v2457
    %v3283 = vunpack.c.l.b16 %v2458
    %v3284 = vunpack.c.h.b16 %v2458
    %v3285 = vunpack.c.l.b16 %v2459
    %v3286 = vunpack.c.l.b16 %v2460
    %v3287 = vunpack.c.h.b16 %v2460
    %v3288 = vunpack.c.l.b16 %v2461
    %v3289 = vunpack.c.l.b16 %v2462
    %v3290 = vunpack.c.h.b16 %v2462
    %v3291 = vunpack.c.l.b16 %v2463
    %v3292 = vunpack.c.l.b16 %v2464
    %v3293 = vunpack.c.h.b16 %v2464
    %v3294 = vunpack.c.l.b16 %v2465
    %v3295 = vunpack.c.l.b16 %v2466
    %v3296 = vunpack.c.h.b16 %v2466
    %v3297 = vunpack.c.l.b16 %v2467
    %v3298 = vunpack.c.l.b16 %v2468
    %v3299 = vunpack.c.h.b16 %v2468
    %v3300 = vunpack.c.l.b16 %v2469
    %v3301 = vunpack.c.l.b16 %v2470
    %v3302 = vunpack.c.h.b16 %v2470
    %v3303 = vunpack.c.l.b16 %v2471
    %v3304 = vunpack.c.l.b16 %v2472
    %v3305 = vunpack.c.h.b16 %v2472
    %v3306 = vunpack.c.l.b16 %v2473
    %v3307 = vunpack.c.l.b16 %v2474
    %v3308 = vunpack.c.h.b16 %v2474
    %v3309 = vunpack.c.l.b16 %v2475
    %v3310 = vunpack.c.l.b16 %v2476
    %v3311 = vunpack.c.h.b16 %v2476
    %v3312 = vunpack.c.l.b16 %v2477
    %v3313 = vunpack.c.l.b16 %v2478
    %v3314 = vunpack.c.h.b16 %v2478
    %v3315 = vunpack.c.l.b16 %v2479
    %v3316 = vunpack.c.l.b16 %v2480
    %v3317 = vunpack.c.h.b16 %v2480
    %v3318 = vunpack.c.l.b16 %v2481
    %v3319 = vunpack.c.l.b16 %v2482
    %v3320 = vunpack.c.h.b16 %v2482
    %v3321 = vunpack.c.l.b16 %v2483
    %v3322 = vunpack.c.l.b16 %v2484
    %v3323 = vunpack.c.h.b16 %v2484
    %v3324 = vunpack.c.l.b16 %v2485
    %v3325 = vunpack.c.l.b16 %v2486
    %v3326 = vunpack.c.h.b16 %v2486
    %v3327 = vunpack.c.l.b16 %v2487
    %v3328 = vunpack.c.l.b16 %v2488
    %v3329 = vunpack.c.h.b16 %v2488
    %v3330 = vunpack.c.l.b16 %v2489
    %v3331 = vunpack.c.l.b16 %v2490
    %v3332 = vunpack.c.h.b16 %v2490
    %v3333 = vunpack.c.l.b16 %v2491
    %v3334 = vunpack.c.l.b16 %v2492
    %v3335 = vunpack.c.h.b16 %v2492
    %v3336 = vunpack.c.l.b16 %v2493
    %v3337 = vunpack.c.l.b16 %v2494
    %v3338 = vunpack.c.h.b16 %v2494
    %v3339 = vunpack.c.l.b16 %v2495
    %v3340 = vunpack.c.l.b16 %v2496
    %v3341 = vunpack.c.h.b16 %v2496
    %v3342 = vunpack.c.l.b16 %v2497
    %v3343 = vunpack.c.l.b16 %v2498
    %v3344 = vunpack.c.h.b16 %v2498
    %v3345 = vunpack.c.l.b16 %v2499
    %v3346 = vunpack.c.l.b16 %v2500
    %v3347 = vunpack.c.h.b16 %v2500
    %v3348 = vunpack.c.l.b16 %v2501
    %v3349 = vunpack.c.l.b16 %v2502
    %v3350 = vunpack.c.h.b16 %v2502
    %v3351 = vunpack.c.l.b16 %v2503
    %v3352 = vunpack.c.l.b16 %v2504
    %v3353 = vunpack.c.h.b16 %v2504
    %v3354 = vunpack.c.l.b16 %v2505
    %v3355 = vunpack.c.l.b16 %v2506
    %v3356 = vunpack.c.h.b16 %v2506
    %v3357 = vunpack.c.l.b16 %v2507
    %v3358 = vunpack.c.l.b16 %v2508
    %v3359 = vunpack.c.h.b16 %v2508
    %v3360 = vunpack.c.l.b16 %v2509
    %v3361 = vunpack.c.l.b16 %v2510
    %v3362 = vunpack.c.h.b16 %v2510
    %v3363 = vunpack.c.l.b16 %v2511
    %v3364 = vunpack.c.l.b16 %v2512
    %v3365 = vunpack.c.h.b16 %v2512
    %v3366 = vunpack.c.l.b16 %v2513
    %v3367 = vunpack.c.l.b16 %v2514
    %v3368 = vunpack.c.h.b16 %v2514
    %v3369 = vunpack.c.l.b16 %v2515
    %v3370 = vunpack.c.l.b16 %v2516
    %v3371 = vunpack.c.h.b16 %v2516
    %v3372 = vunpack.c.l.b16 %v2517
    %v3373 = vunpack.c.l.b16 %v2518
    %v3374 = vunpack.c.h.b16 %v2518
    %v3375 = vunpack.c.l.b16 %v2519
    %v3376 = vunpack.c.l.b16 %v2520
    %v3377 = vunpack.c.h.b16 %v2520
    %v3378 = vunpack.c.l.b16 %v2521
    %v3379 = vunpack.c.l.b16 %v2522
    %v3380 = vunpack.c.h.b16 %v2522
    %v3381 = vunpack.c.l.b16 %v2523
    %v3382 = vunpack.c.l.b16 %v2524
    %v3383 = vunpack.c.h.b16 %v2524
    %v3384 = vunpack.c.l.b16 %v2525
    %v3385 = vunpack.c.l.b16 %v2526
    %v3386 = vunpack.c.h.b16 %v2526
    %v3387 = vunpack.c.l.b16 %v2527
    %v3388 = vunpack.c.l.b16 %v2528
    %v3389 = vunpack.c.h.b16 %v2528
    %v3390 = vunpack.c.l.b16 %v2529
    %v3391 = vunpack.c.l.b16 %v2530
    %v3392 = vunpack.c.h.b16 %v2530
    %v3393 = vunpack.c.l.b16 %v2531
    %v3394 = vunpack.c.l.b16 %v2532
    %v3395 = vunpack.c.h.b16 %v2532
    %v3396 = vunpack.c.l.b16 %v2533
    %v3397 = vunpack.c.l.b16 %v2534
    %v3398 = vunpack.c.h.b16 %v2534
    %v3399 = vunpack.c.l.b16 %v2535
    %v3400 = vunpack.c.l.b16 %v2536
    %v3401 = vunpack.c.h.b16 %v2536
    %v3402 = vunpack.c.l.b16 %v2537
    %v3403 = vunpack.c.l.b16 %v2538
    %v3404 = vunpack.c.h.b16 %v2538
    %v3405 = vunpack.c.l.b16 %v2539
    %v3406 = vunpack.c.l.b16 %v2540
    %v3407 = vunpack.c.h.b16 %v2540
    %v3408 = vunpack.c.l.b16 %v2541
    %v3409 = vunpack.c.l.b16 %v2542
    %v3410 = vunpack.c.h.b16 %v2542
    %v3411 = vunpack.c.l.b16 %v2543
    %v3412 = vunpack.c.l.b16 %v2544
    %v3413 = vunpack.c.h.b16 %v2544
    %v3414 = vunpack.c.l.b16 %v2545
    %v3415 = vunpack.c.l.b16 %v2546
    %v3416 = vunpack.c.h.b16 %v2546
    %v3417 = vunpack.c.l.b16 %v2547
    %v3418 = vunpack.c.l.b16 %v2548
    %v3419 = vunpack.c.h.b16 %v2548
    %v3420 = vunpack.c.l.b16 %v2549
    %v3421 = vunpack.c.l.b16 %v2550
    %v3422 = vunpack.c.h.b16 %v2550
    %v3423 = vunpack.c.l.b16 %v2551
    %v3424 = vunpack.c.l.b16 %v2552
    %v3425 = vunpack.c.h.b16 %v2552
    %v3426 = vunpack.c.l.b16 %v2553
    %v3427 = vunpack.c.l.b16 %v2554
    %v3428 = vunpack.c.h.b16 %v2554
    %v3429 = vunpack.c.l.b16 %v2555
    %v3430 = vunpack.c.l.b16 %v2556
    %v3431 = vunpack.c.h.b16 %v2556
    %v3432 = vunpack.c.l.b16 %v2557
    %v3433 = vunpack.c.l.b16 %v2558
    %v3434 = vunpack.c.h.b16 %v2558
    %v3435 = vunpack.c.l.b16 %v2559
    %v3436 = vunpack.c.l.b16 %v2560
    %v3437 = vunpack.c.h.b16 %v2560
    %v3438 = vunpack.c.l.b16 %v2561
    %v3439 = vunpack.c.l.b16 %v2562
    %v3440 = vunpack.c.h.b16 %v2562
    %v3441 = vunpack.c.l.b16 %v2563
    %v3442 = vunpack.c.l.b16 %v2564
    %v3443 = vunpack.c.h.b16 %v2564
    %v3444 = vunpack.c.l.b16 %v2565
    %v3445 = vunpack.c.l.b16 %v2566
    %v3446 = vunpack.c.h.b16 %v2566
    %v3447 = vunpack.c.l.b16 %v2567
    %v3448 = vunpack.c.l.b16 %v2568
    %v3449 = vunpack.c.h.b16 %v2568
    %v3450 = vunpack.c.l.b16 %v2569
    %v3451 = vunpack.c.l.b16 %v2570
    %v3452 = vunpack.c.h.b16 %v2570
    %v3453 = vunpack.c.l.b16 %v2571
    %v3454 = vunpack.c.l.b16 %v2572
    %v3455 = vunpack.c.h.b16 %v2572
    %v3456 = vunpack.c.l.b16 %v2573
    %v3457 = vunpack.c.l.b16 %v2574
    %v3458 = vunpack.c.h.b16 %v2574
    %v3459 = vunpack.c.l.b16 %v2575
    %v3460 = vunpack.c.l.b16 %v2576
    %v3461 = vunpack.c.h.b16 %v2576
    %v3462 = vunpack.c.l.b16 %v2577
    %v3463 = vunpack.c.l.b16 %v2578
    %v3464 = vunpack.c.h.b16 %v2578
    %v3465 = vunpack.c.l.b16 %v2579
    %v3466 = vunpack.c.l.b16 %v2580
    %v3467 = vunpack.c.h.b16 %v2580
    %v3468 = vunpack.c.l.b16 %v2581
    %v3469 = vunpack.c.l.b16 %v2582
    %v3470 = vunpack.c.h.b16 %v2582
    %v3471 = vunpack.c.l.b16 %v2583
    %v3472 = vunpack.c.l.b16 %v2584
    %v3473 = vunpack.c.h.b16 %v2584
    %v3474 = vunpack.c.l.b16 %v2585
    %v3475 = vunpack.c.l.b16 %v2586
    %v3476 = vunpack.c.h.b16 %v2586
    %v3477 = vunpack.c.l.b16 %v2587
    %v3478 = vunpack.c.l.b16 %v2588
    %v3479 = vunpack.c.h.b16 %v2588
    %v3480 = vunpack.c.l.b16 %v2589
    %v3481 = vunpack.c.l.b16 %v2590
    %v3482 = vunpack.c.h.b16 %v2590
    %v3483 = vunpack.c.l.b16 %v2591
    %v3484 = vunpack.c.l.b16 %v2592
    %v3485 = vunpack.c.h.b16 %v2592
    %v3486 = vunpack.c.l.b16 %v2593
    %v3487 = vunpack.c.l.b16 %v2594
    %v3488 = vunpack.c.h.b16 %v2594
    %v3489 = vunpack.c.l.b16 %v2595
    %v3490 = vunpack.c.l.b16 %v2596
    %v3491 = vunpack.c.h.b16 %v2596
    %v3492 = vunpack.c.l.b16 %v2597
    %v3493 = vunpack.c.l.b16 %v2598
    %v3494 = vunpack.c.h.b16 %v2598
    %v3495 = vunpack.c.l.b16 %v2599
    %v3496 = vunpack.c.l.b16 %v2600
    %v3497 = vunpack.c.h.b16 %v2600
    %v3498 = vunpack.c.l.b16 %v2601
    %v3499 = vunpack.c.l.b16 %v2602
    %v3500 = vunpack.c.h.b16 %v2602
    %v3501 = vunpack.c.l.b16 %v2603
    %v3502 = vunpack.c.l.b16 %v2604
    %v3503 = vunpack.c.h.b16 %v2604
    %v3504 = vunpack.c.l.b16 %v2605
    %v3505 = vunpack.c.l.b16 %v2606
    %v3506 = vunpack.c.h.b16 %v2606
    %v3507 = vunpack.c.l.b16 %v2607
    %v3508 = vunpack.c.l.b16 %v2608
    %v3509 = vunpack.c.h.b16 %v2608
    %v3510 = vunpack.c.l.b16 %v2609
    %v3511 = vunpack.c.l.b16 %v2610
    %v3512 = vunpack.c.h.b16 %v2610
    %v3513 = vunpack.c.l.b16 %v2611
    %v3514 = vunpack.c.l.b16 %v2612
    %v3515 = vunpack.c.h.b16 %v2612
    %v3516 = vunpack.c.l.b16 %v2613
    %v3517 = vunpack.c.l.b16 %v2614
    %v3518 = vunpack.c.h.b16 %v2614
    %v3519 = vunpack.c.l.b16 %v2615
    %v3520 = vunpack.c.l.b16 %v2616
    %v3521 = vunpack.c.h.b16 %v2616
    %v3522 = vunpack.c.l.b16 %v2617
    %v3523 = vunpack.c.l.b16 %v2618
    %v3524 = vunpack.c.h.b16 %v2618
    %v3525 = vunpack.c.l.b16 %v2619
    %v3526 = vunpack.c.l.b16 %v2620
    %v3527 = vunpack.c.h.b16 %v2620
    %v3528 = vunpack.c.l.b16 %v2621
    %v3529 = vunpack.c.l.b16 %v2622
    %v3530 = vunpack.c.h.b16 %v2622
    %v3531 = vunpack.c.l.b16 %v2623
    %v3532 = vunpack.c.l.b16 %v2624
    %v3533 = vunpack.c.h.b16 %v2624
    %v3534 = vunpack.c.l.b16 %v2625
    %v3535 = vunpack.c.l.b16 %v2626
    %v3536 = vunpack.c.h.b16 %v2626
    %v3537 = vunpack.c.l.b16 %v2627
    %v3538 = vunpack.c.l.b16 %v2628
    %v3539 = vunpack.c.h.b16 %v2628
    %v3540 = vunpack.c.l.b16 %v2629
    %v3541 = vunpack.c.l.b16 %v2630
    %v3542 = vunpack.c.h.b16 %v2630
    %v3543 = vunpack.c.l.b16 %v2631
    %v3544 = vunpack.c.l.b16 %v2632
    %v3545 = vunpack.c.h.b16 %v2632
    %v3546 = vunpack.c.l.b16 %v2633
    %v3547 = vunpack.c.l.b16 %v2634
    %v3548 = vunpack.c.h.b16 %v2634
    %v3549 = vunpack.c.l.b16 %v2635
    %v3550 = vunpack.c.l.b16 %v2636
    %v3551 = vunpack.c.h.b16 %v2636
    %v3552 = vunpack.c.l.b16 %v2637
    %v3553 = vunpack.c.l.b16 %v2638
    %v3554 = vunpack.c.h.b16 %v2638
    %v3555 = vunpack.c.l.b16 %v2639
    %v3556 = vunpack.c.l.b16 %v2640
    %v3557 = vunpack.c.h.b16 %v2640
    %v3558 = vunpack.c.l.b16 %v2641
    %v3559 = vunpack.c.l.b16 %v2642
    %v3560 = vunpack.c.h.b16 %v2642
    %v3561 = vunpack.c.l.b16 %v2643
    %v3562 = vunpack.c.l.b16 %v2644
    %v3563 = vunpack.c.h.b16 %v2644
    %v3564 = vunpack.c.l.b16 %v2645
    %v3565 = vunpack.c.l.b16 %v2646
    %v3566 = vunpack.c.h.b16 %v2646
    %v3567 = vunpack.c.l.b16 %v2647
    %v3568 = vunpack.c.l.b16 %v2648
    %v3569 = vunpack.c.h.b16 %v2648
    %v3570 = vunpack.c.l.b16 %v2649
    %v3571 = vunpack.c.l.b16 %v2650
    %v3572 = vunpack.c.h.b16 %v2650
    %v3573 = vunpack.c.l.b16 %v2651
    %v3574 = vunpack.c.l.b16 %v2652
    %v3575 = vunpack.c.h.b16 %v2652
    %v3576 = vunpack.c.l.b16 %v2653
    %v3577 = vunpack.c.l.b16 %v2654
    %v3578 = vunpack.c.h.b16 %v2654
    %v3579 = vunpack.c.l.b16 %v2655
    %v3580 = vunpack.c.l.b16 %v2656
    %v3581 = vunpack.c.h.b16 %v2656
    %v3582 = vunpack.c.l.b16 %v2657
    %v3583 = vunpack.c.l.b16 %v2658
    %v3584 = vunpack.c.h.b16 %v2658
    %v3585 = vunpack.c.l.b16 %v2659
    %v3586 = vunpack.c.l.b16 %v2660
    %v3587 = vunpack.c.h.b16 %v2660
    %v3588 = vunpack.c.l.b16 %v2661
    %v3589 = vunpack.c.l.b16 %v2662
    %v3590 = vunpack.c.h.b16 %v2662
    %v3591 = vunpack.c.l.b16 %v2663
    %v3592 = vunpack.c.l.b16 %v2664
    %v3593 = vunpack.c.h.b16 %v2664
    %v3594 = vunpack.c.l.b16 %v2665
    %v3595 = vunpack.c.l.b16 %v2666
    %v3596 = vunpack.c.h.b16 %v2666
    %v3597 = vunpack.c.l.b16 %v2667
    %v3598 = vunpack.c.l.b16 %v2668
    %v3599 = vunpack.c.h.b16 %v2668
    %v3600 = vunpack.c.l.b16 %v2669
    %v3601 = vunpack.c.l.b16 %v2670
    %v3602 = vunpack.c.h.b16 %v2670
    %v3603 = vunpack.c.l.b16 %v2671
    %v3604 = vunpack.c.l.b16 %v2672
    %v3605 = vunpack.c.h.b16 %v2672
    %v3606 = vunpack.c.l.b16 %v2673
    %v3607 = vunpack.c.l.b16 %v2674
    %v3608 = vunpack.c.h.b16 %v2674
    %v3609 = vunpack.c.l.b16 %v2675
    %v3610 = vunpack.c.l.b16 %v2676
    %v3611 = vunpack.c.h.b16 %v2676
    %v3612 = vunpack.c.l.b16 %v2677
    %v3613 = vunpack.c.l.b16 %v2678
    %v3614 = vunpack.c.h.b16 %v2678
    %v3615 = vunpack.c.l.b16 %v2679
    %v3616 = vunpack.c.l.b16 %v2680
    %v3617 = vunpack.c.h.b16 %v2680
    %v3618 = vunpack.c.l.b16 %v2681
    %v3619 = vunpack.c.l.b16 %v2682
    %v3620 = vunpack.c.h.b16 %v2682
    %v3621 = vunpack.c.l.b16 %v2683
    %v3622 = vunpack.c.l.b16 %v2684
    %v3623 = vunpack.c.h.b16 %v2684
    %v3624 = vunpack.c.l.b16 %v2685
    %v3625 = vunpack.c.l.b16 %v2686
    %v3626 = vunpack.c.h.b16 %v2686
    %v3627 = vunpack.c.l.b16 %v2687
    %v3628 = vunpack.c.l.b16 %v2688
    %v3629 = vunpack.c.h.b16 %v2688
    %v3630 = vunpack.c.l.b16 %v2689
    %v3631 = vunpack.c.l.b16 %v2690
    %v3632 = vunpack.c.h.b16 %v2690
    %v3633 = vunpack.c.l.b16 %v2691
    %v3634 = vunpack.c.l.b16 %v2692
    %v3635 = vunpack.c.h.b16 %v2692
    %v3636 = vunpack.c.l.b16 %v2693
    %v3637 = vunpack.c.l.b16 %v2694
    %v3638 = vunpack.c.h.b16 %v2694
    %v3639 = vunpack.c.l.b16 %v2695
    %v3640 = vunpack.c.l.b16 %v2696
    %v3641 = vunpack.c.h.b16 %v2696
    %v3642 = vunpack.c.l.b16 %v2697
    %v3643 = vunpack.c.l.b16 %v2698
    %v3644 = vunpack.c.h.b16 %v2698
    %v3645 = vunpack.c.l.b16 %v2699
    %v3646 = vunpack.c.l.b16 %v2700
    %v3647 = vunpack.c.h.b16 %v2700
    %v3648 = vunpack.c.l.b16 %v2701
    %v3649 = vunpack.c.l.b16 %v2702
    %v3650 = vunpack.c.h.b16 %v2702
    %v3651 = vunpack.c.l.b16 %v2703
    %v3652 = vunpack.c.l.b16 %v2704
    %v3653 = vunpack.c.h.b16 %v2704
    %v3654 = vunpack.c.l.b16 %v2705
    %v3655 = vunpack.c.l.b16 %v2706
    %v3656 = vunpack.c.h.b16 %v2706
    %v3657 = vunpack.c.l.b16 %v2707
    %v3658 = vunpack.c.l.b16 %v2708
    %v3659 = vunpack.c.h.b16 %v2708
    %v3660 = vunpack.c.l.b16 %v2709
    %v3661 = vunpack.c.l.b16 %v2710
    %v3662 = vunpack.c.h.b16 %v2710
    %v3663 = vunpack.c.l.b16 %v2711
    %v3664 = vunpack.c.l.b16 %v2712
    %v3665 = vunpack.c.h.b16 %v2712
    %v3666 = vunpack.c.l.b16 %v2713
    %v3667 = vunpack.c.l.b16 %v2714
    %v3668 = vunpack.c.h.b16 %v2714
    %v3669 = vunpack.c.l.b16 %v2715
    %v3670 = vunpack.c.l.b16 %v2716
    %v3671 = vunpack.c.h.b16 %v2716
    %v3672 = vunpack.c.l.b16 %v2717
    %v3673 = vunpack.c.l.b16 %v2718
    %v3674 = vunpack.c.h.b16 %v2718
    %v3675 = vunpack.c.l.b16 %v2719
    %v3676 = vunpack.c.l.b16 %v2720
    %v3677 = vunpack.c.h.b16 %v2720
    %v3678 = vunpack.c.l.b16 %v2721
    %v3679 = vunpack.c.l.b16 %v2722
    %v3680 = vunpack.c.h.b16 %v2722
    %v3681 = vunpack.c.l.b16 %v2723
    %v3682 = vunpack.c.l.b16 %v2724
    %v3683 = vunpack.c.h.b16 %v2724
    %v3684 = vunpack.c.l.b16 %v2725
    %v3685 = vunpack.c.l.b16 %v2726
    %v3686 = vunpack.c.h.b16 %v2726
    %v3687 = vunpack.c.l.b16 %v2727
    %v3688 = vunpack.c.l.b16 %v2728
    %v3689 = vunpack.c.h.b16 %v2728
    %v3690 = vunpack.c.l.b16 %v2729
    %v3691 = vunpack.c.l.b16 %v2730
    %v3692 = vunpack.c.h.b16 %v2730
    %v3693 = vunpack.c.l.b16 %v2731
    %v3694 = vunpack.c.l.b16 %v2732
    %v3695 = vunpack.c.h.b16 %v2732
    %v3696 = vunpack.c.l.b16 %v2733
    %v3697 = vunpack.c.l.b16 %v2734
    %v3698 = vunpack.c.h.b16 %v2734
    %v3699 = vunpack.c.l.b16 %v2735
    %v3700 = vunpack.c.l.b16 %v2736
    %v3701 = vunpack.c.h.b16 %v2736
    %v3702 = vunpack.c.l.b16 %v2737
    %v3703 = vunpack.c.l.b16 %v2738
    %v3704 = vunpack.c.h.b16 %v2738
    %v3705 = vunpack.c.l.b16 %v2739
    %v3706 = vunpack.c.l.b16 %v2740
    %v3707 = vunpack.c.h.b16 %v2740
    %v3708 = vunpack.c.l.b16 %v2741
    %v3709 = vunpack.c.l.b16 %v2742
    %v3710 = vunpack.c.h.b16 %v2742
    %v3711 = vunpack.c.l.b16 %v2743
    %v3712 = vunpack.c.l.b16 %v2744
    %v3713 = vunpack.c.h.b16 %v2744
    %v3714 = vunpack.c.l.b16 %v2745
    %v3715 = vunpack.c.l.b16 %v2746
    %v3716 = vunpack.c.h.b16 %v2746
    %v3717 = vunpack.c.l.b16 %v2747
    %v3718 = vunpack.c.l.b16 %v2748
    %v3719 = vunpack.c.h.b16 %v2748
    %v3720 = vunpack.c.l.b16 %v2749
    %v3721 = vunpack.c.l.b16 %v2750
    %v3722 = vunpack.c.h.b16 %v2750
    %v3723 = vunpack.c.l.b16 %v2751
    %v3724 = vunpack.c.l.b16 %v2752
    %v3725 = vunpack.c.h.b16 %v2752
    %v3726 = vunpack.c.l.b16 %v2753
    %v3727 = vunpack.c.l.b16 %v2754
    %v3728 = vunpack.c.h.b16 %v2754
    %v3729 = vunpack.c.l.b16 %v2755
    %v3730 = vunpack.c.l.b16 %v2756
    %v3731 = vunpack.c.h.b16 %v2756
    %v3732 = vunpack.c.l.b16 %v2757
    %v3733 = vunpack.c.l.b16 %v2758
    %v3734 = vunpack.c.h.b16 %v2758
    %v3735 = vunpack.c.l.b16 %v2759
    %v3736 = vunpack.c.l.b16 %v2760
    %v3737 = vunpack.c.h.b16 %v2760
    %v3738 = vunpack.c.l.b16 %v2761
    %v3739 = vpack.c.b16 %v3166, %v3163
    %v3740 = vpack.c.b16 %v3167, %v3164
    %v3741 = vpack.c.b16 %v3168, %v3165
    %v3742 = vpack.c.b16 %v3172, %v3169
    %v3743 = vpack.c.b16 %v3173, %v3170
    %v3744 = vpack.c.b16 %v3174, %v3171
    %v3745 = vpack.c.b16 %v3178, %v3175
    %v3746 = vpack.c.b16 %v3179, %v3176
    %v3747 = vpack.c.b16 %v3180, %v3177
    %v3748 = vpack.c.b16 %v3184, %v3181
    %v3749 = vpack.c.b16 %v3185, %v3182
    %v3750 = vpack.c.b16 %v3186, %v3183
    %v3751 = vpack.c.b16 %v3190, %v3187
    %v3752 = vpack.c.b16 %v3191, %v3188
    %v3753 = vpack.c.b16 %v3192, %v3189
    %v3754 = vpack.c.b16 %v3196, %v3193
    %v3755 = vpack.c.b16 %v3197, %v3194
    %v3756 = vpack.c.b16 %v3198, %v3195
    %v3757 = vpack.c.b16 %v3202, %v3199
    %v3758 = vpack.c.b16 %v3203, %v3200
    %v3759 = vpack.c.b16 %v3204, %v3201
    %v3760 = vpack.c.b16 %v3208, %v3205
    %v3761 = vpack.c.b16 %v3209, %v3206
    %v3762 = vpack.c.b16 %v3210, %v3207
    %v3763 = vpack.c.b16 %v3214, %v3211
    %v3764 = vpack.c.b16 %v3215, %v3212
    %v3765 = vpack.c.b16 %v3216, %v3213
    %v3766 = vpack.c.b16 %v3220, %v3217
    %v3767 = vpack.c.b16 %v3221, %v3218
    %v3768 = vpack.c.b16 %v3222, %v3219
    %v3769 = vpack.c.b16 %v3226, %v3223
    %v3770 = vpack.c.b16 %v3227, %v3224
    %v3771 = vpack.c.b16 %v3228, %v3225
    %v3772 = vpack.c.b16 %v3232, %v3229
    %v3773 = vpack.c.b16 %v3233, %v3230
    %v3774 = vpack.c.b16 %v3234, %v3231
    %v3775 = vpack.c.b16 %v3238, %v3235
    %v3776 = vpack.c.b16 %v3239, %v3236
    %v3777 = vpack.c.b16 %v3240, %v3237
    %v3778 = vpack.c.b16 %v3244, %v3241
    %v3779 = vpack.c.b16 %v3245, %v3242
    %v3780 = vpack.c.b16 %v3246, %v3243
    %v3781 = vpack.c.b16 %v3250, %v3247
    %v3782 = vpack.c.b16 %v3251, %v3248
    %v3783 = vpack.c.b16 %v3252, %v3249
    %v3784 = vpack.c.b16 %v3256, %v3253
    %v3785 = vpack.c.b16 %v3257, %v3254
    %v3786 = vpack.c.b16 %v3258, %v3255
    %v3787 = vpack.c.b16 %v3262, %v3259
    %v3788 = vpack.c.b16 %v3263, %v3260
    %v3789 = vpack.c.b16 %v3264, %v3261
    %v3790 = vpack.c.b16 %v3268, %v3265
    %v3791 = vpack.c.b16 %v3269, %v3266
    %v3792 = vpack.c.b16 %v3270, %v3267
    %v3793 = vpack.c.b16 %v3274, %v3271
    %v3794 = vpack.c.b16 %v3275, %v3272
    %v3795 = vpack.c.b16 %v3276, %v3273
    %v3796 = vpack.c.b16 %v3280, %v3277
    %v3797 = vpack.c.b16 %v3281, %v3278
    %v3798 = vpack.c.b16 %v3282, %v3279
    %v3799 = vpack.c.b16 %v3286, %v3283
    %v3800 = vpack.c.b16 %v3287, %v3284
    %v3801 = vpack.c.b16 %v3288, %v3285
    %v3802 = vpack.c.b16 %v3292, %v3289
    %v3803 = vpack.c.b16 %v3293, %v3290
    %v3804 = vpack.c.b16 %v3294, %v3291
    %v3805 = vpack.c.b16 %v3298, %v3295
    %v3806 = vpack.c.b16 %v3299, %v3296
    %v3807 = vpack.c.b16 %v3300, %v3297
    %v3808 = vpack.c.b16 %v3304, %v3301
    %v3809 = vpack.c.b16 %v3305, %v3302
    %v3810 = vpack.c.b16 %v3306, %v3303
    %v3811 = vpack.c.b16 %v3310, %v3307
    %v3812 = vpack.c.b16 %v3311, %v3308
    %v3813 = vpack.c.b16 %v3312, %v3309
    %v3814 = vpack.c.b16 %v3316, %v3313
    %v3815 = vpack.c.b16 %v3317, %v3314
    %v3816 = vpack.c.b16 %v3318, %v3315
    %v3817 = vpack.c.b16 %v3322, %v3319
    %v3818 = vpack.c.b16 %v3323, %v3320
    %v3819 = vpack.c.b16 %v3324, %v3321
    %v3820 = vpack.c.b16 %v3328, %v3325
    %v3821 = vpack.c.b16 %v3329, %v3326
    %v3822 = vpack.c.b16 %v3330, %v3327
    %v3823 = vpack.c.b16 %v3334, %v3331
    %v3824 = vpack.c.b16 %v3335, %v3332
    %v3825 = vpack.c.b16 %v3336, %v3333
    %v3826 = vpack.c.b16 %v3340, %v3337
    %v3827 = vpack.c.b16 %v3341, %v3338
    %v3828 = vpack.c.b16 %v3342, %v3339
    %v3829 = vpack.c.b16 %v3346, %v3343
    %v3830 = vpack.c.b16 %v3347, %v3344
    %v3831 = vpack.c.b16 %v3348, %v3345
    %v3832 = vpack.c.b16 %v3352, %v3349
    %v3833 = vpack.c.b16 %v3353, %v3350
    %v3834 = vpack.c.b16 %v3354, %v3351
    %v3835 = vpack.c.b16 %v3358, %v3355
    %v3836 = vpack.c.b16 %v3359, %v3356
    %v3837 = vpack.c.b16 %v3360, %v3357
    %v3838 = vpack.c.b16 %v3364, %v3361
    %v3839 = vpack.c.b16 %v3365, %v3362
    %v3840 = vpack.c.b16 %v3366, %v3363
    %v3841 = vpack.c.b16 %v3370, %v3367
    %v3842 = vpack.c.b16 %v3371, %v3368
    %v3843 = vpack.c.b16 %v3372, %v3369
    %v3844 = vpack.c.b16 %v3376, %v3373
    %v3845 = vpack.c.b16 %v3377, %v3374
    %v3846 = vpack.c.b16 %v3378, %v3375
    %v3847 = vpack.c.b16 %v3382, %v3379
    %v3848 = vpack.c.b16 %v3383, %v3380
    %v3849 = vpack.c.b16 %v3384, %v3381
    %v3850 = vpack.c.b16 %v3388, %v3385
    %v3851 = vpack.c.b16 %v3389, %v3386
    %v3852 = vpack.c.b16 %v3390, %v3387
    %v3853 = vpack.c.b16 %v3394, %v3391
    %v3854 = vpack.c.b16 %v3395, %v3392
    %v3855 = vpack.c.b16 %v3396, %v3393
    %v3856 = vpack.c.b16 %v3400, %v3397
    %v3857 = vpack.c.b16 %v3401, %v3398
    %v3858 = vpack.c.b16 %v3402, %v3399
    %v3859 = vpack.c.b16 %v3406, %v3403
    %v3860 = vpack.c.b16 %v3407, %v3404
    %v3861 = vpack.c.b16 %v3408, %v3405
    %v3862 = vpack.c.b16 %v3412, %v3409
    %v3863 = vpack.c.b16 %v3413, %v3410
    %v3864 = vpack.c.b16 %v3414, %v3411
    %v3865 = vpack.c.b16 %v3418, %v3415
    %v3866 = vpack.c.b16 %v3419, %v3416
    %v3867 = vpack.c.b16 %v3420, %v3417
    %v3868 = vpack.c.b16 %v3424, %v3421
    %v3869 = vpack.c.b16 %v3425, %v3422
    %v3870 = vpack.c.b16 %v3426, %v3423
    %v3871 = vpack.c.b16 %v3430, %v3427
    %v3872 = vpack.c.b16 %v3431, %v3428
    %v3873 = vpack.c.b16 %v3432, %v3429
    %v3874 = vpack.c.b16 %v3436, %v3433
    %v3875 = vpack.c.b16 %v3437, %v3434
    %v3876 = vpack.c.b16 %v3438, %v3435
    %v3877 = vpack.c.b16 %v3442, %v3439
    %v3878 = vpack.c.b16 %v3443, %v3440
    %v3879 = vpack.c.b16 %v3444, %v3441
    %v3880 = vpack.c.b16 %v3448, %v3445
    %v3881 = vpack.c.b16 %v3449, %v3446
    %v3882 = vpack.c.b16 %v3450, %v3447
    %v3883 = vpack.c.b16 %v3454, %v3451
    %v3884 = vpack.c.b16 %v3455, %v3452
    %v3885 = vpack.c.b16 %v3456, %v3453
    %v3886 = vpack.c.b16 %v3460, %v3457
    %v3887 = vpack.c.b16 %v3461, %v3458
    %v3888 = vpack.c.b16 %v3462, %v3459
    %v3889 = vpack.c.b16 %v3466, %v3463
    %v3890 = vpack.c.b16 %v3467, %v3464
    %v3891 = vpack.c.b16 %v3468, %v3465
    %v3892 = vpack.c.b16 %v3472, %v3469
    %v3893 = vpack.c.b16 %v3473, %v3470
    %v3894 = vpack.c.b16 %v3474, %v3471
    %v3895 = vpack.c.b16 %v3478, %v3475
    %v3896 = vpack.c.b16 %v3479, %v3476
    %v3897 = vpack.c.b16 %v3480, %v3477
    %v3898 = vpack.c.b16 %v3484, %v3481
    %v3899 = vpack.c.b16 %v3485, %v3482
    %v3900 = vpack.c.b16 %v3486, %v3483
    %v3901 = vpack.c.b16 %v3490, %v3487
    %v3902 = vpack.c.b16 %v3491, %v3488
    %v3903 = vpack.c.b16 %v3492, %v3489
    %v3904 = vpack.c.b16 %v3496, %v3493
    %v3905 = vpack.c.b16 %v3497, %v3494
    %v3906 = vpack.c.b16 %v3498, %v3495
    %v3907 = vpack.c.b16 %v3502, %v3499
    %v3908 = vpack.c.b16 %v3503, %v3500
    %v3909 = vpack.c.b16 %v3504, %v3501
    %v3910 = vpack.c.b16 %v3508, %v3505
    %v3911 = vpack.c.b16 %v3509, %v3506
    %v3912 = vpack.c.b16 %v3510, %v3507
    %v3913 = vpack.c.b16 %v3514, %v3511
    %v3914 = vpack.c.b16 %v3515, %v3512
    %v3915 = vpack.c.b16 %v3516, %v3513
    %v3916 = vpack.c.b16 %v3520, %v3517
    %v3917 = vpack.c.b16 %v3521, %v3518
    %v3918 = vpack.c.b16 %v3522, %v3519
    %v3919 = vpack.c.b16 %v3526, %v3523
    %v3920 = vpack.c.b16 %v3527, %v3524
    %v3921 = vpack.c.b16 %v3528, %v3525
    %v3922 = vpack.c.b16 %v3532, %v3529
    %v3923 = vpack.c.b16 %v3533, %v3530
    %v3924 = vpack.c.b16 %v3534, %v3531
    %v3925 = vpack.c.b16 %v3538, %v3535
    %v3926 = vpack.c.b16 %v3539, %v3536
    %v3927 = vpack.c.b16 %v3540, %v3537
    %v3928 = vpack.c.b16 %v3544, %v3541
    %v3929 = vpack.c.b16 %v3545, %v3542
    %v3930 = vpack.c.b16 %v3546, %v3543
    %v3931 = vpack.c.b16 %v3550, %v3547
    %v3932 = vpack.c.b16 %v3551, %v3548
    %v3933 = vpack.c.b16 %v3552, %v3549
    %v3934 = vpack.c.b16 %v3556, %v3553
    %v3935 = vpack.c.b16 %v3557, %v3554
    %v3936 = vpack.c.b16 %v3558, %v3555
    %v3937 = vpack.c.b16 %v3562, %v3559
    %v3938 = vpack.c.b16 %v3563, %v3560
    %v3939 = vpack.c.b16 %v3564, %v3561
    %v3940 = vpack.c.b16 %v3568, %v3565
    %v3941 = vpack.c.b16 %v3569, %v3566
    %v3942 = vpack.c.b16 %v3570, %v3567
    %v3943 = vpack.c.b16 %v3574, %v3571
    %v3944 = vpack.c.b16 %v3575, %v3572
    %v3945 = vpack.c.b16 %v3576, %v3573
    %v3946 = vpack.c.b16 %v3580, %v3577
    %v3947 = vpack.c.b16 %v3581, %v3578
    %v3948 = vpack.c.b16 %v3582, %v3579
    %v3949 = vpack.c.b16 %v3586, %v3583
    %v3950 = vpack.c.b16 %v3587, %v3584
    %v3951 = vpack.c.b16 %v3588, %v3585
    %v3952 = vpack.c.b16 %v3592, %v3589
    %v3953 = vpack.c.b16 %v3593, %v3590
    %v3954 = vpack.c.b16 %v3594, %v3591
    %v3955 = vpack.c.b16 %v3598, %v3595
    %v3956 = vpack.c.b16 %v3599, %v3596
    %v3957 = vpack.c.b16 %v3600, %v3597
    %v3958 = vpack.c.b16 %v3604, %v3601
    %v3959 = vpack.c.b16 %v3605, %v3602
    %v3960 = vpack.c.b16 %v3606, %v3603
    %v3961 = vpack.c.b16 %v3610, %v3607
    %v3962 = vpack.c.b16 %v3611, %v3608
    %v3963 = vpack.c.b16 %v3612, %v3609
    %v3964 = vpack.c.b16 %v3616, %v3613
    %v3965 = vpack.c.b16 %v3617, %v3614
    %v3966 = vpack.c.b16 %v3618, %v3615
    %v3967 = vpack.c.b16 %v3622, %v3619
    %v3968 = vpack.c.b16 %v3623, %v3620
    %v3969 = vpack.c.b16 %v3624, %v3621
    %v3970 = vpack.c.b16 %v3628, %v3625
    %v3971 = vpack.c.b16 %v3629, %v3626
    %v3972 = vpack.c.b16 %v3630, %v3627
    %v3973 = vpack.c.b16 %v3634, %v3631
    %v3974 = vpack.c.b16 %v3635, %v3632
    %v3975 = vpack.c.b16 %v3636, %v3633
    %v3976 = vpack.c.b16 %v3640, %v3637
    %v3977 = vpack.c.b16 %v3641, %v3638
    %v3978 = vpack.c.b16 %v3642, %v3639
    %v3979 = vpack.c.b16 %v3646, %v3643
    %v3980 = vpack.c.b16 %v3647, %v3644
    %v3981 = vpack.c.b16 %v3648, %v3645
    %v3982 = vpack.c.b16 %v3652, %v3649
    %v3983 = vpack.c.b16 %v3653, %v3650
    %v3984 = vpack.c.b16 %v3654, %v3651
    %v3985 = vpack.c.b16 %v3658, %v3655
    %v3986 = vpack.c.b16 %v3659, %v3656
    %v3987 = vpack.c.b16 %v3660, %v3657
    %v3988 = vpack.c.b16 %v3664, %v3661
    %v3989 = vpack.c.b16 %v3665, %v3662
    %v3990 = vpack.c.b16 %v3666, %v3663
    %v3991 = vpack.c.b16 %v3670, %v3667
    %v3992 = vpack.c.b16 %v3671, %v3668
    %v3993 = vpack.c.b16 %v3672, %v3669
    %v3994 = vpack.c.b16 %v3676, %v3673
    %v3995 = vpack.c.b16 %v3677, %v3674
    %v3996 = vpack.c.b16 %v3678, %v3675
    %v3997 = vpack.c.b16 %v3682, %v3679
    %v3998 = vpack.c.b16 %v3683, %v3680
    %v3999 = vpack.c.b16 %v3684, %v3681
    %v4000 = vpack.c.b16 %v3688, %v3685
    %v4001 = vpack.c.b16 %v3689, %v3686
    %v4002 = vpack.c.b16 %v3690, %v3687
    %v4003 = vpack.c.b16 %v3694, %v3691
    %v4004 = vpack.c.b16 %v3695, %v3692
    %v4005 = vpack.c.b16 %v3696, %v3693
    %v4006 = vpack.c.b16 %v3700, %v3697
    %v4007 = vpack.c.b16 %v3701, %v3698
    %v4008 = vpack.c.b16 %v3702, %v3699
    %v4009 = vpack.c.b16 %v3706, %v3703
    %v4010 = vpack.c.b16 %v3707, %v3704
    %v4011 = vpack.c.b16 %v3708, %v3705
    %v4012 = vpack.c.b16 %v3712, %v3709
    %v4013 = vpack.c.b16 %v3713, %v3710
    %v4014 = vpack.c.b16 %v3714, %v3711
    %v4015 = vpack.c.b16 %v3718, %v3715
    %v4016 = vpack.c.b16 %v3719, %v3716
    %v4017 = vpack.c.b16 %v3720, %v3717
    %v4018 = vpack.c.b16 %v3724, %v3721
    %v4019 = vpack.c.b16 %v3725, %v3722
    %v4020 = vpack.c.b16 %v3726, %v3723
    %v4021 = vpack.c.b16 %v3730, %v3727
    %v4022 = vpack.c.b16 %v3731, %v3728
    %v4023 = vpack.c.b16 %v3732, %v3729
    %v4024 = vpack.c.b16 %v3736, %v3733
    %v4025 = vpack.c.b16 %v3737, %v3734
    %v4026 = vpack.c.b16 %v3738, %v3735
    %4315 = vmatprep.subr.bf16.mxu0 %v3761
    %4316 = vmatpush1.bf16.msra.mxu0 %v3760
    %4317 = vmatprep.subr.bf16.mxu0 %v3758
    %4318 = vmatpush1.bf16.msra.mxu0 %v3757
    %4319 = vmatprep.subr.bf16.mxu0 %v3755
    %4320 = vmatpush1.bf16.msra.mxu0 %v3754
    %4321 = vmatprep.subr.bf16.mxu0 %v3752
    %4322 = vmatpush1.bf16.msra.mxu0 %v3751
    %4323 = vmatprep.subr.bf16.mxu0 %v3749
    %4324 = vmatpush1.bf16.msra.mxu0 %v3748
    %4325 = vmatprep.subr.bf16.mxu0 %v3746
    %4326 = vmatpush1.bf16.msra.mxu0 %v3745
    %4327 = vmatprep.subr.bf16.mxu0 %v3743
    %4328 = vmatpush1.bf16.msra.mxu0 %v3742
    %4329 = vmatprep.subr.bf16.mxu0 %v3740
    %4330 = vmatpush1.bf16.msra.mxu0 %v3739
    %4331 = vmatprep.subr.bf16.mxu0 %v3785
    %4332 = vmatpush2.bf16.msra.mxu0 %v3784
    %4333 = vmatprep.subr.bf16.mxu0 %v3782
    %4334 = vmatpush2.bf16.msra.mxu0 %v3781
    %4335 = vmatprep.subr.bf16.mxu0 %v3779
    %4336 = vmatpush2.bf16.msra.mxu0 %v3778
    %4337 = vmatprep.subr.bf16.mxu0 %v3776
    %4338 = vmatpush2.bf16.msra.mxu0 %v3775
    %4339 = vmatprep.subr.bf16.mxu0 %v3773
    %4340 = vmatpush2.bf16.msra.mxu0 %v3772
    %4341 = vmatprep.subr.bf16.mxu0 %v3770
    %4342 = vmatpush2.bf16.msra.mxu0 %v3769
    %4343 = vmatprep.subr.bf16.mxu0 %v3767
    %4344 = vmatpush2.bf16.msra.mxu0 %v3766
    %4345 = vmatprep.subr.bf16.mxu0 %v3764
    %4346 = vmatpush2.bf16.msra.mxu0 %v3763
    %4347 = vmatprep.mubr.bf16.mxu0 %v2367
    %4348 = vmatmul.mubr.bf16.gmra.mxu0 %v2366
    %v4349 = vpop.f32.mrf.mxu0
    %v4350 = vadd.f32 %v2767, %v4349
    %v4351 = vpop.f32.mrf.mxu0
    %v4352 = vadd.f32 %v2771, %v4351
    %v4353 = vpop.f32.mrf.mxu0
    %v4354 = vadd.f32 %v2767, %v4353
    %v4355 = vpop.f32.mrf.mxu0
    %v4356 = vadd.f32 %v2771, %v4355
    %4357 = vdwg.mxu0
    %4358 = vmatprep.subr.bf16.mxu0 %v3809
    %4359 = vmatpush1.bf16.msra.mxu0 %v3808
    %4360 = vmatprep.subr.bf16.mxu0 %v3806
    %4361 = vmatpush1.bf16.msra.mxu0 %v3805
    %4362 = vmatprep.subr.bf16.mxu0 %v3803
    %4363 = vmatpush1.bf16.msra.mxu0 %v3802
    %4364 = vmatprep.subr.bf16.mxu0 %v3800
    %4365 = vmatpush1.bf16.msra.mxu0 %v3799
    %4366 = vmatprep.subr.bf16.mxu0 %v3797
    %4367 = vmatpush1.bf16.msra.mxu0 %v3796
    %4368 = vmatprep.subr.bf16.mxu0 %v3794
    %4369 = vmatpush1.bf16.msra.mxu0 %v3793
    %4370 = vmatprep.subr.bf16.mxu0 %v3791
    %4371 = vmatpush1.bf16.msra.mxu0 %v3790
    %4372 = vmatprep.subr.bf16.mxu0 %v3788
    %4373 = vmatpush1.bf16.msra.mxu0 %v3787
    %4374 = vmatprep.subr.bf16.mxu0 %v3833
    %4375 = vmatpush2.bf16.msra.mxu0 %v3832
    %4376 = vmatprep.subr.bf16.mxu0 %v3830
    %4377 = vmatpush2.bf16.msra.mxu0 %v3829
    %4378 = vmatprep.subr.bf16.mxu0 %v3827
    %4379 = vmatpush2.bf16.msra.mxu0 %v3826
    %4380 = vmatprep.subr.bf16.mxu0 %v3824
    %4381 = vmatpush2.bf16.msra.mxu0 %v3823
    %4382 = vmatprep.subr.bf16.mxu0 %v3821
    %4383 = vmatpush2.bf16.msra.mxu0 %v3820
    %4384 = vmatprep.subr.bf16.mxu0 %v3818
    %4385 = vmatpush2.bf16.msra.mxu0 %v3817
    %4386 = vmatprep.subr.bf16.mxu0 %v3815
    %4387 = vmatpush2.bf16.msra.mxu0 %v3814
    %4388 = vmatprep.subr.bf16.mxu0 %v3812
    %4389 = vmatpush2.bf16.msra.mxu0 %v3811
    %4390 = vmatprep.mubr.bf16.mxu0 %v2369
    %4391 = vmatmul.mubr.bf16.gmra.mxu0 %v2368
    %v4392 = vpop.f32.mrf.mxu0
    %v4393 = vadd.f32 %v4350, %v4392
    %v4394 = vpop.f32.mrf.mxu0
    %v4395 = vadd.f32 %v4352, %v4394
    %v4396 = vpop.f32.mrf.mxu0
    %v4397 = vadd.f32 %v4354, %v4396
    %v4398 = vpop.f32.mrf.mxu0
    %v4399 = vadd.f32 %v4356, %v4398
    %4400 = vdwg.mxu0
    %4401 = vmatprep.subr.bf16.mxu0 %v3857
    %4402 = vmatpush1.bf16.msra.mxu0 %v3856
    %4403 = vmatprep.subr.bf16.mxu0 %v3854
    %4404 = vmatpush1.bf16.msra.mxu0 %v3853
    %4405 = vmatprep.subr.bf16.mxu0 %v3851
    %4406 = vmatpush1.bf16.msra.mxu0 %v3850
    %4407 = vmatprep.subr.bf16.mxu0 %v3848
    %4408 = vmatpush1.bf16.msra.mxu0 %v3847
    %4409 = vmatprep.subr.bf16.mxu0 %v3845
    %4410 = vmatpush1.bf16.msra.mxu0 %v3844
    %4411 = vmatprep.subr.bf16.mxu0 %v3842
    %4412 = vmatpush1.bf16.msra.mxu0 %v3841
    %4413 = vmatprep.subr.bf16.mxu0 %v3839
    %4414 = vmatpush1.bf16.msra.mxu0 %v3838
    %4415 = vmatprep.subr.bf16.mxu0 %v3836
    %4416 = vmatpush1.bf16.msra.mxu0 %v3835
    %4417 = vmatprep.subr.bf16.mxu0 %v3881
    %4418 = vmatpush2.bf16.msra.mxu0 %v3880
    %4419 = vmatprep.subr.bf16.mxu0 %v3878
    %4420 = vmatpush2.bf16.msra.mxu0 %v3877
    %4421 = vmatprep.subr.bf16.mxu0 %v3875
    %4422 = vmatpush2.bf16.msra.mxu0 %v3874
    %4423 = vmatprep.subr.bf16.mxu0 %v3872
    %4424 = vmatpush2.bf16.msra.mxu0 %v3871
    %4425 = vmatprep.subr.bf16.mxu0 %v3869
    %4426 = vmatpush2.bf16.msra.mxu0 %v3868
    %4427 = vmatprep.subr.bf16.mxu0 %v3866
    %4428 = vmatpush2.bf16.msra.mxu0 %v3865
    %4429 = vmatprep.subr.bf16.mxu0 %v3863
    %4430 = vmatpush2.bf16.msra.mxu0 %v3862
    %4431 = vmatprep.subr.bf16.mxu0 %v3860
    %4432 = vmatpush2.bf16.msra.mxu0 %v3859
    %4433 = vmatprep.mubr.bf16.mxu0 %v2371
    %4434 = vmatmul.mubr.bf16.gmra.mxu0 %v2370
    %v4435 = vpop.f32.mrf.mxu0
    %v4436 = vadd.f32 %v4393, %v4435
    %v4437 = vpop.f32.mrf.mxu0
    %v4438 = vadd.f32 %v4395, %v4437
    %v4439 = vpop.f32.mrf.mxu0
    %v4440 = vadd.f32 %v4397, %v4439
    %v4441 = vpop.f32.mrf.mxu0
    %v4442 = vadd.f32 %v4399, %v4441
    %4443 = vdwg.mxu0
    %4444 = vmatprep.subr.bf16.mxu0 %v3905
    %4445 = vmatpush1.bf16.msra.mxu0 %v3904
    %4446 = vmatprep.subr.bf16.mxu0 %v3902
    %4447 = vmatpush1.bf16.msra.mxu0 %v3901
    %4448 = vmatprep.subr.bf16.mxu0 %v3899
    %4449 = vmatpush1.bf16.msra.mxu0 %v3898
    %4450 = vmatprep.subr.bf16.mxu0 %v3896
    %4451 = vmatpush1.bf16.msra.mxu0 %v3895
    %4452 = vmatprep.subr.bf16.mxu0 %v3893
    %4453 = vmatpush1.bf16.msra.mxu0 %v3892
    %4454 = vmatprep.subr.bf16.mxu0 %v3890
    %4455 = vmatpush1.bf16.msra.mxu0 %v3889
    %4456 = vmatprep.subr.bf16.mxu0 %v3887
    %4457 = vmatpush1.bf16.msra.mxu0 %v3886
    %4458 = vmatprep.subr.bf16.mxu0 %v3884
    %4459 = vmatpush1.bf16.msra.mxu0 %v3883
    %4460 = vmatprep.subr.bf16.mxu0 %v3929
    %4461 = vmatpush2.bf16.msra.mxu0 %v3928
    %4462 = vmatprep.subr.bf16.mxu0 %v3926
    %4463 = vmatpush2.bf16.msra.mxu0 %v3925
    %4464 = vmatprep.subr.bf16.mxu0 %v3923
    %4465 = vmatpush2.bf16.msra.mxu0 %v3922
    %4466 = vmatprep.subr.bf16.mxu0 %v3920
    %4467 = vmatpush2.bf16.msra.mxu0 %v3919
    %4468 = vmatprep.subr.bf16.mxu0 %v3917
    %4469 = vmatpush2.bf16.msra.mxu0 %v3916
    %4470 = vmatprep.subr.bf16.mxu0 %v3914
    %4471 = vmatpush2.bf16.msra.mxu0 %v3913
    %4472 = vmatprep.subr.bf16.mxu0 %v3911
    %4473 = vmatpush2.bf16.msra.mxu0 %v3910
    %4474 = vmatprep.subr.bf16.mxu0 %v3908
    %4475 = vmatpush2.bf16.msra.mxu0 %v3907
    %4476 = vmatprep.mubr.bf16.mxu0 %v2373
    %4477 = vmatmul.mubr.bf16.gmra.mxu0 %v2372
    %v4478 = vpop.f32.mrf.mxu0
    %v4479 = vadd.f32 %v4436, %v4478
    %v4480 = vpop.f32.mrf.mxu0
    %v4481 = vadd.f32 %v4438, %v4480
    %v4482 = vpop.f32.mrf.mxu0
    %v4483 = vadd.f32 %v4440, %v4482
    %v4484 = vpop.f32.mrf.mxu0
    %v4485 = vadd.f32 %v4442, %v4484
    %4486 = vdwg.mxu0
    %4487 = vmatprep.subr.bf16.mxu0 %v3953
    %4488 = vmatpush1.bf16.msra.mxu0 %v3952
    %4489 = vmatprep.subr.bf16.mxu0 %v3950
    %4490 = vmatpush1.bf16.msra.mxu0 %v3949
    %4491 = vmatprep.subr.bf16.mxu0 %v3947
    %4492 = vmatpush1.bf16.msra.mxu0 %v3946
    %4493 = vmatprep.subr.bf16.mxu0 %v3944
    %4494 = vmatpush1.bf16.msra.mxu0 %v3943
    %4495 = vmatprep.subr.bf16.mxu0 %v3941
    %4496 = vmatpush1.bf16.msra.mxu0 %v3940
    %4497 = vmatprep.subr.bf16.mxu0 %v3938
    %4498 = vmatpush1.bf16.msra.mxu0 %v3937
    %4499 = vmatprep.subr.bf16.mxu0 %v3935
    %4500 = vmatpush1.bf16.msra.mxu0 %v3934
    %4501 = vmatprep.subr.bf16.mxu0 %v3932
    %4502 = vmatpush1.bf16.msra.mxu0 %v3931
    %4503 = vmatprep.subr.bf16.mxu0 %v3977
    %4504 = vmatpush2.bf16.msra.mxu0 %v3976
    %4505 = vmatprep.subr.bf16.mxu0 %v3974
    %4506 = vmatpush2.bf16.msra.mxu0 %v3973
    %4507 = vmatprep.subr.bf16.mxu0 %v3971
    %4508 = vmatpush2.bf16.msra.mxu0 %v3970
    %4509 = vmatprep.subr.bf16.mxu0 %v3968
    %4510 = vmatpush2.bf16.msra.mxu0 %v3967
    %4511 = vmatprep.subr.bf16.mxu0 %v3965
    %4512 = vmatpush2.bf16.msra.mxu0 %v3964
    %4513 = vmatprep.subr.bf16.mxu0 %v3962
    %4514 = vmatpush2.bf16.msra.mxu0 %v3961
    %4515 = vmatprep.subr.bf16.mxu0 %v3959
    %4516 = vmatpush2.bf16.msra.mxu0 %v3958
    %4517 = vmatprep.subr.bf16.mxu0 %v3956
    %4518 = vmatpush2.bf16.msra.mxu0 %v3955
    %4519 = vmatprep.mubr.bf16.mxu0 %v2375
    %4520 = vmatmul.mubr.bf16.gmra.mxu0 %v2374
    %v4521 = vpop.f32.mrf.mxu0
    %v4522 = vadd.f32 %v4479, %v4521
    %v4523 = vpop.f32.mrf.mxu0
    %v4524 = vadd.f32 %v4481, %v4523
    %v4525 = vpop.f32.mrf.mxu0
    %v4526 = vadd.f32 %v4483, %v4525
    %v4527 = vpop.f32.mrf.mxu0
    %v4528 = vadd.f32 %v4485, %v4527
    %4529 = vdwg.mxu0
    %4530 = vmatprep.subr.bf16.mxu0 %v4001
    %4531 = vmatpush1.bf16.msra.mxu0 %v4000
    %4532 = vmatprep.subr.bf16.mxu0 %v3998
    %4533 = vmatpush1.bf16.msra.mxu0 %v3997
    %4534 = vmatprep.subr.bf16.mxu0 %v3995
    %4535 = vmatpush1.bf16.msra.mxu0 %v3994
    %4536 = vmatprep.subr.bf16.mxu0 %v3992
    %4537 = vmatpush1.bf16.msra.mxu0 %v3991
    %4538 = vmatprep.subr.bf16.mxu0 %v3989
    %4539 = vmatpush1.bf16.msra.mxu0 %v3988
    %4540 = vmatprep.subr.bf16.mxu0 %v3986
    %4541 = vmatpush1.bf16.msra.mxu0 %v3985
    %4542 = vmatprep.subr.bf16.mxu0 %v3983
    %4543 = vmatpush1.bf16.msra.mxu0 %v3982
    %4544 = vmatprep.subr.bf16.mxu0 %v3980
    %4545 = vmatpush1.bf16.msra.mxu0 %v3979
    %4546 = vmatprep.subr.bf16.mxu0 %v4025
    %4547 = vmatpush2.bf16.msra.mxu0 %v4024
    %4548 = vmatprep.subr.bf16.mxu0 %v4022
    %4549 = vmatpush2.bf16.msra.mxu0 %v4021
    %4550 = vmatprep.subr.bf16.mxu0 %v4019
    %4551 = vmatpush2.bf16.msra.mxu0 %v4018
    %4552 = vmatprep.subr.bf16.mxu0 %v4016
    %4553 = vmatpush2.bf16.msra.mxu0 %v4015
    %4554 = vmatprep.subr.bf16.mxu0 %v4013
    %4555 = vmatpush2.bf16.msra.mxu0 %v4012
    %4556 = vmatprep.subr.bf16.mxu0 %v4010
    %4557 = vmatpush2.bf16.msra.mxu0 %v4009
    %4558 = vmatprep.subr.bf16.mxu0 %v4007
    %4559 = vmatpush2.bf16.msra.mxu0 %v4006
    %4560 = vmatprep.subr.bf16.mxu0 %v4004
    %4561 = vmatpush2.bf16.msra.mxu0 %v4003
    %4562 = vmatprep.mubr.bf16.mxu0 %v2377
    %4563 = vmatmul.mubr.bf16.gmra.mxu0 %v2376
    %v4564 = vpop.f32.mrf.mxu0
    %v4565 = vadd.f32 %v4522, %v4564
    %v4566 = vpop.f32.mrf.mxu0
    %v4567 = vadd.f32 %v4524, %v4566
    %v4568 = vpop.f32.mrf.mxu0
    %v4569 = vadd.f32 %v4526, %v4568
    %v4570 = vpop.f32.mrf.mxu0
    %v4571 = vadd.f32 %v4528, %v4570
    %4572 = vdwg.mxu0
    %4573 = vmatprep.subr.bf16.mxu0 0
    %4574 = vmatpush1.bf16.msra.mxu0 %v3762
    %4575 = vmatprep.subr.bf16.mxu0 0
    %4576 = vmatpush1.bf16.msra.mxu0 %v3759
    %4577 = vmatprep.subr.bf16.mxu0 0
    %4578 = vmatpush1.bf16.msra.mxu0 %v3756
    %4579 = vmatprep.subr.bf16.mxu0 0
    %4580 = vmatpush1.bf16.msra.mxu0 %v3753
    %4581 = vmatprep.subr.bf16.mxu0 0
    %4582 = vmatpush1.bf16.msra.mxu0 %v3750
    %4583 = vmatprep.subr.bf16.mxu0 0
    %4584 = vmatpush1.bf16.msra.mxu0 %v3747
    %4585 = vmatprep.subr.bf16.mxu0 0
    %4586 = vmatpush1.bf16.msra.mxu0 %v3744
    %4587 = vmatprep.subr.bf16.mxu0 0
    %4588 = vmatpush1.bf16.msra.mxu0 %v3741
    %4589 = vmatprep.subr.bf16.mxu0 0
    %4590 = vmatpush2.bf16.msra.mxu0 %v3786
    %4591 = vmatprep.subr.bf16.mxu0 0
    %4592 = vmatpush2.bf16.msra.mxu0 %v3783
    %4593 = vmatprep.subr.bf16.mxu0 0
    %4594 = vmatpush2.bf16.msra.mxu0 %v3780
    %4595 = vmatprep.subr.bf16.mxu0 0
    %4596 = vmatpush2.bf16.msra.mxu0 %v3777
    %4597 = vmatprep.subr.bf16.mxu0 0
    %4598 = vmatpush2.bf16.msra.mxu0 %v3774
    %4599 = vmatprep.subr.bf16.mxu0 0
    %4600 = vmatpush2.bf16.msra.mxu0 %v3771
    %4601 = vmatprep.subr.bf16.mxu0 0
    %4602 = vmatpush2.bf16.msra.mxu0 %v3768
    %4603 = vmatprep.subr.bf16.mxu0 0
    %4604 = vmatpush2.bf16.msra.mxu0 %v3765
    %4605 = vmatprep.mubr.bf16.mxu0 %v2367
    %4606 = vmatmul.mubr.bf16.gmra.mxu0 %v2366
    %v4607 = vpop.f32.mrf.mxu0
    %v4608 = vadd.f32 %v2775, %v4607
    %v4609 = vpop.f32.mrf.mxu0
    %v4610 = vpop.f32.mrf.mxu0
    %v4611 = vadd.f32 %v2775, %v4610
    %v4612 = vpop.f32.mrf.mxu0
    %4613 = vdwg.mxu0
    %4614 = vmatprep.subr.bf16.mxu0 0
    %4615 = vmatpush1.bf16.msra.mxu0 %v3810
    %4616 = vmatprep.subr.bf16.mxu0 0
    %4617 = vmatpush1.bf16.msra.mxu0 %v3807
    %4618 = vmatprep.subr.bf16.mxu0 0
    %4619 = vmatpush1.bf16.msra.mxu0 %v3804
    %4620 = vmatprep.subr.bf16.mxu0 0
    %4621 = vmatpush1.bf16.msra.mxu0 %v3801
    %4622 = vmatprep.subr.bf16.mxu0 0
    %4623 = vmatpush1.bf16.msra.mxu0 %v3798
    %4624 = vmatprep.subr.bf16.mxu0 0
    %4625 = vmatpush1.bf16.msra.mxu0 %v3795
    %4626 = vmatprep.subr.bf16.mxu0 0
    %4627 = vmatpush1.bf16.msra.mxu0 %v3792
    %4628 = vmatprep.subr.bf16.mxu0 0
    %4629 = vmatpush1.bf16.msra.mxu0 %v3789
    %4630 = vmatprep.subr.bf16.mxu0 0
    %4631 = vmatpush2.bf16.msra.mxu0 %v3834
    %4632 = vmatprep.subr.bf16.mxu0 0
    %4633 = vmatpush2.bf16.msra.mxu0 %v3831
    %4634 = vmatprep.subr.bf16.mxu0 0
    %4635 = vmatpush2.bf16.msra.mxu0 %v3828
    %4636 = vmatprep.subr.bf16.mxu0 0
    %4637 = vmatpush2.bf16.msra.mxu0 %v3825
    %4638 = vmatprep.subr.bf16.mxu0 0
    %4639 = vmatpush2.bf16.msra.mxu0 %v3822
    %4640 = vmatprep.subr.bf16.mxu0 0
    %4641 = vmatpush2.bf16.msra.mxu0 %v3819
    %4642 = vmatprep.subr.bf16.mxu0 0
    %4643 = vmatpush2.bf16.msra.mxu0 %v3816
    %4644 = vmatprep.subr.bf16.mxu0 0
    %4645 = vmatpush2.bf16.msra.mxu0 %v3813
    %4646 = vmatprep.mubr.bf16.mxu0 %v2369
    %4647 = vmatmul.mubr.bf16.gmra.mxu0 %v2368
    %v4648 = vpop.f32.mrf.mxu0
    %v4649 = vadd.f32 %v4608, %v4648
    %v4650 = vpop.f32.mrf.mxu0
    %v4651 = vpop.f32.mrf.mxu0
    %v4652 = vadd.f32 %v4611, %v4651
    %v4653 = vpop.f32.mrf.mxu0
    %4654 = vdwg.mxu0
    %4655 = vmatprep.subr.bf16.mxu0 0
    %4656 = vmatpush1.bf16.msra.mxu0 %v3858
    %4657 = vmatprep.subr.bf16.mxu0 0
    %4658 = vmatpush1.bf16.msra.mxu0 %v3855
    %4659 = vmatprep.subr.bf16.mxu0 0
    %4660 = vmatpush1.bf16.msra.mxu0 %v3852
    %4661 = vmatprep.subr.bf16.mxu0 0
    %4662 = vmatpush1.bf16.msra.mxu0 %v3849
    %4663 = vmatprep.subr.bf16.mxu0 0
    %4664 = vmatpush1.bf16.msra.mxu0 %v3846
    %4665 = vmatprep.subr.bf16.mxu0 0
    %4666 = vmatpush1.bf16.msra.mxu0 %v3843
    %4667 = vmatprep.subr.bf16.mxu0 0
    %4668 = vmatpush1.bf16.msra.mxu0 %v3840
    %4669 = vmatprep.subr.bf16.mxu0 0
    %4670 = vmatpush1.bf16.msra.mxu0 %v3837
    %4671 = vmatprep.subr.bf16.mxu0 0
    %4672 = vmatpush2.bf16.msra.mxu0 %v3882
    %4673 = vmatprep.subr.bf16.mxu0 0
    %4674 = vmatpush2.bf16.msra.mxu0 %v3879
    %4675 = vmatprep.subr.bf16.mxu0 0
    %4676 = vmatpush2.bf16.msra.mxu0 %v3876
    %4677 = vmatprep.subr.bf16.mxu0 0
    %4678 = vmatpush2.bf16.msra.mxu0 %v3873
    %4679 = vmatprep.subr.bf16.mxu0 0
    %4680 = vmatpush2.bf16.msra.mxu0 %v3870
    %4681 = vmatprep.subr.bf16.mxu0 0
    %4682 = vmatpush2.bf16.msra.mxu0 %v3867
    %4683 = vmatprep.subr.bf16.mxu0 0
    %4684 = vmatpush2.bf16.msra.mxu0 %v3864
    %4685 = vmatprep.subr.bf16.mxu0 0
    %4686 = vmatpush2.bf16.msra.mxu0 %v3861
    %4687 = vmatprep.mubr.bf16.mxu0 %v2371
    %4688 = vmatmul.mubr.bf16.gmra.mxu0 %v2370
    %v4689 = vpop.f32.mrf.mxu0
    %v4690 = vadd.f32 %v4649, %v4689
    %v4691 = vpop.f32.mrf.mxu0
    %v4692 = vpop.f32.mrf.mxu0
    %v4693 = vadd.f32 %v4652, %v4692
    %v4694 = vpop.f32.mrf.mxu0
    %4695 = vdwg.mxu0
    %4696 = vmatprep.subr.bf16.mxu0 0
    %4697 = vmatpush1.bf16.msra.mxu0 %v3906
    %4698 = vmatprep.subr.bf16.mxu0 0
    %4699 = vmatpush1.bf16.msra.mxu0 %v3903
    %4700 = vmatprep.subr.bf16.mxu0 0
    %4701 = vmatpush1.bf16.msra.mxu0 %v3900
    %4702 = vmatprep.subr.bf16.mxu0 0
    %4703 = vmatpush1.bf16.msra.mxu0 %v3897
    %4704 = vmatprep.subr.bf16.mxu0 0
    %4705 = vmatpush1.bf16.msra.mxu0 %v3894
    %4706 = vmatprep.subr.bf16.mxu0 0
    %4707 = vmatpush1.bf16.msra.mxu0 %v3891
    %4708 = vmatprep.subr.bf16.mxu0 0
    %4709 = vmatpush1.bf16.msra.mxu0 %v3888
    %4710 = vmatprep.subr.bf16.mxu0 0
    %4711 = vmatpush1.bf16.msra.mxu0 %v3885
    %4712 = vmatprep.subr.bf16.mxu0 0
    %4713 = vmatpush2.bf16.msra.mxu0 %v3930
    %4714 = vmatprep.subr.bf16.mxu0 0
    %4715 = vmatpush2.bf16.msra.mxu0 %v3927
    %4716 = vmatprep.subr.bf16.mxu0 0
    %4717 = vmatpush2.bf16.msra.mxu0 %v3924
    %4718 = vmatprep.subr.bf16.mxu0 0
    %4719 = vmatpush2.bf16.msra.mxu0 %v3921
    %4720 = vmatprep.subr.bf16.mxu0 0
    %4721 = vmatpush2.bf16.msra.mxu0 %v3918
    %4722 = vmatprep.subr.bf16.mxu0 0
    %4723 = vmatpush2.bf16.msra.mxu0 %v3915
    %4724 = vmatprep.subr.bf16.mxu0 0
    %4725 = vmatpush2.bf16.msra.mxu0 %v3912
    %4726 = vmatprep.subr.bf16.mxu0 0
    %4727 = vmatpush2.bf16.msra.mxu0 %v3909
    %4728 = vmatprep.mubr.bf16.mxu0 %v2373
    %4729 = vmatmul.mubr.bf16.gmra.mxu0 %v2372
    %v4730 = vpop.f32.mrf.mxu0
    %v4731 = vadd.f32 %v4690, %v4730
    %v4732 = vpop.f32.mrf.mxu0
    %v4733 = vpop.f32.mrf.mxu0
    %v4734 = vadd.f32 %v4693, %v4733
    %v4735 = vpop.f32.mrf.mxu0
    %4736 = vdwg.mxu0
    %4737 = vmatprep.subr.bf16.mxu0 0
    %4738 = vmatpush1.bf16.msra.mxu0 %v3954
    %4739 = vmatprep.subr.bf16.mxu0 0
    %4740 = vmatpush1.bf16.msra.mxu0 %v3951
    %4741 = vmatprep.subr.bf16.mxu0 0
    %4742 = vmatpush1.bf16.msra.mxu0 %v3948
    %4743 = vmatprep.subr.bf16.mxu0 0
    %4744 = vmatpush1.bf16.msra.mxu0 %v3945
    %4745 = vmatprep.subr.bf16.mxu0 0
    %4746 = vmatpush1.bf16.msra.mxu0 %v3942
    %4747 = vmatprep.subr.bf16.mxu0 0
    %4748 = vmatpush1.bf16.msra.mxu0 %v3939
    %4749 = vmatprep.subr.bf16.mxu0 0
    %4750 = vmatpush1.bf16.msra.mxu0 %v3936
    %4751 = vmatprep.subr.bf16.mxu0 0
    %4752 = vmatpush1.bf16.msra.mxu0 %v3933
    %4753 = vmatprep.subr.bf16.mxu0 0
    %4754 = vmatpush2.bf16.msra.mxu0 %v3978
    %4755 = vmatprep.subr.bf16.mxu0 0
    %4756 = vmatpush2.bf16.msra.mxu0 %v3975
    %4757 = vmatprep.subr.bf16.mxu0 0
    %4758 = vmatpush2.bf16.msra.mxu0 %v3972
    %4759 = vmatprep.subr.bf16.mxu0 0
    %4760 = vmatpush2.bf16.msra.mxu0 %v3969
    %4761 = vmatprep.subr.bf16.mxu0 0
    %4762 = vmatpush2.bf16.msra.mxu0 %v3966
    %4763 = vmatprep.subr.bf16.mxu0 0
    %4764 = vmatpush2.bf16.msra.mxu0 %v3963
    %4765 = vmatprep.subr.bf16.mxu0 0
    %4766 = vmatpush2.bf16.msra.mxu0 %v3960
    %4767 = vmatprep.subr.bf16.mxu0 0
    %4768 = vmatpush2.bf16.msra.mxu0 %v3957
    %4769 = vmatprep.mubr.bf16.mxu0 %v2375
    %4770 = vmatmul.mubr.bf16.gmra.mxu0 %v2374
    %v4771 = vpop.f32.mrf.mxu0
    %v4772 = vadd.f32 %v4731, %v4771
    %v4773 = vpop.f32.mrf.mxu0
    %v4774 = vpop.f32.mrf.mxu0
    %v4775 = vadd.f32 %v4734, %v4774
    %v4776 = vpop.f32.mrf.mxu0
    %4777 = vdwg.mxu0
    %4778 = vmatprep.subr.bf16.mxu0 0
    %4779 = vmatpush1.bf16.msra.mxu0 %v4002
    %4780 = vmatprep.subr.bf16.mxu0 0
    %4781 = vmatpush1.bf16.msra.mxu0 %v3999
    %4782 = vmatprep.subr.bf16.mxu0 0
    %4783 = vmatpush1.bf16.msra.mxu0 %v3996
    %4784 = vmatprep.subr.bf16.mxu0 0
    %4785 = vmatpush1.bf16.msra.mxu0 %v3993
    %4786 = vmatprep.subr.bf16.mxu0 0
    %4787 = vmatpush1.bf16.msra.mxu0 %v3990
    %4788 = vmatprep.subr.bf16.mxu0 0
    %4789 = vmatpush1.bf16.msra.mxu0 %v3987
    %4790 = vmatprep.subr.bf16.mxu0 0
    %4791 = vmatpush1.bf16.msra.mxu0 %v3984
    %4792 = vmatprep.subr.bf16.mxu0 0
    %4793 = vmatpush1.bf16.msra.mxu0 %v3981
    %4794 = vmatprep.subr.bf16.mxu0 0
    %4795 = vmatpush2.bf16.msra.mxu0 %v4026
    %4796 = vmatprep.subr.bf16.mxu0 0
    %4797 = vmatpush2.bf16.msra.mxu0 %v4023
    %4798 = vmatprep.subr.bf16.mxu0 0
    %4799 = vmatpush2.bf16.msra.mxu0 %v4020
    %4800 = vmatprep.subr.bf16.mxu0 0
    %4801 = vmatpush2.bf16.msra.mxu0 %v4017
    %4802 = vmatprep.subr.bf16.mxu0 0
    %4803 = vmatpush2.bf16.msra.mxu0 %v4014
    %4804 = vmatprep.subr.bf16.mxu0 0
    %4805 = vmatpush2.bf16.msra.mxu0 %v4011
    %4806 = vmatprep.subr.bf16.mxu0 0
    %4807 = vmatpush2.bf16.msra.mxu0 %v4008
    %4808 = vmatprep.subr.bf16.mxu0 0
    %4809 = vmatpush2.bf16.msra.mxu0 %v4005
    %4810 = vmatprep.mubr.bf16.mxu0 %v2377
    %4811 = vmatmul.mubr.bf16.gmra.mxu0 %v2376
    %v4812 = vpop.f32.mrf.mxu0
    %v4813 = vadd.f32 %v4772, %v4812
    %v4814 = vpop.f32.mrf.mxu0
    %v4815 = vpop.f32.mrf.mxu0
    %v4816 = vadd.f32 %v4775, %v4815
    %v4817 = vpop.f32.mrf.mxu0
    %4818 = vdwg.mxu0
    %v4819 = vld [vmem:[%s1] sm:$0xff]
    %v4820 = vld [vmem:[%s1 + $0x8] sm:$0xff]
    %v4821 = vld [vmem:[%s1 + $0x10] sm:$0xff]
    %v4822 = vld [vmem:[%s1 + $0x18] sm:$0xff]
    %v4823 = vld [vmem:[%s1 + $0x20] sm:$0xff]
    %v4824 = vld [vmem:[%s1 + $0x28] sm:$0xff]
    %v4825 = vmul.f32 %v4565, %v4819
    %v4826 = vmul.f32 %v4567, %v4820
    %v4827 = vmul.f32 %v4813, %v4821
    %v4828 = vmul.f32 %v4569, %v4822
    %v4829 = vmul.f32 %v4571, %v4823
    %v4830 = vmul.f32 %v4816, %v4824
    %4831 = vst [vmem:[#allocation2] sm:$0xff] %v4825
    %4832 = vst [vmem:[#allocation2 + $0x8] sm:$0xff] %v4826
    %4833 = vst [vmem:[#allocation2 + $0x10] sm:$0xff] %v4827
    %4834 = vst [vmem:[#allocation2 + $0x18] sm:$0xff] %v4828
    %4835 = vst [vmem:[#allocation2 + $0x20] sm:$0xff] %v4829
    %4836 = vst [vmem:[#allocation2 + $0x28] sm:$0xff] %v4830
    // Predicated region
    $region26: #{feed_forward.1} parent=1 // pred_check
      _
    $region27: #{feed_forward.1} parent=1 // pred_check_branch
      %4838 = sbr.rel (0) target = $region29
    $region28: #{feed_forward.1} parent=1 // pred_region
      %s4840 = ssub.s32 768, 768
      %4841 = vsyncadd [#allocation3], %s4840
      %s4842 = sshll.u32 [#allocation2], 4
      %s4843 = int_to_ptr.vmem [resolvable:$true] %s4842
      %4848 = dma.vmem_to_hbm [thread:$0]  %s4843, 768, %s6, [#allocation3], 384, 384, 24
    $region29: #{feed_forward.1} parent=1 // pred_fallthru
      _
    // Predicated region
    $region30: #{feed_forward.1} parent=1 // pred_check
      _
    $region31: #{feed_forward.1} parent=1 // pred_check_branch
      %4850 = sbr.rel (0) target = $region33
    $region32: #{feed_forward.1} parent=1 // pred_region
      %4851 = dma.done [#allocation3], 768
    $region33: #{feed_forward.1} parent=1 // pred_fallthru
      _
    %4852 = vsyncpa [#allocation3], 1

</llo_original>
